<compile_context>
chip_gen: v7x
topology: tpu7x:2x2x1
jax: 0.10.0
libtpu: 0.0.40
codegen_flags: <defaults>
</compile_context>

<pallas_src>
import functools

import jax
import jax.numpy as jnp
import numpy as np
from jax import lax
from jax.experimental import pallas as pl
from jax.experimental.pallas import tpu as pltpu

BN_EPS = 1e-5


def _basic_conv_kernel(params_ref, x_ref, o_ref, pad_ref, *,
                       kernel_size, padding, apply_relu):
    """One grid step: (B, Cin, H, W) batch tile -> (B, Cout, H, W).

    params_ref : SMEM (Cout*Cin*K*K + 2*Cout,) f32
        [0 : Cout*Cin*K*K)   conv taps, flattened (o, ci, dy, dx) row-major
        next Cout entries    folded scale  s_o = gamma_o * rsqrt(var_o + eps)
        next Cout entries    folded shift  t_o = beta_o + (bias_o - mean_o)*s_o
    x_ref   : VMEM (B, Cin, H, W)       unpadded input tile
    o_ref   : VMEM (B, Cout, H, W)
    pad_ref : VMEM (B, Cin, H+2P, W+2P) scratch: zero-padded input slab
    """
    K = kernel_size
    P = padding
    B, Cin, H, W = x_ref.shape
    Cout = o_ref.shape[1]
    Hp, Wp = H + 2 * P, W + 2 * P
    n_taps = Cout * Cin * K * K

    # Zero the scratch border once; the interior is fully rewritten each step.
    @pl.when(pl.program_id(0) == 0)
    def _():
        pad_ref[...] = jnp.zeros_like(pad_ref)

    pad_ref[:, :, P:P + H, P:P + W] = x_ref[...]
    slab = pad_ref[...]                                   # (B, Cin, Hp, Wp)

    # --- KxK conv, Cin -> Cout, stride 1: VPU shift-and-accumulate ----------
    # One lane (dx) slice of the whole slab per dx, hoisted out of the inner
    # loops; inside only sublane (dy) slices + scalar multiply-adds remain.
    accs = [jnp.zeros((B, H, W), jnp.float32) for _ in range(Cout)]
    for dx in range(K):
        sl = lax.slice(slab, (0, 0, 0, dx), (B, Cin, Hp, dx + W))
        for dy in range(K):
            win = lax.slice(sl, (0, 0, dy, 0), (B, Cin, dy + H, W))  # (B,Cin,H,W)
            for o in range(Cout):
                a = accs[o]
                base = ((o * Cin) * K + dy) * K + dx
                for ci in range(Cin):
                    a = a + params_ref[base + ci * K * K] * win[:, ci]
                accs[o] = a

    # --- folded (bias + BatchNorm) and optional ReLU, per output channel ----
    for o in range(Cout):
        y = accs[o] * params_ref[n_taps + o] + params_ref[n_taps + Cout + o]
        if apply_relu:
            y = jnp.maximum(y, 0.0)
        o_ref[:, o, :, :] = y.astype(o_ref.dtype)


def _round_up(v, m):
    return ((v + m - 1) // m) * m


def basic_conv(x, conv_w, bn_gamma=None, bn_beta=None, bn_mean=None,
               bn_var=None, *, padding, relu=True, bn=True, conv_bias=None,
               eps=BN_EPS, batch_tile=None,
               vmem_budget_bytes=24 * 1024 * 1024):
    """BasicConv forward (eval-mode BN).

    x       : (N, Cin, H, W) float
    conv_w  : (Cout, Cin, K, K) float  (OIHW, as in nn.Conv2d)
    bn_*    : (Cout,) running stats / affine params (required iff bn=True)
    Only stride=1, dilation=1, groups=1 (the resnet.py configuration).
    """
    N, Cin, H, W = x.shape
    Cout, Cin_w, K, K2 = conv_w.shape
    assert Cin_w == Cin and K == K2, "weight shape must be (Cout, Cin, K, K)"
    P = int(padding)
    Hp, Wp = H + 2 * P, W + 2 * P

    x = x.astype(jnp.float32)
    conv_w = conv_w.astype(jnp.float32)
    bias = (jnp.zeros((Cout,), jnp.float32) if conv_bias is None
            else conv_bias.astype(jnp.float32))

    # Fold conv bias + BatchNorm into one per-channel (scale, shift).
    if bn:
        scale = bn_gamma.astype(jnp.float32) * lax.rsqrt(
            bn_var.astype(jnp.float32) + eps)
        shift = bn_beta.astype(jnp.float32) + (bias - bn_mean.astype(jnp.float32)) * scale
    else:
        scale = jnp.ones((Cout,), jnp.float32)
        shift = bias

    params = jnp.concatenate([conv_w.reshape(-1), scale, shift])  # 1-D SMEM table

    # VMEM working-set for a batch tile of b elements ((8,128) tile padding,
    # double-buffered input/output blocks + scratch slab) -> safe on v7x too.
    def vmem_bytes(b):
        plane = _round_up(H, 8) * _round_up(W, 128) * 4
        pad_plane = _round_up(Hp, 8) * _round_up(Wp, 128) * 4
        in_block = b * Cin * plane
        out_block = b * Cout * plane
        scratch = b * Cin * pad_plane
        return 2 * (in_block + out_block) + scratch

    if batch_tile is None:
        batch_tile = 1
        for b in range(N, 0, -1):
            if N % b == 0 and vmem_bytes(b) <= vmem_budget_bytes:
                batch_tile = b
                break
    assert N % batch_tile == 0, "batch_tile must divide the batch size"

    kernel = functools.partial(_basic_conv_kernel, kernel_size=K, padding=P,
                               apply_relu=bool(relu))

    return pl.pallas_call(
        kernel,
        out_shape=jax.ShapeDtypeStruct((N, Cout, H, W), jnp.float32),
        grid=(N // batch_tile,),
        in_specs=[
            pl.BlockSpec(memory_space=pltpu.MemorySpace.SMEM),   # folded params
            pl.BlockSpec((batch_tile, Cin, H, W), lambda b: (b, 0, 0, 0)),
        ],
        out_specs=pl.BlockSpec((batch_tile, Cout, H, W), lambda b: (b, 0, 0, 0)),
        scratch_shapes=[pltpu.VMEM((batch_tile, Cin, Hp, Wp), jnp.float32)],
        compiler_params=pltpu.CompilerParams(
            # Batch tiles are independent: lets v7x shard the grid across its
            # two TensorCores (no-op on v5e / v6e).
            dimension_semantics=("parallel",),
            vmem_limit_bytes=32 * 1024 * 1024,
        ),
    )(params, x)


def basic_conv_reference(x, conv_w, bn_gamma=None, bn_beta=None, bn_mean=None,
                         bn_var=None, *, padding, relu=True, bn=True,
                         conv_bias=None, eps=BN_EPS):
    """Pure-JAX reference matching the PyTorch forward (eval-mode BN)."""
    out = lax.conv_general_dilated(
        x, conv_w, window_strides=(1, 1),
        padding=((padding, padding), (padding, padding)),
        dimension_numbers=("NCHW", "OIHW", "NCHW"))
    if conv_bias is not None:
        out = out + conv_bias[None, :, None, None]
    if bn:
        out = ((out - bn_mean[None, :, None, None])
               * lax.rsqrt(bn_var[None, :, None, None] + eps)
               * bn_gamma[None, :, None, None]
               + bn_beta[None, :, None, None])
    if relu:
        out = jnp.maximum(out, 0.0)
    return out


if __name__ == "__main__":
    key = jax.random.PRNGKey(0)

    # --- Config A: the resnet.py usage  BasicConv(2, 1, 7, padding=3, relu=False)
    kx, kw, kg, kb, km, kv, key = jax.random.split(key, 7)
    N, Cin, Cout, H, W, K, P = 2, 2, 1, 16, 16, 7, 3
    x = jax.random.normal(kx, (N, Cin, H, W), dtype=jnp.float32)
    w = 0.1 * jax.random.normal(kw, (Cout, Cin, K, K), dtype=jnp.float32)
    gamma = 1.0 + 0.1 * jax.random.normal(kg, (Cout,), dtype=jnp.float32)
    beta = 0.1 * jax.random.normal(kb, (Cout,), dtype=jnp.float32)
    mean = 0.1 * jax.random.normal(km, (Cout,), dtype=jnp.float32)
    var = jnp.abs(jax.random.normal(kv, (Cout,), dtype=jnp.float32)) + 0.5

    out_a = jax.block_until_ready(
        basic_conv(x, w, gamma, beta, mean, var, padding=P, relu=False))
    ref_a = basic_conv_reference(x, w, gamma, beta, mean, var,
                                 padding=P, relu=False)
    assert out_a.shape == (N, Cout, H, W)
    np.testing.assert_allclose(np.asarray(out_a), np.asarray(ref_a),
                               rtol=1e-4, atol=1e-4)

    # --- Config B: default-style  BasicConv(4, 8, 3, padding=1)  (bn + relu)
    kx, kw, kg, kb, km, kv, key = jax.random.split(key, 7)
    N, Cin, Cout, H, W, K, P = 2, 4, 8, 16, 16, 3, 1
    xb = jax.random.normal(kx, (N, Cin, H, W), dtype=jnp.float32)
    wb = 0.1 * jax.random.normal(kw, (Cout, Cin, K, K), dtype=jnp.float32)
    gammab = 1.0 + 0.1 * jax.random.normal(kg, (Cout,), dtype=jnp.float32)
    betab = 0.1 * jax.random.normal(kb, (Cout,), dtype=jnp.float32)
    meanb = 0.1 * jax.random.normal(km, (Cout,), dtype=jnp.float32)
    varb = jnp.abs(jax.random.normal(kv, (Cout,), dtype=jnp.float32)) + 0.5

    out_b = jax.block_until_ready(
        basic_conv(xb, wb, gammab, betab, meanb, varb, padding=P, relu=True))
    ref_b = basic_conv_reference(xb, wb, gammab, betab, meanb, varb,
                                 padding=P, relu=True)
    assert out_b.shape == (N, Cout, H, W)
    np.testing.assert_allclose(np.asarray(out_b), np.asarray(ref_b),
                               rtol=1e-4, atol=1e-4)

    print("KERNEL_OK")
</pallas_src>

<mosaic_0001>
module attributes {stable_mosaic.version = 11 : i64} {
  func.func @_basic_conv_kernel(%arg0: i32, %arg1: memref<100xf32, #tpu.memory_space<smem>>, %arg2: memref<2x2x16x16xf32, #tpu.memory_space<vmem>>, %arg3: memref<2x1x16x16xf32, #tpu.memory_space<vmem>>, %arg4: memref<2x2x22x22xf32, #tpu.memory_space<vmem>>) attributes {dimension_semantics = [#tpu.dimension_semantics<parallel>], iteration_bounds = array<i64: 1>, scalar_prefetch = 0 : i64, scratch_operands = 1 : i64, tpu.core_type = #tpu.core_type<tc>, window_params = [{transform_indices = @transform_0, window_bounds = array<i64: 100>}, {transform_indices = @transform_1, window_bounds = array<i64: 2, 2, 16, 16>}, {transform_indices = @transform_2, window_bounds = array<i64: 2, 1, 16, 16>}]} {
    %c0_i32 = arith.constant 0 : i32
    %0 = arith.cmpi eq, %arg0, %c0_i32 : i32
    %1 = arith.extui %0 : i1 to i32
    %c0_i32_0 = arith.constant 0 : i32
    %2 = arith.cmpi ne, %1, %c0_i32_0 : i32
    scf.if %2 {
      %cst_17 = arith.constant 0.000000e+00 : f32
      %660 = vector.broadcast %cst_17 : f32 to vector<2x2x22x22xf32>
      %c0_18 = arith.constant 0 : index
      %c0_19 = arith.constant 0 : index
      %c0_20 = arith.constant 0 : index
      %c0_21 = arith.constant 0 : index
      %661 = vector.load %arg4[%c0_18, %c0_19, %c0_20, %c0_21] : memref<2x2x22x22xf32, #tpu.memory_space<vmem>>, vector<2x2x22x22xf32>
      tpu.vector_store %arg4[%c0_18, %c0_19, %c0_20, %c0_21], %660 {strides = array<i32>} : memref<2x2x22x22xf32, #tpu.memory_space<vmem>>, vector<2x2x22x22xf32>,
    } else {
    }
    %c0 = arith.constant 0 : index
    %c0_1 = arith.constant 0 : index
    %c0_2 = arith.constant 0 : index
    %c0_3 = arith.constant 0 : index
    %3 = vector.load %arg2[%c0, %c0_1, %c0_2, %c0_3] : memref<2x2x16x16xf32, #tpu.memory_space<vmem>>, vector<2x2x16x16xf32>
    %c0_4 = arith.constant 0 : index
    %c0_5 = arith.constant 0 : index
    %c3 = arith.constant 3 : index
    %c3_6 = arith.constant 3 : index
    %4 = vector.load %arg4[%c0_4, %c0_5, %c3, %c3_6] : memref<2x2x22x22xf32, #tpu.memory_space<vmem>>, vector<2x2x16x16xf32>
    tpu.vector_store %arg4[%c0_4, %c0_5, %c3, %c3_6], %3 {strides = array<i32>} : memref<2x2x22x22xf32, #tpu.memory_space<vmem>>, vector<2x2x16x16xf32>,
    %c0_7 = arith.constant 0 : index
    %c0_8 = arith.constant 0 : index
    %c0_9 = arith.constant 0 : index
    %c0_10 = arith.constant 0 : index
    %5 = vector.load %arg4[%c0_7, %c0_8, %c0_9, %c0_10] : memref<2x2x22x22xf32, #tpu.memory_space<vmem>>, vector<2x2x22x22xf32>
    %cst = arith.constant 0.000000e+00 : f32
    %6 = vector.broadcast %cst : f32 to vector<2x16x16xf32>
    %7 = vector.extract_strided_slice %5 {offsets = [0, 0, 0, 0], sizes = [2, 2, 22, 16], strides = [1, 1, 1, 1]} : vector<2x2x22x22xf32> to vector<2x2x22x16xf32>
    %8 = vector.extract_strided_slice %7 {offsets = [0, 0, 0, 0], sizes = [2, 2, 16, 16], strides = [1, 1, 1, 1]} : vector<2x2x22x16xf32> to vector<2x2x16x16xf32>
    %c0_11 = arith.constant 0 : index
    %9 = memref.load %arg1[%c0_11] : memref<100xf32, #tpu.memory_space<smem>>
    %10 = vector.extract_strided_slice %8 {offsets = [0, 0, 0, 0], sizes = [2, 1, 16, 16], strides = [1, 1, 1, 1]} : vector<2x2x16x16xf32> to vector<2x1x16x16xf32>
    %11 = vector.shape_cast %10 : vector<2x1x16x16xf32> to vector<2x16x16xf32>
    %12 = vector.broadcast %9 : f32 to vector<2x16x16xf32>
    %13 = arith.mulf %12, %11 : vector<2x16x16xf32>
    %14 = arith.addf %6, %13 : vector<2x16x16xf32>
    %c49 = arith.constant 49 : index
    %15 = memref.load %arg1[%c49] : memref<100xf32, #tpu.memory_space<smem>>
    %16 = vector.extract_strided_slice %8 {offsets = [0, 1, 0, 0], sizes = [2, 1, 16, 16], strides = [1, 1, 1, 1]} : vector<2x2x16x16xf32> to vector<2x1x16x16xf32>
    %17 = vector.shape_cast %16 : vector<2x1x16x16xf32> to vector<2x16x16xf32>
    %18 = vector.broadcast %15 : f32 to vector<2x16x16xf32>
    %19 = arith.mulf %18, %17 : vector<2x16x16xf32>
    %20 = arith.addf %14, %19 : vector<2x16x16xf32>
    %21 = vector.extract_strided_slice %7 {offsets = [0, 0, 1, 0], sizes = [2, 2, 16, 16], strides = [1, 1, 1, 1]} : vector<2x2x22x16xf32> to vector<2x2x16x16xf32>
    %c7 = arith.constant 7 : index
    %22 = memref.load %arg1[%c7] : memref<100xf32, #tpu.memory_space<smem>>
    %23 = vector.extract_strided_slice %21 {offsets = [0, 0, 0, 0], sizes = [2, 1, 16, 16], strides = [1, 1, 1, 1]} : vector<2x2x16x16xf32> to vector<2x1x16x16xf32>
    %24 = vector.shape_cast %23 : vector<2x1x16x16xf32> to vector<2x16x16xf32>
    %25 = vector.broadcast %22 : f32 to vector<2x16x16xf32>
    %26 = arith.mulf %25, %24 : vector<2x16x16xf32>
    %27 = arith.addf %20, %26 : vector<2x16x16xf32>
    %c56 = arith.constant 56 : index
    %28 = memref.load %arg1[%c56] : memref<100xf32, #tpu.memory_space<smem>>
    %29 = vector.extract_strided_slice %21 {offsets = [0, 1, 0, 0], sizes = [2, 1, 16, 16], strides = [1, 1, 1, 1]} : vector<2x2x16x16xf32> to vector<2x1x16x16xf32>
    %30 = vector.shape_cast %29 : vector<2x1x16x16xf32> to vector<2x16x16xf32>
    %31 = vector.broadcast %28 : f32 to vector<2x16x16xf32>
    %32 = arith.mulf %31, %30 : vector<2x16x16xf32>
    %33 = arith.addf %27, %32 : vector<2x16x16xf32>
    %34 = vector.extract_strided_slice %7 {offsets = [0, 0, 2, 0], sizes = [2, 2, 16, 16], strides = [1, 1, 1, 1]} : vector<2x2x22x16xf32> to vector<2x2x16x16xf32>
    %c14 = arith.constant 14 : index
    %35 = memref.load %arg1[%c14] : memref<100xf32, #tpu.memory_space<smem>>
    %36 = vector.extract_strided_slice %34 {offsets = [0, 0, 0, 0], sizes = [2, 1, 16, 16], strides = [1, 1, 1, 1]} : vector<2x2x16x16xf32> to vector<2x1x16x16xf32>
    %37 = vector.shape_cast %36 : vector<2x1x16x16xf32> to vector<2x16x16xf32>
    %38 = vector.broadcast %35 : f32 to vector<2x16x16xf32>
    %39 = arith.mulf %38, %37 : vector<2x16x16xf32>
    %40 = arith.addf %33, %39 : vector<2x16x16xf32>
    %c63 = arith.constant 63 : index
    %41 = memref.load %arg1[%c63] : memref<100xf32, #tpu.memory_space<smem>>
    %42 = vector.extract_strided_slice %34 {offsets = [0, 1, 0, 0], sizes = [2, 1, 16, 16], strides = [1, 1, 1, 1]} : vector<2x2x16x16xf32> to vector<2x1x16x16xf32>
    %43 = vector.shape_cast %42 : vector<2x1x16x16xf32> to vector<2x16x16xf32>
    %44 = vector.broadcast %41 : f32 to vector<2x16x16xf32>
    %45 = arith.mulf %44, %43 : vector<2x16x16xf32>
    %46 = arith.addf %40, %45 : vector<2x16x16xf32>
    %47 = vector.extract_strided_slice %7 {offsets = [0, 0, 3, 0], sizes = [2, 2, 16, 16], strides = [1, 1, 1, 1]} : vector<2x2x22x16xf32> to vector<2x2x16x16xf32>
    %c21 = arith.constant 21 : index
    %48 = memref.load %arg1[%c21] : memref<100xf32, #tpu.memory_space<smem>>
    %49 = vector.extract_strided_slice %47 {offsets = [0, 0, 0, 0], sizes = [2, 1, 16, 16], strides = [1, 1, 1, 1]} : vector<2x2x16x16xf32> to vector<2x1x16x16xf32>
    %50 = vector.shape_cast %49 : vector<2x1x16x16xf32> to vector<2x16x16xf32>
    %51 = vector.broadcast %48 : f32 to vector<2x16x16xf32>
    %52 = arith.mulf %51, %50 : vector<2x16x16xf32>
    %53 = arith.addf %46, %52 : vector<2x16x16xf32>
    %c70 = arith.constant 70 : index
    %54 = memref.load %arg1[%c70] : memref<100xf32, #tpu.memory_space<smem>>
    %55 = vector.extract_strided_slice %47 {offsets = [0, 1, 0, 0], sizes = [2, 1, 16, 16], strides = [1, 1, 1, 1]} : vector<2x2x16x16xf32> to vector<2x1x16x16xf32>
    %56 = vector.shape_cast %55 : vector<2x1x16x16xf32> to vector<2x16x16xf32>
    %57 = vector.broadcast %54 : f32 to vector<2x16x16xf32>
    %58 = arith.mulf %57, %56 : vector<2x16x16xf32>
    %59 = arith.addf %53, %58 : vector<2x16x16xf32>
    %60 = vector.extract_strided_slice %7 {offsets = [0, 0, 4, 0], sizes = [2, 2, 16, 16], strides = [1, 1, 1, 1]} : vector<2x2x22x16xf32> to vector<2x2x16x16xf32>
    %c28 = arith.constant 28 : index
    %61 = memref.load %arg1[%c28] : memref<100xf32, #tpu.memory_space<smem>>
    %62 = vector.extract_strided_slice %60 {offsets = [0, 0, 0, 0], sizes = [2, 1, 16, 16], strides = [1, 1, 1, 1]} : vector<2x2x16x16xf32> to vector<2x1x16x16xf32>
    %63 = vector.shape_cast %62 : vector<2x1x16x16xf32> to vector<2x16x16xf32>
    %64 = vector.broadcast %61 : f32 to vector<2x16x16xf32>
    %65 = arith.mulf %64, %63 : vector<2x16x16xf32>
    %66 = arith.addf %59, %65 : vector<2x16x16xf32>
    %c77 = arith.constant 77 : index
    %67 = memref.load %arg1[%c77] : memref<100xf32, #tpu.memory_space<smem>>
    %68 = vector.extract_strided_slice %60 {offsets = [0, 1, 0, 0], sizes = [2, 1, 16, 16], strides = [1, 1, 1, 1]} : vector<2x2x16x16xf32> to vector<2x1x16x16xf32>
    %69 = vector.shape_cast %68 : vector<2x1x16x16xf32> to vector<2x16x16xf32>
    %70 = vector.broadcast %67 : f32 to vector<2x16x16xf32>
    %71 = arith.mulf %70, %69 : vector<2x16x16xf32>
    %72 = arith.addf %66, %71 : vector<2x16x16xf32>
    %73 = vector.extract_strided_slice %7 {offsets = [0, 0, 5, 0], sizes = [2, 2, 16, 16], strides = [1, 1, 1, 1]} : vector<2x2x22x16xf32> to vector<2x2x16x16xf32>
    %c35 = arith.constant 35 : index
    %74 = memref.load %arg1[%c35] : memref<100xf32, #tpu.memory_space<smem>>
    %75 = vector.extract_strided_slice %73 {offsets = [0, 0, 0, 0], sizes = [2, 1, 16, 16], strides = [1, 1, 1, 1]} : vector<2x2x16x16xf32> to vector<2x1x16x16xf32>
    %76 = vector.shape_cast %75 : vector<2x1x16x16xf32> to vector<2x16x16xf32>
    %77 = vector.broadcast %74 : f32 to vector<2x16x16xf32>
    %78 = arith.mulf %77, %76 : vector<2x16x16xf32>
    %79 = arith.addf %72, %78 : vector<2x16x16xf32>
    %c84 = arith.constant 84 : index
    %80 = memref.load %arg1[%c84] : memref<100xf32, #tpu.memory_space<smem>>
    %81 = vector.extract_strided_slice %73 {offsets = [0, 1, 0, 0], sizes = [2, 1, 16, 16], strides = [1, 1, 1, 1]} : vector<2x2x16x16xf32> to vector<2x1x16x16xf32>
    %82 = vector.shape_cast %81 : vector<2x1x16x16xf32> to vector<2x16x16xf32>
    %83 = vector.broadcast %80 : f32 to vector<2x16x16xf32>
    %84 = arith.mulf %83, %82 : vector<2x16x16xf32>
    %85 = arith.addf %79, %84 : vector<2x16x16xf32>
    %86 = vector.extract_strided_slice %7 {offsets = [0, 0, 6, 0], sizes = [2, 2, 16, 16], strides = [1, 1, 1, 1]} : vector<2x2x22x16xf32> to vector<2x2x16x16xf32>
    %c42 = arith.constant 42 : index
    %87 = memref.load %arg1[%c42] : memref<100xf32, #tpu.memory_space<smem>>
    %88 = vector.extract_strided_slice %86 {offsets = [0, 0, 0, 0], sizes = [2, 1, 16, 16], strides = [1, 1, 1, 1]} : vector<2x2x16x16xf32> to vector<2x1x16x16xf32>
    %89 = vector.shape_cast %88 : vector<2x1x16x16xf32> to vector<2x16x16xf32>
    %90 = vector.broadcast %87 : f32 to vector<2x16x16xf32>
    %91 = arith.mulf %90, %89 : vector<2x16x16xf32>
    %92 = arith.addf %85, %91 : vector<2x16x16xf32>
    %c91 = arith.constant 91 : index
    %93 = memref.load %arg1[%c91] : memref<100xf32, #tpu.memory_space<smem>>
    %94 = vector.extract_strided_slice %86 {offsets = [0, 1, 0, 0], sizes = [2, 1, 16, 16], strides = [1, 1, 1, 1]} : vector<2x2x16x16xf32> to vector<2x1x16x16xf32>
    %95 = vector.shape_cast %94 : vector<2x1x16x16xf32> to vector<2x16x16xf32>
    %96 = vector.broadcast %93 : f32 to vector<2x16x16xf32>
    %97 = arith.mulf %96, %95 : vector<2x16x16xf32>
    %98 = arith.addf %92, %97 : vector<2x16x16xf32>
    %99 = vector.extract_strided_slice %5 {offsets = [0, 0, 0, 1], sizes = [2, 2, 22, 16], strides = [1, 1, 1, 1]} : vector<2x2x22x22xf32> to vector<2x2x22x16xf32>
    %100 = vector.extract_strided_slice %99 {offsets = [0, 0, 0, 0], sizes = [2, 2, 16, 16], strides = [1, 1, 1, 1]} : vector<2x2x22x16xf32> to vector<2x2x16x16xf32>
    %c1 = arith.constant 1 : index
    %101 = memref.load %arg1[%c1] : memref<100xf32, #tpu.memory_space<smem>>
    %102 = vector.extract_strided_slice %100 {offsets = [0, 0, 0, 0], sizes = [2, 1, 16, 16], strides = [1, 1, 1, 1]} : vector<2x2x16x16xf32> to vector<2x1x16x16xf32>
    %103 = vector.shape_cast %102 : vector<2x1x16x16xf32> to vector<2x16x16xf32>
    %104 = vector.broadcast %101 : f32 to vector<2x16x16xf32>
    %105 = arith.mulf %104, %103 : vector<2x16x16xf32>
    %106 = arith.addf %98, %105 : vector<2x16x16xf32>
    %c50 = arith.constant 50 : index
    %107 = memref.load %arg1[%c50] : memref<100xf32, #tpu.memory_space<smem>>
    %108 = vector.extract_strided_slice %100 {offsets = [0, 1, 0, 0], sizes = [2, 1, 16, 16], strides = [1, 1, 1, 1]} : vector<2x2x16x16xf32> to vector<2x1x16x16xf32>
    %109 = vector.shape_cast %108 : vector<2x1x16x16xf32> to vector<2x16x16xf32>
    %110 = vector.broadcast %107 : f32 to vector<2x16x16xf32>
    %111 = arith.mulf %110, %109 : vector<2x16x16xf32>
    %112 = arith.addf %106, %111 : vector<2x16x16xf32>
    %113 = vector.extract_strided_slice %99 {offsets = [0, 0, 1, 0], sizes = [2, 2, 16, 16], strides = [1, 1, 1, 1]} : vector<2x2x22x16xf32> to vector<2x2x16x16xf32>
    %c8 = arith.constant 8 : index
    %114 = memref.load %arg1[%c8] : memref<100xf32, #tpu.memory_space<smem>>
    %115 = vector.extract_strided_slice %113 {offsets = [0, 0, 0, 0], sizes = [2, 1, 16, 16], strides = [1, 1, 1, 1]} : vector<2x2x16x16xf32> to vector<2x1x16x16xf32>
    %116 = vector.shape_cast %115 : vector<2x1x16x16xf32> to vector<2x16x16xf32>
    %117 = vector.broadcast %114 : f32 to vector<2x16x16xf32>
    %118 = arith.mulf %117, %116 : vector<2x16x16xf32>
    %119 = arith.addf %112, %118 : vector<2x16x16xf32>
    %c57 = arith.constant 57 : index
    %120 = memref.load %arg1[%c57] : memref<100xf32, #tpu.memory_space<smem>>
    %121 = vector.extract_strided_slice %113 {offsets = [0, 1, 0, 0], sizes = [2, 1, 16, 16], strides = [1, 1, 1, 1]} : vector<2x2x16x16xf32> to vector<2x1x16x16xf32>
    %122 = vector.shape_cast %121 : vector<2x1x16x16xf32> to vector<2x16x16xf32>
    %123 = vector.broadcast %120 : f32 to vector<2x16x16xf32>
    %124 = arith.mulf %123, %122 : vector<2x16x16xf32>
    %125 = arith.addf %119, %124 : vector<2x16x16xf32>
    %126 = vector.extract_strided_slice %99 {offsets = [0, 0, 2, 0], sizes = [2, 2, 16, 16], strides = [1, 1, 1, 1]} : vector<2x2x22x16xf32> to vector<2x2x16x16xf32>
    %c15 = arith.constant 15 : index
    %127 = memref.load %arg1[%c15] : memref<100xf32, #tpu.memory_space<smem>>
    %128 = vector.extract_strided_slice %126 {offsets = [0, 0, 0, 0], sizes = [2, 1, 16, 16], strides = [1, 1, 1, 1]} : vector<2x2x16x16xf32> to vector<2x1x16x16xf32>
    %129 = vector.shape_cast %128 : vector<2x1x16x16xf32> to vector<2x16x16xf32>
    %130 = vector.broadcast %127 : f32 to vector<2x16x16xf32>
    %131 = arith.mulf %130, %129 : vector<2x16x16xf32>
    %132 = arith.addf %125, %131 : vector<2x16x16xf32>
    %c64 = arith.constant 64 : index
    %133 = memref.load %arg1[%c64] : memref<100xf32, #tpu.memory_space<smem>>
    %134 = vector.extract_strided_slice %126 {offsets = [0, 1, 0, 0], sizes = [2, 1, 16, 16], strides = [1, 1, 1, 1]} : vector<2x2x16x16xf32> to vector<2x1x16x16xf32>
    %135 = vector.shape_cast %134 : vector<2x1x16x16xf32> to vector<2x16x16xf32>
    %136 = vector.broadcast %133 : f32 to vector<2x16x16xf32>
    %137 = arith.mulf %136, %135 : vector<2x16x16xf32>
    %138 = arith.addf %132, %137 : vector<2x16x16xf32>
    %139 = vector.extract_strided_slice %99 {offsets = [0, 0, 3, 0], sizes = [2, 2, 16, 16], strides = [1, 1, 1, 1]} : vector<2x2x22x16xf32> to vector<2x2x16x16xf32>
    %c22 = arith.constant 22 : index
    %140 = memref.load %arg1[%c22] : memref<100xf32, #tpu.memory_space<smem>>
    %141 = vector.extract_strided_slice %139 {offsets = [0, 0, 0, 0], sizes = [2, 1, 16, 16], strides = [1, 1, 1, 1]} : vector<2x2x16x16xf32> to vector<2x1x16x16xf32>
    %142 = vector.shape_cast %141 : vector<2x1x16x16xf32> to vector<2x16x16xf32>
    %143 = vector.broadcast %140 : f32 to vector<2x16x16xf32>
    %144 = arith.mulf %143, %142 : vector<2x16x16xf32>
    %145 = arith.addf %138, %144 : vector<2x16x16xf32>
    %c71 = arith.constant 71 : index
    %146 = memref.load %arg1[%c71] : memref<100xf32, #tpu.memory_space<smem>>
    %147 = vector.extract_strided_slice %139 {offsets = [0, 1, 0, 0], sizes = [2, 1, 16, 16], strides = [1, 1, 1, 1]} : vector<2x2x16x16xf32> to vector<2x1x16x16xf32>
    %148 = vector.shape_cast %147 : vector<2x1x16x16xf32> to vector<2x16x16xf32>
    %149 = vector.broadcast %146 : f32 to vector<2x16x16xf32>
    %150 = arith.mulf %149, %148 : vector<2x16x16xf32>
    %151 = arith.addf %145, %150 : vector<2x16x16xf32>
    %152 = vector.extract_strided_slice %99 {offsets = [0, 0, 4, 0], sizes = [2, 2, 16, 16], strides = [1, 1, 1, 1]} : vector<2x2x22x16xf32> to vector<2x2x16x16xf32>
    %c29 = arith.constant 29 : index
    %153 = memref.load %arg1[%c29] : memref<100xf32, #tpu.memory_space<smem>>
    %154 = vector.extract_strided_slice %152 {offsets = [0, 0, 0, 0], sizes = [2, 1, 16, 16], strides = [1, 1, 1, 1]} : vector<2x2x16x16xf32> to vector<2x1x16x16xf32>
    %155 = vector.shape_cast %154 : vector<2x1x16x16xf32> to vector<2x16x16xf32>
    %156 = vector.broadcast %153 : f32 to vector<2x16x16xf32>
    %157 = arith.mulf %156, %155 : vector<2x16x16xf32>
    %158 = arith.addf %151, %157 : vector<2x16x16xf32>
    %c78 = arith.constant 78 : index
    %159 = memref.load %arg1[%c78] : memref<100xf32, #tpu.memory_space<smem>>
    %160 = vector.extract_strided_slice %152 {offsets = [0, 1, 0, 0], sizes = [2, 1, 16, 16], strides = [1, 1, 1, 1]} : vector<2x2x16x16xf32> to vector<2x1x16x16xf32>
    %161 = vector.shape_cast %160 : vector<2x1x16x16xf32> to vector<2x16x16xf32>
    %162 = vector.broadcast %159 : f32 to vector<2x16x16xf32>
    %163 = arith.mulf %162, %161 : vector<2x16x16xf32>
    %164 = arith.addf %158, %163 : vector<2x16x16xf32>
    %165 = vector.extract_strided_slice %99 {offsets = [0, 0, 5, 0], sizes = [2, 2, 16, 16], strides = [1, 1, 1, 1]} : vector<2x2x22x16xf32> to vector<2x2x16x16xf32>
    %c36 = arith.constant 36 : index
    %166 = memref.load %arg1[%c36] : memref<100xf32, #tpu.memory_space<smem>>
    %167 = vector.extract_strided_slice %165 {offsets = [0, 0, 0, 0], sizes = [2, 1, 16, 16], strides = [1, 1, 1, 1]} : vector<2x2x16x16xf32> to vector<2x1x16x16xf32>
    %168 = vector.shape_cast %167 : vector<2x1x16x16xf32> to vector<2x16x16xf32>
    %169 = vector.broadcast %166 : f32 to vector<2x16x16xf32>
    %170 = arith.mulf %169, %168 : vector<2x16x16xf32>
    %171 = arith.addf %164, %170 : vector<2x16x16xf32>
    %c85 = arith.constant 85 : index
    %172 = memref.load %arg1[%c85] : memref<100xf32, #tpu.memory_space<smem>>
    %173 = vector.extract_strided_slice %165 {offsets = [0, 1, 0, 0], sizes = [2, 1, 16, 16], strides = [1, 1, 1, 1]} : vector<2x2x16x16xf32> to vector<2x1x16x16xf32>
    %174 = vector.shape_cast %173 : vector<2x1x16x16xf32> to vector<2x16x16xf32>
    %175 = vector.broadcast %172 : f32 to vector<2x16x16xf32>
    %176 = arith.mulf %175, %174 : vector<2x16x16xf32>
    %177 = arith.addf %171, %176 : vector<2x16x16xf32>
    %178 = vector.extract_strided_slice %99 {offsets = [0, 0, 6, 0], sizes = [2, 2, 16, 16], strides = [1, 1, 1, 1]} : vector<2x2x22x16xf32> to vector<2x2x16x16xf32>
    %c43 = arith.constant 43 : index
    %179 = memref.load %arg1[%c43] : memref<100xf32, #tpu.memory_space<smem>>
    %180 = vector.extract_strided_slice %178 {offsets = [0, 0, 0, 0], sizes = [2, 1, 16, 16], strides = [1, 1, 1, 1]} : vector<2x2x16x16xf32> to vector<2x1x16x16xf32>
    %181 = vector.shape_cast %180 : vector<2x1x16x16xf32> to vector<2x16x16xf32>
    %182 = vector.broadcast %179 : f32 to vector<2x16x16xf32>
    %183 = arith.mulf %182, %181 : vector<2x16x16xf32>
    %184 = arith.addf %177, %183 : vector<2x16x16xf32>
    %c92 = arith.constant 92 : index
    %185 = memref.load %arg1[%c92] : memref<100xf32, #tpu.memory_space<smem>>
    %186 = vector.extract_strided_slice %178 {offsets = [0, 1, 0, 0], sizes = [2, 1, 16, 16], strides = [1, 1, 1, 1]} : vector<2x2x16x16xf32> to vector<2x1x16x16xf32>
    %187 = vector.shape_cast %186 : vector<2x1x16x16xf32> to vector<2x16x16xf32>
    %188 = vector.broadcast %185 : f32 to vector<2x16x16xf32>
    %189 = arith.mulf %188, %187 : vector<2x16x16xf32>
    %190 = arith.addf %184, %189 : vector<2x16x16xf32>
    %191 = vector.extract_strided_slice %5 {offsets = [0, 0, 0, 2], sizes = [2, 2, 22, 16], strides = [1, 1, 1, 1]} : vector<2x2x22x22xf32> to vector<2x2x22x16xf32>
    %192 = vector.extract_strided_slice %191 {offsets = [0, 0, 0, 0], sizes = [2, 2, 16, 16], strides = [1, 1, 1, 1]} : vector<2x2x22x16xf32> to vector<2x2x16x16xf32>
    %c2 = arith.constant 2 : index
    %193 = memref.load %arg1[%c2] : memref<100xf32, #tpu.memory_space<smem>>
    %194 = vector.extract_strided_slice %192 {offsets = [0, 0, 0, 0], sizes = [2, 1, 16, 16], strides = [1, 1, 1, 1]} : vector<2x2x16x16xf32> to vector<2x1x16x16xf32>
    %195 = vector.shape_cast %194 : vector<2x1x16x16xf32> to vector<2x16x16xf32>
    %196 = vector.broadcast %193 : f32 to vector<2x16x16xf32>
    %197 = arith.mulf %196, %195 : vector<2x16x16xf32>
    %198 = arith.addf %190, %197 : vector<2x16x16xf32>
    %c51 = arith.constant 51 : index
    %199 = memref.load %arg1[%c51] : memref<100xf32, #tpu.memory_space<smem>>
    %200 = vector.extract_strided_slice %192 {offsets = [0, 1, 0, 0], sizes = [2, 1, 16, 16], strides = [1, 1, 1, 1]} : vector<2x2x16x16xf32> to vector<2x1x16x16xf32>
    %201 = vector.shape_cast %200 : vector<2x1x16x16xf32> to vector<2x16x16xf32>
    %202 = vector.broadcast %199 : f32 to vector<2x16x16xf32>
    %203 = arith.mulf %202, %201 : vector<2x16x16xf32>
    %204 = arith.addf %198, %203 : vector<2x16x16xf32>
    %205 = vector.extract_strided_slice %191 {offsets = [0, 0, 1, 0], sizes = [2, 2, 16, 16], strides = [1, 1, 1, 1]} : vector<2x2x22x16xf32> to vector<2x2x16x16xf32>
    %c9 = arith.constant 9 : index
    %206 = memref.load %arg1[%c9] : memref<100xf32, #tpu.memory_space<smem>>
    %207 = vector.extract_strided_slice %205 {offsets = [0, 0, 0, 0], sizes = [2, 1, 16, 16], strides = [1, 1, 1, 1]} : vector<2x2x16x16xf32> to vector<2x1x16x16xf32>
    %208 = vector.shape_cast %207 : vector<2x1x16x16xf32> to vector<2x16x16xf32>
    %209 = vector.broadcast %206 : f32 to vector<2x16x16xf32>
    %210 = arith.mulf %209, %208 : vector<2x16x16xf32>
    %211 = arith.addf %204, %210 : vector<2x16x16xf32>
    %c58 = arith.constant 58 : index
    %212 = memref.load %arg1[%c58] : memref<100xf32, #tpu.memory_space<smem>>
    %213 = vector.extract_strided_slice %205 {offsets = [0, 1, 0, 0], sizes = [2, 1, 16, 16], strides = [1, 1, 1, 1]} : vector<2x2x16x16xf32> to vector<2x1x16x16xf32>
    %214 = vector.shape_cast %213 : vector<2x1x16x16xf32> to vector<2x16x16xf32>
    %215 = vector.broadcast %212 : f32 to vector<2x16x16xf32>
    %216 = arith.mulf %215, %214 : vector<2x16x16xf32>
    %217 = arith.addf %211, %216 : vector<2x16x16xf32>
    %218 = vector.extract_strided_slice %191 {offsets = [0, 0, 2, 0], sizes = [2, 2, 16, 16], strides = [1, 1, 1, 1]} : vector<2x2x22x16xf32> to vector<2x2x16x16xf32>
    %c16 = arith.constant 16 : index
    %219 = memref.load %arg1[%c16] : memref<100xf32, #tpu.memory_space<smem>>
    %220 = vector.extract_strided_slice %218 {offsets = [0, 0, 0, 0], sizes = [2, 1, 16, 16], strides = [1, 1, 1, 1]} : vector<2x2x16x16xf32> to vector<2x1x16x16xf32>
    %221 = vector.shape_cast %220 : vector<2x1x16x16xf32> to vector<2x16x16xf32>
    %222 = vector.broadcast %219 : f32 to vector<2x16x16xf32>
    %223 = arith.mulf %222, %221 : vector<2x16x16xf32>
    %224 = arith.addf %217, %223 : vector<2x16x16xf32>
    %c65 = arith.constant 65 : index
    %225 = memref.load %arg1[%c65] : memref<100xf32, #tpu.memory_space<smem>>
    %226 = vector.extract_strided_slice %218 {offsets = [0, 1, 0, 0], sizes = [2, 1, 16, 16], strides = [1, 1, 1, 1]} : vector<2x2x16x16xf32> to vector<2x1x16x16xf32>
    %227 = vector.shape_cast %226 : vector<2x1x16x16xf32> to vector<2x16x16xf32>
    %228 = vector.broadcast %225 : f32 to vector<2x16x16xf32>
    %229 = arith.mulf %228, %227 : vector<2x16x16xf32>
    %230 = arith.addf %224, %229 : vector<2x16x16xf32>
    %231 = vector.extract_strided_slice %191 {offsets = [0, 0, 3, 0], sizes = [2, 2, 16, 16], strides = [1, 1, 1, 1]} : vector<2x2x22x16xf32> to vector<2x2x16x16xf32>
    %c23 = arith.constant 23 : index
    %232 = memref.load %arg1[%c23] : memref<100xf32, #tpu.memory_space<smem>>
    %233 = vector.extract_strided_slice %231 {offsets = [0, 0, 0, 0], sizes = [2, 1, 16, 16], strides = [1, 1, 1, 1]} : vector<2x2x16x16xf32> to vector<2x1x16x16xf32>
    %234 = vector.shape_cast %233 : vector<2x1x16x16xf32> to vector<2x16x16xf32>
    %235 = vector.broadcast %232 : f32 to vector<2x16x16xf32>
    %236 = arith.mulf %235, %234 : vector<2x16x16xf32>
    %237 = arith.addf %230, %236 : vector<2x16x16xf32>
    %c72 = arith.constant 72 : index
    %238 = memref.load %arg1[%c72] : memref<100xf32, #tpu.memory_space<smem>>
    %239 = vector.extract_strided_slice %231 {offsets = [0, 1, 0, 0], sizes = [2, 1, 16, 16], strides = [1, 1, 1, 1]} : vector<2x2x16x16xf32> to vector<2x1x16x16xf32>
    %240 = vector.shape_cast %239 : vector<2x1x16x16xf32> to vector<2x16x16xf32>
    %241 = vector.broadcast %238 : f32 to vector<2x16x16xf32>
    %242 = arith.mulf %241, %240 : vector<2x16x16xf32>
    %243 = arith.addf %237, %242 : vector<2x16x16xf32>
    %244 = vector.extract_strided_slice %191 {offsets = [0, 0, 4, 0], sizes = [2, 2, 16, 16], strides = [1, 1, 1, 1]} : vector<2x2x22x16xf32> to vector<2x2x16x16xf32>
    %c30 = arith.constant 30 : index
    %245 = memref.load %arg1[%c30] : memref<100xf32, #tpu.memory_space<smem>>
    %246 = vector.extract_strided_slice %244 {offsets = [0, 0, 0, 0], sizes = [2, 1, 16, 16], strides = [1, 1, 1, 1]} : vector<2x2x16x16xf32> to vector<2x1x16x16xf32>
    %247 = vector.shape_cast %246 : vector<2x1x16x16xf32> to vector<2x16x16xf32>
    %248 = vector.broadcast %245 : f32 to vector<2x16x16xf32>
    %249 = arith.mulf %248, %247 : vector<2x16x16xf32>
    %250 = arith.addf %243, %249 : vector<2x16x16xf32>
    %c79 = arith.constant 79 : index
    %251 = memref.load %arg1[%c79] : memref<100xf32, #tpu.memory_space<smem>>
    %252 = vector.extract_strided_slice %244 {offsets = [0, 1, 0, 0], sizes = [2, 1, 16, 16], strides = [1, 1, 1, 1]} : vector<2x2x16x16xf32> to vector<2x1x16x16xf32>
    %253 = vector.shape_cast %252 : vector<2x1x16x16xf32> to vector<2x16x16xf32>
    %254 = vector.broadcast %251 : f32 to vector<2x16x16xf32>
    %255 = arith.mulf %254, %253 : vector<2x16x16xf32>
    %256 = arith.addf %250, %255 : vector<2x16x16xf32>
    %257 = vector.extract_strided_slice %191 {offsets = [0, 0, 5, 0], sizes = [2, 2, 16, 16], strides = [1, 1, 1, 1]} : vector<2x2x22x16xf32> to vector<2x2x16x16xf32>
    %c37 = arith.constant 37 : index
    %258 = memref.load %arg1[%c37] : memref<100xf32, #tpu.memory_space<smem>>
    %259 = vector.extract_strided_slice %257 {offsets = [0, 0, 0, 0], sizes = [2, 1, 16, 16], strides = [1, 1, 1, 1]} : vector<2x2x16x16xf32> to vector<2x1x16x16xf32>
    %260 = vector.shape_cast %259 : vector<2x1x16x16xf32> to vector<2x16x16xf32>
    %261 = vector.broadcast %258 : f32 to vector<2x16x16xf32>
    %262 = arith.mulf %261, %260 : vector<2x16x16xf32>
    %263 = arith.addf %256, %262 : vector<2x16x16xf32>
    %c86 = arith.constant 86 : index
    %264 = memref.load %arg1[%c86] : memref<100xf32, #tpu.memory_space<smem>>
    %265 = vector.extract_strided_slice %257 {offsets = [0, 1, 0, 0], sizes = [2, 1, 16, 16], strides = [1, 1, 1, 1]} : vector<2x2x16x16xf32> to vector<2x1x16x16xf32>
    %266 = vector.shape_cast %265 : vector<2x1x16x16xf32> to vector<2x16x16xf32>
    %267 = vector.broadcast %264 : f32 to vector<2x16x16xf32>
    %268 = arith.mulf %267, %266 : vector<2x16x16xf32>
    %269 = arith.addf %263, %268 : vector<2x16x16xf32>
    %270 = vector.extract_strided_slice %191 {offsets = [0, 0, 6, 0], sizes = [2, 2, 16, 16], strides = [1, 1, 1, 1]} : vector<2x2x22x16xf32> to vector<2x2x16x16xf32>
    %c44 = arith.constant 44 : index
    %271 = memref.load %arg1[%c44] : memref<100xf32, #tpu.memory_space<smem>>
    %272 = vector.extract_strided_slice %270 {offsets = [0, 0, 0, 0], sizes = [2, 1, 16, 16], strides = [1, 1, 1, 1]} : vector<2x2x16x16xf32> to vector<2x1x16x16xf32>
    %273 = vector.shape_cast %272 : vector<2x1x16x16xf32> to vector<2x16x16xf32>
    %274 = vector.broadcast %271 : f32 to vector<2x16x16xf32>
    %275 = arith.mulf %274, %273 : vector<2x16x16xf32>
    %276 = arith.addf %269, %275 : vector<2x16x16xf32>
    %c93 = arith.constant 93 : index
    %277 = memref.load %arg1[%c93] : memref<100xf32, #tpu.memory_space<smem>>
    %278 = vector.extract_strided_slice %270 {offsets = [0, 1, 0, 0], sizes = [2, 1, 16, 16], strides = [1, 1, 1, 1]} : vector<2x2x16x16xf32> to vector<2x1x16x16xf32>
    %279 = vector.shape_cast %278 : vector<2x1x16x16xf32> to vector<2x16x16xf32>
    %280 = vector.broadcast %277 : f32 to vector<2x16x16xf32>
    %281 = arith.mulf %280, %279 : vector<2x16x16xf32>
    %282 = arith.addf %276, %281 : vector<2x16x16xf32>
    %283 = vector.extract_strided_slice %5 {offsets = [0, 0, 0, 3], sizes = [2, 2, 22, 16], strides = [1, 1, 1, 1]} : vector<2x2x22x22xf32> to vector<2x2x22x16xf32>
    %284 = vector.extract_strided_slice %283 {offsets = [0, 0, 0, 0], sizes = [2, 2, 16, 16], strides = [1, 1, 1, 1]} : vector<2x2x22x16xf32> to vector<2x2x16x16xf32>
    %c3_12 = arith.constant 3 : index
    %285 = memref.load %arg1[%c3_12] : memref<100xf32, #tpu.memory_space<smem>>
    %286 = vector.extract_strided_slice %284 {offsets = [0, 0, 0, 0], sizes = [2, 1, 16, 16], strides = [1, 1, 1, 1]} : vector<2x2x16x16xf32> to vector<2x1x16x16xf32>
    %287 = vector.shape_cast %286 : vector<2x1x16x16xf32> to vector<2x16x16xf32>
    %288 = vector.broadcast %285 : f32 to vector<2x16x16xf32>
    %289 = arith.mulf %288, %287 : vector<2x16x16xf32>
    %290 = arith.addf %282, %289 : vector<2x16x16xf32>
    %c52 = arith.constant 52 : index
    %291 = memref.load %arg1[%c52] : memref<100xf32, #tpu.memory_space<smem>>
    %292 = vector.extract_strided_slice %284 {offsets = [0, 1, 0, 0], sizes = [2, 1, 16, 16], strides = [1, 1, 1, 1]} : vector<2x2x16x16xf32> to vector<2x1x16x16xf32>
    %293 = vector.shape_cast %292 : vector<2x1x16x16xf32> to vector<2x16x16xf32>
    %294 = vector.broadcast %291 : f32 to vector<2x16x16xf32>
    %295 = arith.mulf %294, %293 : vector<2x16x16xf32>
    %296 = arith.addf %290, %295 : vector<2x16x16xf32>
    %297 = vector.extract_strided_slice %283 {offsets = [0, 0, 1, 0], sizes = [2, 2, 16, 16], strides = [1, 1, 1, 1]} : vector<2x2x22x16xf32> to vector<2x2x16x16xf32>
    %c10 = arith.constant 10 : index
    %298 = memref.load %arg1[%c10] : memref<100xf32, #tpu.memory_space<smem>>
    %299 = vector.extract_strided_slice %297 {offsets = [0, 0, 0, 0], sizes = [2, 1, 16, 16], strides = [1, 1, 1, 1]} : vector<2x2x16x16xf32> to vector<2x1x16x16xf32>
    %300 = vector.shape_cast %299 : vector<2x1x16x16xf32> to vector<2x16x16xf32>
    %301 = vector.broadcast %298 : f32 to vector<2x16x16xf32>
    %302 = arith.mulf %301, %300 : vector<2x16x16xf32>
    %303 = arith.addf %296, %302 : vector<2x16x16xf32>
    %c59 = arith.constant 59 : index
    %304 = memref.load %arg1[%c59] : memref<100xf32, #tpu.memory_space<smem>>
    %305 = vector.extract_strided_slice %297 {offsets = [0, 1, 0, 0], sizes = [2, 1, 16, 16], strides = [1, 1, 1, 1]} : vector<2x2x16x16xf32> to vector<2x1x16x16xf32>
    %306 = vector.shape_cast %305 : vector<2x1x16x16xf32> to vector<2x16x16xf32>
    %307 = vector.broadcast %304 : f32 to vector<2x16x16xf32>
    %308 = arith.mulf %307, %306 : vector<2x16x16xf32>
    %309 = arith.addf %303, %308 : vector<2x16x16xf32>
    %310 = vector.extract_strided_slice %283 {offsets = [0, 0, 2, 0], sizes = [2, 2, 16, 16], strides = [1, 1, 1, 1]} : vector<2x2x22x16xf32> to vector<2x2x16x16xf32>
    %c17 = arith.constant 17 : index
    %311 = memref.load %arg1[%c17] : memref<100xf32, #tpu.memory_space<smem>>
    %312 = vector.extract_strided_slice %310 {offsets = [0, 0, 0, 0], sizes = [2, 1, 16, 16], strides = [1, 1, 1, 1]} : vector<2x2x16x16xf32> to vector<2x1x16x16xf32>
    %313 = vector.shape_cast %312 : vector<2x1x16x16xf32> to vector<2x16x16xf32>
    %314 = vector.broadcast %311 : f32 to vector<2x16x16xf32>
    %315 = arith.mulf %314, %313 : vector<2x16x16xf32>
    %316 = arith.addf %309, %315 : vector<2x16x16xf32>
    %c66 = arith.constant 66 : index
    %317 = memref.load %arg1[%c66] : memref<100xf32, #tpu.memory_space<smem>>
    %318 = vector.extract_strided_slice %310 {offsets = [0, 1, 0, 0], sizes = [2, 1, 16, 16], strides = [1, 1, 1, 1]} : vector<2x2x16x16xf32> to vector<2x1x16x16xf32>
    %319 = vector.shape_cast %318 : vector<2x1x16x16xf32> to vector<2x16x16xf32>
    %320 = vector.broadcast %317 : f32 to vector<2x16x16xf32>
    %321 = arith.mulf %320, %319 : vector<2x16x16xf32>
    %322 = arith.addf %316, %321 : vector<2x16x16xf32>
    %323 = vector.extract_strided_slice %283 {offsets = [0, 0, 3, 0], sizes = [2, 2, 16, 16], strides = [1, 1, 1, 1]} : vector<2x2x22x16xf32> to vector<2x2x16x16xf32>
    %c24 = arith.constant 24 : index
    %324 = memref.load %arg1[%c24] : memref<100xf32, #tpu.memory_space<smem>>
    %325 = vector.extract_strided_slice %323 {offsets = [0, 0, 0, 0], sizes = [2, 1, 16, 16], strides = [1, 1, 1, 1]} : vector<2x2x16x16xf32> to vector<2x1x16x16xf32>
    %326 = vector.shape_cast %325 : vector<2x1x16x16xf32> to vector<2x16x16xf32>
    %327 = vector.broadcast %324 : f32 to vector<2x16x16xf32>
    %328 = arith.mulf %327, %326 : vector<2x16x16xf32>
    %329 = arith.addf %322, %328 : vector<2x16x16xf32>
    %c73 = arith.constant 73 : index
    %330 = memref.load %arg1[%c73] : memref<100xf32, #tpu.memory_space<smem>>
    %331 = vector.extract_strided_slice %323 {offsets = [0, 1, 0, 0], sizes = [2, 1, 16, 16], strides = [1, 1, 1, 1]} : vector<2x2x16x16xf32> to vector<2x1x16x16xf32>
    %332 = vector.shape_cast %331 : vector<2x1x16x16xf32> to vector<2x16x16xf32>
    %333 = vector.broadcast %330 : f32 to vector<2x16x16xf32>
    %334 = arith.mulf %333, %332 : vector<2x16x16xf32>
    %335 = arith.addf %329, %334 : vector<2x16x16xf32>
    %336 = vector.extract_strided_slice %283 {offsets = [0, 0, 4, 0], sizes = [2, 2, 16, 16], strides = [1, 1, 1, 1]} : vector<2x2x22x16xf32> to vector<2x2x16x16xf32>
    %c31 = arith.constant 31 : index
    %337 = memref.load %arg1[%c31] : memref<100xf32, #tpu.memory_space<smem>>
    %338 = vector.extract_strided_slice %336 {offsets = [0, 0, 0, 0], sizes = [2, 1, 16, 16], strides = [1, 1, 1, 1]} : vector<2x2x16x16xf32> to vector<2x1x16x16xf32>
    %339 = vector.shape_cast %338 : vector<2x1x16x16xf32> to vector<2x16x16xf32>
    %340 = vector.broadcast %337 : f32 to vector<2x16x16xf32>
    %341 = arith.mulf %340, %339 : vector<2x16x16xf32>
    %342 = arith.addf %335, %341 : vector<2x16x16xf32>
    %c80 = arith.constant 80 : index
    %343 = memref.load %arg1[%c80] : memref<100xf32, #tpu.memory_space<smem>>
    %344 = vector.extract_strided_slice %336 {offsets = [0, 1, 0, 0], sizes = [2, 1, 16, 16], strides = [1, 1, 1, 1]} : vector<2x2x16x16xf32> to vector<2x1x16x16xf32>
    %345 = vector.shape_cast %344 : vector<2x1x16x16xf32> to vector<2x16x16xf32>
    %346 = vector.broadcast %343 : f32 to vector<2x16x16xf32>
    %347 = arith.mulf %346, %345 : vector<2x16x16xf32>
    %348 = arith.addf %342, %347 : vector<2x16x16xf32>
    %349 = vector.extract_strided_slice %283 {offsets = [0, 0, 5, 0], sizes = [2, 2, 16, 16], strides = [1, 1, 1, 1]} : vector<2x2x22x16xf32> to vector<2x2x16x16xf32>
    %c38 = arith.constant 38 : index
    %350 = memref.load %arg1[%c38] : memref<100xf32, #tpu.memory_space<smem>>
    %351 = vector.extract_strided_slice %349 {offsets = [0, 0, 0, 0], sizes = [2, 1, 16, 16], strides = [1, 1, 1, 1]} : vector<2x2x16x16xf32> to vector<2x1x16x16xf32>
    %352 = vector.shape_cast %351 : vector<2x1x16x16xf32> to vector<2x16x16xf32>
    %353 = vector.broadcast %350 : f32 to vector<2x16x16xf32>
    %354 = arith.mulf %353, %352 : vector<2x16x16xf32>
    %355 = arith.addf %348, %354 : vector<2x16x16xf32>
    %c87 = arith.constant 87 : index
    %356 = memref.load %arg1[%c87] : memref<100xf32, #tpu.memory_space<smem>>
    %357 = vector.extract_strided_slice %349 {offsets = [0, 1, 0, 0], sizes = [2, 1, 16, 16], strides = [1, 1, 1, 1]} : vector<2x2x16x16xf32> to vector<2x1x16x16xf32>
    %358 = vector.shape_cast %357 : vector<2x1x16x16xf32> to vector<2x16x16xf32>
    %359 = vector.broadcast %356 : f32 to vector<2x16x16xf32>
    %360 = arith.mulf %359, %358 : vector<2x16x16xf32>
    %361 = arith.addf %355, %360 : vector<2x16x16xf32>
    %362 = vector.extract_strided_slice %283 {offsets = [0, 0, 6, 0], sizes = [2, 2, 16, 16], strides = [1, 1, 1, 1]} : vector<2x2x22x16xf32> to vector<2x2x16x16xf32>
    %c45 = arith.constant 45 : index
    %363 = memref.load %arg1[%c45] : memref<100xf32, #tpu.memory_space<smem>>
    %364 = vector.extract_strided_slice %362 {offsets = [0, 0, 0, 0], sizes = [2, 1, 16, 16], strides = [1, 1, 1, 1]} : vector<2x2x16x16xf32> to vector<2x1x16x16xf32>
    %365 = vector.shape_cast %364 : vector<2x1x16x16xf32> to vector<2x16x16xf32>
    %366 = vector.broadcast %363 : f32 to vector<2x16x16xf32>
    %367 = arith.mulf %366, %365 : vector<2x16x16xf32>
    %368 = arith.addf %361, %367 : vector<2x16x16xf32>
    %c94 = arith.constant 94 : index
    %369 = memref.load %arg1[%c94] : memref<100xf32, #tpu.memory_space<smem>>
    %370 = vector.extract_strided_slice %362 {offsets = [0, 1, 0, 0], sizes = [2, 1, 16, 16], strides = [1, 1, 1, 1]} : vector<2x2x16x16xf32> to vector<2x1x16x16xf32>
    %371 = vector.shape_cast %370 : vector<2x1x16x16xf32> to vector<2x16x16xf32>
    %372 = vector.broadcast %369 : f32 to vector<2x16x16xf32>
    %373 = arith.mulf %372, %371 : vector<2x16x16xf32>
    %374 = arith.addf %368, %373 : vector<2x16x16xf32>
    %375 = vector.extract_strided_slice %5 {offsets = [0, 0, 0, 4], sizes = [2, 2, 22, 16], strides = [1, 1, 1, 1]} : vector<2x2x22x22xf32> to vector<2x2x22x16xf32>
    %376 = vector.extract_strided_slice %375 {offsets = [0, 0, 0, 0], sizes = [2, 2, 16, 16], strides = [1, 1, 1, 1]} : vector<2x2x22x16xf32> to vector<2x2x16x16xf32>
    %c4 = arith.constant 4 : index
    %377 = memref.load %arg1[%c4] : memref<100xf32, #tpu.memory_space<smem>>
    %378 = vector.extract_strided_slice %376 {offsets = [0, 0, 0, 0], sizes = [2, 1, 16, 16], strides = [1, 1, 1, 1]} : vector<2x2x16x16xf32> to vector<2x1x16x16xf32>
    %379 = vector.shape_cast %378 : vector<2x1x16x16xf32> to vector<2x16x16xf32>
    %380 = vector.broadcast %377 : f32 to vector<2x16x16xf32>
    %381 = arith.mulf %380, %379 : vector<2x16x16xf32>
    %382 = arith.addf %374, %381 : vector<2x16x16xf32>
    %c53 = arith.constant 53 : index
    %383 = memref.load %arg1[%c53] : memref<100xf32, #tpu.memory_space<smem>>
    %384 = vector.extract_strided_slice %376 {offsets = [0, 1, 0, 0], sizes = [2, 1, 16, 16], strides = [1, 1, 1, 1]} : vector<2x2x16x16xf32> to vector<2x1x16x16xf32>
    %385 = vector.shape_cast %384 : vector<2x1x16x16xf32> to vector<2x16x16xf32>
    %386 = vector.broadcast %383 : f32 to vector<2x16x16xf32>
    %387 = arith.mulf %386, %385 : vector<2x16x16xf32>
    %388 = arith.addf %382, %387 : vector<2x16x16xf32>
    %389 = vector.extract_strided_slice %375 {offsets = [0, 0, 1, 0], sizes = [2, 2, 16, 16], strides = [1, 1, 1, 1]} : vector<2x2x22x16xf32> to vector<2x2x16x16xf32>
    %c11 = arith.constant 11 : index
    %390 = memref.load %arg1[%c11] : memref<100xf32, #tpu.memory_space<smem>>
    %391 = vector.extract_strided_slice %389 {offsets = [0, 0, 0, 0], sizes = [2, 1, 16, 16], strides = [1, 1, 1, 1]} : vector<2x2x16x16xf32> to vector<2x1x16x16xf32>
    %392 = vector.shape_cast %391 : vector<2x1x16x16xf32> to vector<2x16x16xf32>
    %393 = vector.broadcast %390 : f32 to vector<2x16x16xf32>
    %394 = arith.mulf %393, %392 : vector<2x16x16xf32>
    %395 = arith.addf %388, %394 : vector<2x16x16xf32>
    %c60 = arith.constant 60 : index
    %396 = memref.load %arg1[%c60] : memref<100xf32, #tpu.memory_space<smem>>
    %397 = vector.extract_strided_slice %389 {offsets = [0, 1, 0, 0], sizes = [2, 1, 16, 16], strides = [1, 1, 1, 1]} : vector<2x2x16x16xf32> to vector<2x1x16x16xf32>
    %398 = vector.shape_cast %397 : vector<2x1x16x16xf32> to vector<2x16x16xf32>
    %399 = vector.broadcast %396 : f32 to vector<2x16x16xf32>
    %400 = arith.mulf %399, %398 : vector<2x16x16xf32>
    %401 = arith.addf %395, %400 : vector<2x16x16xf32>
    %402 = vector.extract_strided_slice %375 {offsets = [0, 0, 2, 0], sizes = [2, 2, 16, 16], strides = [1, 1, 1, 1]} : vector<2x2x22x16xf32> to vector<2x2x16x16xf32>
    %c18 = arith.constant 18 : index
    %403 = memref.load %arg1[%c18] : memref<100xf32, #tpu.memory_space<smem>>
    %404 = vector.extract_strided_slice %402 {offsets = [0, 0, 0, 0], sizes = [2, 1, 16, 16], strides = [1, 1, 1, 1]} : vector<2x2x16x16xf32> to vector<2x1x16x16xf32>
    %405 = vector.shape_cast %404 : vector<2x1x16x16xf32> to vector<2x16x16xf32>
    %406 = vector.broadcast %403 : f32 to vector<2x16x16xf32>
    %407 = arith.mulf %406, %405 : vector<2x16x16xf32>
    %408 = arith.addf %401, %407 : vector<2x16x16xf32>
    %c67 = arith.constant 67 : index
    %409 = memref.load %arg1[%c67] : memref<100xf32, #tpu.memory_space<smem>>
    %410 = vector.extract_strided_slice %402 {offsets = [0, 1, 0, 0], sizes = [2, 1, 16, 16], strides = [1, 1, 1, 1]} : vector<2x2x16x16xf32> to vector<2x1x16x16xf32>
    %411 = vector.shape_cast %410 : vector<2x1x16x16xf32> to vector<2x16x16xf32>
    %412 = vector.broadcast %409 : f32 to vector<2x16x16xf32>
    %413 = arith.mulf %412, %411 : vector<2x16x16xf32>
    %414 = arith.addf %408, %413 : vector<2x16x16xf32>
    %415 = vector.extract_strided_slice %375 {offsets = [0, 0, 3, 0], sizes = [2, 2, 16, 16], strides = [1, 1, 1, 1]} : vector<2x2x22x16xf32> to vector<2x2x16x16xf32>
    %c25 = arith.constant 25 : index
    %416 = memref.load %arg1[%c25] : memref<100xf32, #tpu.memory_space<smem>>
    %417 = vector.extract_strided_slice %415 {offsets = [0, 0, 0, 0], sizes = [2, 1, 16, 16], strides = [1, 1, 1, 1]} : vector<2x2x16x16xf32> to vector<2x1x16x16xf32>
    %418 = vector.shape_cast %417 : vector<2x1x16x16xf32> to vector<2x16x16xf32>
    %419 = vector.broadcast %416 : f32 to vector<2x16x16xf32>
    %420 = arith.mulf %419, %418 : vector<2x16x16xf32>
    %421 = arith.addf %414, %420 : vector<2x16x16xf32>
    %c74 = arith.constant 74 : index
    %422 = memref.load %arg1[%c74] : memref<100xf32, #tpu.memory_space<smem>>
    %423 = vector.extract_strided_slice %415 {offsets = [0, 1, 0, 0], sizes = [2, 1, 16, 16], strides = [1, 1, 1, 1]} : vector<2x2x16x16xf32> to vector<2x1x16x16xf32>
    %424 = vector.shape_cast %423 : vector<2x1x16x16xf32> to vector<2x16x16xf32>
    %425 = vector.broadcast %422 : f32 to vector<2x16x16xf32>
    %426 = arith.mulf %425, %424 : vector<2x16x16xf32>
    %427 = arith.addf %421, %426 : vector<2x16x16xf32>
    %428 = vector.extract_strided_slice %375 {offsets = [0, 0, 4, 0], sizes = [2, 2, 16, 16], strides = [1, 1, 1, 1]} : vector<2x2x22x16xf32> to vector<2x2x16x16xf32>
    %c32 = arith.constant 32 : index
    %429 = memref.load %arg1[%c32] : memref<100xf32, #tpu.memory_space<smem>>
    %430 = vector.extract_strided_slice %428 {offsets = [0, 0, 0, 0], sizes = [2, 1, 16, 16], strides = [1, 1, 1, 1]} : vector<2x2x16x16xf32> to vector<2x1x16x16xf32>
    %431 = vector.shape_cast %430 : vector<2x1x16x16xf32> to vector<2x16x16xf32>
    %432 = vector.broadcast %429 : f32 to vector<2x16x16xf32>
    %433 = arith.mulf %432, %431 : vector<2x16x16xf32>
    %434 = arith.addf %427, %433 : vector<2x16x16xf32>
    %c81 = arith.constant 81 : index
    %435 = memref.load %arg1[%c81] : memref<100xf32, #tpu.memory_space<smem>>
    %436 = vector.extract_strided_slice %428 {offsets = [0, 1, 0, 0], sizes = [2, 1, 16, 16], strides = [1, 1, 1, 1]} : vector<2x2x16x16xf32> to vector<2x1x16x16xf32>
    %437 = vector.shape_cast %436 : vector<2x1x16x16xf32> to vector<2x16x16xf32>
    %438 = vector.broadcast %435 : f32 to vector<2x16x16xf32>
    %439 = arith.mulf %438, %437 : vector<2x16x16xf32>
    %440 = arith.addf %434, %439 : vector<2x16x16xf32>
    %441 = vector.extract_strided_slice %375 {offsets = [0, 0, 5, 0], sizes = [2, 2, 16, 16], strides = [1, 1, 1, 1]} : vector<2x2x22x16xf32> to vector<2x2x16x16xf32>
    %c39 = arith.constant 39 : index
    %442 = memref.load %arg1[%c39] : memref<100xf32, #tpu.memory_space<smem>>
    %443 = vector.extract_strided_slice %441 {offsets = [0, 0, 0, 0], sizes = [2, 1, 16, 16], strides = [1, 1, 1, 1]} : vector<2x2x16x16xf32> to vector<2x1x16x16xf32>
    %444 = vector.shape_cast %443 : vector<2x1x16x16xf32> to vector<2x16x16xf32>
    %445 = vector.broadcast %442 : f32 to vector<2x16x16xf32>
    %446 = arith.mulf %445, %444 : vector<2x16x16xf32>
    %447 = arith.addf %440, %446 : vector<2x16x16xf32>
    %c88 = arith.constant 88 : index
    %448 = memref.load %arg1[%c88] : memref<100xf32, #tpu.memory_space<smem>>
    %449 = vector.extract_strided_slice %441 {offsets = [0, 1, 0, 0], sizes = [2, 1, 16, 16], strides = [1, 1, 1, 1]} : vector<2x2x16x16xf32> to vector<2x1x16x16xf32>
    %450 = vector.shape_cast %449 : vector<2x1x16x16xf32> to vector<2x16x16xf32>
    %451 = vector.broadcast %448 : f32 to vector<2x16x16xf32>
    %452 = arith.mulf %451, %450 : vector<2x16x16xf32>
    %453 = arith.addf %447, %452 : vector<2x16x16xf32>
    %454 = vector.extract_strided_slice %375 {offsets = [0, 0, 6, 0], sizes = [2, 2, 16, 16], strides = [1, 1, 1, 1]} : vector<2x2x22x16xf32> to vector<2x2x16x16xf32>
    %c46 = arith.constant 46 : index
    %455 = memref.load %arg1[%c46] : memref<100xf32, #tpu.memory_space<smem>>
    %456 = vector.extract_strided_slice %454 {offsets = [0, 0, 0, 0], sizes = [2, 1, 16, 16], strides = [1, 1, 1, 1]} : vector<2x2x16x16xf32> to vector<2x1x16x16xf32>
    %457 = vector.shape_cast %456 : vector<2x1x16x16xf32> to vector<2x16x16xf32>
    %458 = vector.broadcast %455 : f32 to vector<2x16x16xf32>
    %459 = arith.mulf %458, %457 : vector<2x16x16xf32>
    %460 = arith.addf %453, %459 : vector<2x16x16xf32>
    %c95 = arith.constant 95 : index
    %461 = memref.load %arg1[%c95] : memref<100xf32, #tpu.memory_space<smem>>
    %462 = vector.extract_strided_slice %454 {offsets = [0, 1, 0, 0], sizes = [2, 1, 16, 16], strides = [1, 1, 1, 1]} : vector<2x2x16x16xf32> to vector<2x1x16x16xf32>
    %463 = vector.shape_cast %462 : vector<2x1x16x16xf32> to vector<2x16x16xf32>
    %464 = vector.broadcast %461 : f32 to vector<2x16x16xf32>
    %465 = arith.mulf %464, %463 : vector<2x16x16xf32>
    %466 = arith.addf %460, %465 : vector<2x16x16xf32>
    %467 = vector.extract_strided_slice %5 {offsets = [0, 0, 0, 5], sizes = [2, 2, 22, 16], strides = [1, 1, 1, 1]} : vector<2x2x22x22xf32> to vector<2x2x22x16xf32>
    %468 = vector.extract_strided_slice %467 {offsets = [0, 0, 0, 0], sizes = [2, 2, 16, 16], strides = [1, 1, 1, 1]} : vector<2x2x22x16xf32> to vector<2x2x16x16xf32>
    %c5 = arith.constant 5 : index
    %469 = memref.load %arg1[%c5] : memref<100xf32, #tpu.memory_space<smem>>
    %470 = vector.extract_strided_slice %468 {offsets = [0, 0, 0, 0], sizes = [2, 1, 16, 16], strides = [1, 1, 1, 1]} : vector<2x2x16x16xf32> to vector<2x1x16x16xf32>
    %471 = vector.shape_cast %470 : vector<2x1x16x16xf32> to vector<2x16x16xf32>
    %472 = vector.broadcast %469 : f32 to vector<2x16x16xf32>
    %473 = arith.mulf %472, %471 : vector<2x16x16xf32>
    %474 = arith.addf %466, %473 : vector<2x16x16xf32>
    %c54 = arith.constant 54 : index
    %475 = memref.load %arg1[%c54] : memref<100xf32, #tpu.memory_space<smem>>
    %476 = vector.extract_strided_slice %468 {offsets = [0, 1, 0, 0], sizes = [2, 1, 16, 16], strides = [1, 1, 1, 1]} : vector<2x2x16x16xf32> to vector<2x1x16x16xf32>
    %477 = vector.shape_cast %476 : vector<2x1x16x16xf32> to vector<2x16x16xf32>
    %478 = vector.broadcast %475 : f32 to vector<2x16x16xf32>
    %479 = arith.mulf %478, %477 : vector<2x16x16xf32>
    %480 = arith.addf %474, %479 : vector<2x16x16xf32>
    %481 = vector.extract_strided_slice %467 {offsets = [0, 0, 1, 0], sizes = [2, 2, 16, 16], strides = [1, 1, 1, 1]} : vector<2x2x22x16xf32> to vector<2x2x16x16xf32>
    %c12 = arith.constant 12 : index
    %482 = memref.load %arg1[%c12] : memref<100xf32, #tpu.memory_space<smem>>
    %483 = vector.extract_strided_slice %481 {offsets = [0, 0, 0, 0], sizes = [2, 1, 16, 16], strides = [1, 1, 1, 1]} : vector<2x2x16x16xf32> to vector<2x1x16x16xf32>
    %484 = vector.shape_cast %483 : vector<2x1x16x16xf32> to vector<2x16x16xf32>
    %485 = vector.broadcast %482 : f32 to vector<2x16x16xf32>
    %486 = arith.mulf %485, %484 : vector<2x16x16xf32>
    %487 = arith.addf %480, %486 : vector<2x16x16xf32>
    %c61 = arith.constant 61 : index
    %488 = memref.load %arg1[%c61] : memref<100xf32, #tpu.memory_space<smem>>
    %489 = vector.extract_strided_slice %481 {offsets = [0, 1, 0, 0], sizes = [2, 1, 16, 16], strides = [1, 1, 1, 1]} : vector<2x2x16x16xf32> to vector<2x1x16x16xf32>
    %490 = vector.shape_cast %489 : vector<2x1x16x16xf32> to vector<2x16x16xf32>
    %491 = vector.broadcast %488 : f32 to vector<2x16x16xf32>
    %492 = arith.mulf %491, %490 : vector<2x16x16xf32>
    %493 = arith.addf %487, %492 : vector<2x16x16xf32>
    %494 = vector.extract_strided_slice %467 {offsets = [0, 0, 2, 0], sizes = [2, 2, 16, 16], strides = [1, 1, 1, 1]} : vector<2x2x22x16xf32> to vector<2x2x16x16xf32>
    %c19 = arith.constant 19 : index
    %495 = memref.load %arg1[%c19] : memref<100xf32, #tpu.memory_space<smem>>
    %496 = vector.extract_strided_slice %494 {offsets = [0, 0, 0, 0], sizes = [2, 1, 16, 16], strides = [1, 1, 1, 1]} : vector<2x2x16x16xf32> to vector<2x1x16x16xf32>
    %497 = vector.shape_cast %496 : vector<2x1x16x16xf32> to vector<2x16x16xf32>
    %498 = vector.broadcast %495 : f32 to vector<2x16x16xf32>
    %499 = arith.mulf %498, %497 : vector<2x16x16xf32>
    %500 = arith.addf %493, %499 : vector<2x16x16xf32>
    %c68 = arith.constant 68 : index
    %501 = memref.load %arg1[%c68] : memref<100xf32, #tpu.memory_space<smem>>
    %502 = vector.extract_strided_slice %494 {offsets = [0, 1, 0, 0], sizes = [2, 1, 16, 16], strides = [1, 1, 1, 1]} : vector<2x2x16x16xf32> to vector<2x1x16x16xf32>
    %503 = vector.shape_cast %502 : vector<2x1x16x16xf32> to vector<2x16x16xf32>
    %504 = vector.broadcast %501 : f32 to vector<2x16x16xf32>
    %505 = arith.mulf %504, %503 : vector<2x16x16xf32>
    %506 = arith.addf %500, %505 : vector<2x16x16xf32>
    %507 = vector.extract_strided_slice %467 {offsets = [0, 0, 3, 0], sizes = [2, 2, 16, 16], strides = [1, 1, 1, 1]} : vector<2x2x22x16xf32> to vector<2x2x16x16xf32>
    %c26 = arith.constant 26 : index
    %508 = memref.load %arg1[%c26] : memref<100xf32, #tpu.memory_space<smem>>
    %509 = vector.extract_strided_slice %507 {offsets = [0, 0, 0, 0], sizes = [2, 1, 16, 16], strides = [1, 1, 1, 1]} : vector<2x2x16x16xf32> to vector<2x1x16x16xf32>
    %510 = vector.shape_cast %509 : vector<2x1x16x16xf32> to vector<2x16x16xf32>
    %511 = vector.broadcast %508 : f32 to vector<2x16x16xf32>
    %512 = arith.mulf %511, %510 : vector<2x16x16xf32>
    %513 = arith.addf %506, %512 : vector<2x16x16xf32>
    %c75 = arith.constant 75 : index
    %514 = memref.load %arg1[%c75] : memref<100xf32, #tpu.memory_space<smem>>
    %515 = vector.extract_strided_slice %507 {offsets = [0, 1, 0, 0], sizes = [2, 1, 16, 16], strides = [1, 1, 1, 1]} : vector<2x2x16x16xf32> to vector<2x1x16x16xf32>
    %516 = vector.shape_cast %515 : vector<2x1x16x16xf32> to vector<2x16x16xf32>
    %517 = vector.broadcast %514 : f32 to vector<2x16x16xf32>
    %518 = arith.mulf %517, %516 : vector<2x16x16xf32>
    %519 = arith.addf %513, %518 : vector<2x16x16xf32>
    %520 = vector.extract_strided_slice %467 {offsets = [0, 0, 4, 0], sizes = [2, 2, 16, 16], strides = [1, 1, 1, 1]} : vector<2x2x22x16xf32> to vector<2x2x16x16xf32>
    %c33 = arith.constant 33 : index
    %521 = memref.load %arg1[%c33] : memref<100xf32, #tpu.memory_space<smem>>
    %522 = vector.extract_strided_slice %520 {offsets = [0, 0, 0, 0], sizes = [2, 1, 16, 16], strides = [1, 1, 1, 1]} : vector<2x2x16x16xf32> to vector<2x1x16x16xf32>
    %523 = vector.shape_cast %522 : vector<2x1x16x16xf32> to vector<2x16x16xf32>
    %524 = vector.broadcast %521 : f32 to vector<2x16x16xf32>
    %525 = arith.mulf %524, %523 : vector<2x16x16xf32>
    %526 = arith.addf %519, %525 : vector<2x16x16xf32>
    %c82 = arith.constant 82 : index
    %527 = memref.load %arg1[%c82] : memref<100xf32, #tpu.memory_space<smem>>
    %528 = vector.extract_strided_slice %520 {offsets = [0, 1, 0, 0], sizes = [2, 1, 16, 16], strides = [1, 1, 1, 1]} : vector<2x2x16x16xf32> to vector<2x1x16x16xf32>
    %529 = vector.shape_cast %528 : vector<2x1x16x16xf32> to vector<2x16x16xf32>
    %530 = vector.broadcast %527 : f32 to vector<2x16x16xf32>
    %531 = arith.mulf %530, %529 : vector<2x16x16xf32>
    %532 = arith.addf %526, %531 : vector<2x16x16xf32>
    %533 = vector.extract_strided_slice %467 {offsets = [0, 0, 5, 0], sizes = [2, 2, 16, 16], strides = [1, 1, 1, 1]} : vector<2x2x22x16xf32> to vector<2x2x16x16xf32>
    %c40 = arith.constant 40 : index
    %534 = memref.load %arg1[%c40] : memref<100xf32, #tpu.memory_space<smem>>
    %535 = vector.extract_strided_slice %533 {offsets = [0, 0, 0, 0], sizes = [2, 1, 16, 16], strides = [1, 1, 1, 1]} : vector<2x2x16x16xf32> to vector<2x1x16x16xf32>
    %536 = vector.shape_cast %535 : vector<2x1x16x16xf32> to vector<2x16x16xf32>
    %537 = vector.broadcast %534 : f32 to vector<2x16x16xf32>
    %538 = arith.mulf %537, %536 : vector<2x16x16xf32>
    %539 = arith.addf %532, %538 : vector<2x16x16xf32>
    %c89 = arith.constant 89 : index
    %540 = memref.load %arg1[%c89] : memref<100xf32, #tpu.memory_space<smem>>
    %541 = vector.extract_strided_slice %533 {offsets = [0, 1, 0, 0], sizes = [2, 1, 16, 16], strides = [1, 1, 1, 1]} : vector<2x2x16x16xf32> to vector<2x1x16x16xf32>
    %542 = vector.shape_cast %541 : vector<2x1x16x16xf32> to vector<2x16x16xf32>
    %543 = vector.broadcast %540 : f32 to vector<2x16x16xf32>
    %544 = arith.mulf %543, %542 : vector<2x16x16xf32>
    %545 = arith.addf %539, %544 : vector<2x16x16xf32>
    %546 = vector.extract_strided_slice %467 {offsets = [0, 0, 6, 0], sizes = [2, 2, 16, 16], strides = [1, 1, 1, 1]} : vector<2x2x22x16xf32> to vector<2x2x16x16xf32>
    %c47 = arith.constant 47 : index
    %547 = memref.load %arg1[%c47] : memref<100xf32, #tpu.memory_space<smem>>
    %548 = vector.extract_strided_slice %546 {offsets = [0, 0, 0, 0], sizes = [2, 1, 16, 16], strides = [1, 1, 1, 1]} : vector<2x2x16x16xf32> to vector<2x1x16x16xf32>
    %549 = vector.shape_cast %548 : vector<2x1x16x16xf32> to vector<2x16x16xf32>
    %550 = vector.broadcast %547 : f32 to vector<2x16x16xf32>
    %551 = arith.mulf %550, %549 : vector<2x16x16xf32>
    %552 = arith.addf %545, %551 : vector<2x16x16xf32>
    %c96 = arith.constant 96 : index
    %553 = memref.load %arg1[%c96] : memref<100xf32, #tpu.memory_space<smem>>
    %554 = vector.extract_strided_slice %546 {offsets = [0, 1, 0, 0], sizes = [2, 1, 16, 16], strides = [1, 1, 1, 1]} : vector<2x2x16x16xf32> to vector<2x1x16x16xf32>
    %555 = vector.shape_cast %554 : vector<2x1x16x16xf32> to vector<2x16x16xf32>
    %556 = vector.broadcast %553 : f32 to vector<2x16x16xf32>
    %557 = arith.mulf %556, %555 : vector<2x16x16xf32>
    %558 = arith.addf %552, %557 : vector<2x16x16xf32>
    %559 = vector.extract_strided_slice %5 {offsets = [0, 0, 0, 6], sizes = [2, 2, 22, 16], strides = [1, 1, 1, 1]} : vector<2x2x22x22xf32> to vector<2x2x22x16xf32>
    %560 = vector.extract_strided_slice %559 {offsets = [0, 0, 0, 0], sizes = [2, 2, 16, 16], strides = [1, 1, 1, 1]} : vector<2x2x22x16xf32> to vector<2x2x16x16xf32>
    %c6 = arith.constant 6 : index
    %561 = memref.load %arg1[%c6] : memref<100xf32, #tpu.memory_space<smem>>
    %562 = vector.extract_strided_slice %560 {offsets = [0, 0, 0, 0], sizes = [2, 1, 16, 16], strides = [1, 1, 1, 1]} : vector<2x2x16x16xf32> to vector<2x1x16x16xf32>
    %563 = vector.shape_cast %562 : vector<2x1x16x16xf32> to vector<2x16x16xf32>
    %564 = vector.broadcast %561 : f32 to vector<2x16x16xf32>
    %565 = arith.mulf %564, %563 : vector<2x16x16xf32>
    %566 = arith.addf %558, %565 : vector<2x16x16xf32>
    %c55 = arith.constant 55 : index
    %567 = memref.load %arg1[%c55] : memref<100xf32, #tpu.memory_space<smem>>
    %568 = vector.extract_strided_slice %560 {offsets = [0, 1, 0, 0], sizes = [2, 1, 16, 16], strides = [1, 1, 1, 1]} : vector<2x2x16x16xf32> to vector<2x1x16x16xf32>
    %569 = vector.shape_cast %568 : vector<2x1x16x16xf32> to vector<2x16x16xf32>
    %570 = vector.broadcast %567 : f32 to vector<2x16x16xf32>
    %571 = arith.mulf %570, %569 : vector<2x16x16xf32>
    %572 = arith.addf %566, %571 : vector<2x16x16xf32>
    %573 = vector.extract_strided_slice %559 {offsets = [0, 0, 1, 0], sizes = [2, 2, 16, 16], strides = [1, 1, 1, 1]} : vector<2x2x22x16xf32> to vector<2x2x16x16xf32>
    %c13 = arith.constant 13 : index
    %574 = memref.load %arg1[%c13] : memref<100xf32, #tpu.memory_space<smem>>
    %575 = vector.extract_strided_slice %573 {offsets = [0, 0, 0, 0], sizes = [2, 1, 16, 16], strides = [1, 1, 1, 1]} : vector<2x2x16x16xf32> to vector<2x1x16x16xf32>
    %576 = vector.shape_cast %575 : vector<2x1x16x16xf32> to vector<2x16x16xf32>
    %577 = vector.broadcast %574 : f32 to vector<2x16x16xf32>
    %578 = arith.mulf %577, %576 : vector<2x16x16xf32>
    %579 = arith.addf %572, %578 : vector<2x16x16xf32>
    %c62 = arith.constant 62 : index
    %580 = memref.load %arg1[%c62] : memref<100xf32, #tpu.memory_space<smem>>
    %581 = vector.extract_strided_slice %573 {offsets = [0, 1, 0, 0], sizes = [2, 1, 16, 16], strides = [1, 1, 1, 1]} : vector<2x2x16x16xf32> to vector<2x1x16x16xf32>
    %582 = vector.shape_cast %581 : vector<2x1x16x16xf32> to vector<2x16x16xf32>
    %583 = vector.broadcast %580 : f32 to vector<2x16x16xf32>
    %584 = arith.mulf %583, %582 : vector<2x16x16xf32>
    %585 = arith.addf %579, %584 : vector<2x16x16xf32>
    %586 = vector.extract_strided_slice %559 {offsets = [0, 0, 2, 0], sizes = [2, 2, 16, 16], strides = [1, 1, 1, 1]} : vector<2x2x22x16xf32> to vector<2x2x16x16xf32>
    %c20 = arith.constant 20 : index
    %587 = memref.load %arg1[%c20] : memref<100xf32, #tpu.memory_space<smem>>
    %588 = vector.extract_strided_slice %586 {offsets = [0, 0, 0, 0], sizes = [2, 1, 16, 16], strides = [1, 1, 1, 1]} : vector<2x2x16x16xf32> to vector<2x1x16x16xf32>
    %589 = vector.shape_cast %588 : vector<2x1x16x16xf32> to vector<2x16x16xf32>
    %590 = vector.broadcast %587 : f32 to vector<2x16x16xf32>
    %591 = arith.mulf %590, %589 : vector<2x16x16xf32>
    %592 = arith.addf %585, %591 : vector<2x16x16xf32>
    %c69 = arith.constant 69 : index
    %593 = memref.load %arg1[%c69] : memref<100xf32, #tpu.memory_space<smem>>
    %594 = vector.extract_strided_slice %586 {offsets = [0, 1, 0, 0], sizes = [2, 1, 16, 16], strides = [1, 1, 1, 1]} : vector<2x2x16x16xf32> to vector<2x1x16x16xf32>
    %595 = vector.shape_cast %594 : vector<2x1x16x16xf32> to vector<2x16x16xf32>
    %596 = vector.broadcast %593 : f32 to vector<2x16x16xf32>
    %597 = arith.mulf %596, %595 : vector<2x16x16xf32>
    %598 = arith.addf %592, %597 : vector<2x16x16xf32>
    %599 = vector.extract_strided_slice %559 {offsets = [0, 0, 3, 0], sizes = [2, 2, 16, 16], strides = [1, 1, 1, 1]} : vector<2x2x22x16xf32> to vector<2x2x16x16xf32>
    %c27 = arith.constant 27 : index
    %600 = memref.load %arg1[%c27] : memref<100xf32, #tpu.memory_space<smem>>
    %601 = vector.extract_strided_slice %599 {offsets = [0, 0, 0, 0], sizes = [2, 1, 16, 16], strides = [1, 1, 1, 1]} : vector<2x2x16x16xf32> to vector<2x1x16x16xf32>
    %602 = vector.shape_cast %601 : vector<2x1x16x16xf32> to vector<2x16x16xf32>
    %603 = vector.broadcast %600 : f32 to vector<2x16x16xf32>
    %604 = arith.mulf %603, %602 : vector<2x16x16xf32>
    %605 = arith.addf %598, %604 : vector<2x16x16xf32>
    %c76 = arith.constant 76 : index
    %606 = memref.load %arg1[%c76] : memref<100xf32, #tpu.memory_space<smem>>
    %607 = vector.extract_strided_slice %599 {offsets = [0, 1, 0, 0], sizes = [2, 1, 16, 16], strides = [1, 1, 1, 1]} : vector<2x2x16x16xf32> to vector<2x1x16x16xf32>
    %608 = vector.shape_cast %607 : vector<2x1x16x16xf32> to vector<2x16x16xf32>
    %609 = vector.broadcast %606 : f32 to vector<2x16x16xf32>
    %610 = arith.mulf %609, %608 : vector<2x16x16xf32>
    %611 = arith.addf %605, %610 : vector<2x16x16xf32>
    %612 = vector.extract_strided_slice %559 {offsets = [0, 0, 4, 0], sizes = [2, 2, 16, 16], strides = [1, 1, 1, 1]} : vector<2x2x22x16xf32> to vector<2x2x16x16xf32>
    %c34 = arith.constant 34 : index
    %613 = memref.load %arg1[%c34] : memref<100xf32, #tpu.memory_space<smem>>
    %614 = vector.extract_strided_slice %612 {offsets = [0, 0, 0, 0], sizes = [2, 1, 16, 16], strides = [1, 1, 1, 1]} : vector<2x2x16x16xf32> to vector<2x1x16x16xf32>
    %615 = vector.shape_cast %614 : vector<2x1x16x16xf32> to vector<2x16x16xf32>
    %616 = vector.broadcast %613 : f32 to vector<2x16x16xf32>
    %617 = arith.mulf %616, %615 : vector<2x16x16xf32>
    %618 = arith.addf %611, %617 : vector<2x16x16xf32>
    %c83 = arith.constant 83 : index
    %619 = memref.load %arg1[%c83] : memref<100xf32, #tpu.memory_space<smem>>
    %620 = vector.extract_strided_slice %612 {offsets = [0, 1, 0, 0], sizes = [2, 1, 16, 16], strides = [1, 1, 1, 1]} : vector<2x2x16x16xf32> to vector<2x1x16x16xf32>
    %621 = vector.shape_cast %620 : vector<2x1x16x16xf32> to vector<2x16x16xf32>
    %622 = vector.broadcast %619 : f32 to vector<2x16x16xf32>
    %623 = arith.mulf %622, %621 : vector<2x16x16xf32>
    %624 = arith.addf %618, %623 : vector<2x16x16xf32>
    %625 = vector.extract_strided_slice %559 {offsets = [0, 0, 5, 0], sizes = [2, 2, 16, 16], strides = [1, 1, 1, 1]} : vector<2x2x22x16xf32> to vector<2x2x16x16xf32>
    %c41 = arith.constant 41 : index
    %626 = memref.load %arg1[%c41] : memref<100xf32, #tpu.memory_space<smem>>
    %627 = vector.extract_strided_slice %625 {offsets = [0, 0, 0, 0], sizes = [2, 1, 16, 16], strides = [1, 1, 1, 1]} : vector<2x2x16x16xf32> to vector<2x1x16x16xf32>
    %628 = vector.shape_cast %627 : vector<2x1x16x16xf32> to vector<2x16x16xf32>
    %629 = vector.broadcast %626 : f32 to vector<2x16x16xf32>
    %630 = arith.mulf %629, %628 : vector<2x16x16xf32>
    %631 = arith.addf %624, %630 : vector<2x16x16xf32>
    %c90 = arith.constant 90 : index
    %632 = memref.load %arg1[%c90] : memref<100xf32, #tpu.memory_space<smem>>
    %633 = vector.extract_strided_slice %625 {offsets = [0, 1, 0, 0], sizes = [2, 1, 16, 16], strides = [1, 1, 1, 1]} : vector<2x2x16x16xf32> to vector<2x1x16x16xf32>
    %634 = vector.shape_cast %633 : vector<2x1x16x16xf32> to vector<2x16x16xf32>
    %635 = vector.broadcast %632 : f32 to vector<2x16x16xf32>
    %636 = arith.mulf %635, %634 : vector<2x16x16xf32>
    %637 = arith.addf %631, %636 : vector<2x16x16xf32>
    %638 = vector.extract_strided_slice %559 {offsets = [0, 0, 6, 0], sizes = [2, 2, 16, 16], strides = [1, 1, 1, 1]} : vector<2x2x22x16xf32> to vector<2x2x16x16xf32>
    %c48 = arith.constant 48 : index
    %639 = memref.load %arg1[%c48] : memref<100xf32, #tpu.memory_space<smem>>
    %640 = vector.extract_strided_slice %638 {offsets = [0, 0, 0, 0], sizes = [2, 1, 16, 16], strides = [1, 1, 1, 1]} : vector<2x2x16x16xf32> to vector<2x1x16x16xf32>
    %641 = vector.shape_cast %640 : vector<2x1x16x16xf32> to vector<2x16x16xf32>
    %642 = vector.broadcast %639 : f32 to vector<2x16x16xf32>
    %643 = arith.mulf %642, %641 : vector<2x16x16xf32>
    %644 = arith.addf %637, %643 : vector<2x16x16xf32>
    %c97 = arith.constant 97 : index
    %645 = memref.load %arg1[%c97] : memref<100xf32, #tpu.memory_space<smem>>
    %646 = vector.extract_strided_slice %638 {offsets = [0, 1, 0, 0], sizes = [2, 1, 16, 16], strides = [1, 1, 1, 1]} : vector<2x2x16x16xf32> to vector<2x1x16x16xf32>
    %647 = vector.shape_cast %646 : vector<2x1x16x16xf32> to vector<2x16x16xf32>
    %648 = vector.broadcast %645 : f32 to vector<2x16x16xf32>
    %649 = arith.mulf %648, %647 : vector<2x16x16xf32>
    %650 = arith.addf %644, %649 : vector<2x16x16xf32>
    %c98 = arith.constant 98 : index
    %651 = memref.load %arg1[%c98] : memref<100xf32, #tpu.memory_space<smem>>
    %652 = vector.broadcast %651 : f32 to vector<2x16x16xf32>
    %653 = arith.mulf %650, %652 : vector<2x16x16xf32>
    %c99 = arith.constant 99 : index
    %654 = memref.load %arg1[%c99] : memref<100xf32, #tpu.memory_space<smem>>
    %655 = vector.broadcast %654 : f32 to vector<2x16x16xf32>
    %656 = arith.addf %653, %655 : vector<2x16x16xf32>
    %c0_13 = arith.constant 0 : index
    %c0_14 = arith.constant 0 : index
    %c0_15 = arith.constant 0 : index
    %c0_16 = arith.constant 0 : index
    %657 = vector.load %arg3[%c0_13, %c0_14, %c0_15, %c0_16] : memref<2x1x16x16xf32, #tpu.memory_space<vmem>>, vector<2x1x16x16xf32>
    %658 = vector.shape_cast %657 : vector<2x1x16x16xf32> to vector<2x16x16xf32>
    %659 = vector.shape_cast %656 : vector<2x16x16xf32> to vector<2x1x16x16xf32>
    tpu.vector_store %arg3[%c0_13, %c0_14, %c0_15, %c0_16], %659 {strides = array<i32>} : memref<2x1x16x16xf32, #tpu.memory_space<vmem>>, vector<2x1x16x16xf32>,
    return
  }
  func.func @transform_0(%arg0: i32) -> i32 {
    %c0_i32 = arith.constant 0 : i32
    %c0_i32_0 = arith.constant 0 : i32
    return %c0_i32 : i32
  }
  func.func @transform_1(%arg0: i32) -> (i32, i32, i32, i32) {
    %c0_i32 = arith.constant 0 : i32
    %c0_i32_0 = arith.constant 0 : i32
    %c0_i32_1 = arith.constant 0 : i32
    %c0_i32_2 = arith.constant 0 : i32
    return %arg0, %c0_i32, %c0_i32_0, %c0_i32_1 : i32, i32, i32, i32
  }
  func.func @transform_2(%arg0: i32) -> (i32, i32, i32, i32) {
    %c0_i32 = arith.constant 0 : i32
    %c0_i32_0 = arith.constant 0 : i32
    %c0_i32_1 = arith.constant 0 : i32
    %c0_i32_2 = arith.constant 0 : i32
    return %arg0, %c0_i32, %c0_i32_0, %c0_i32_1 : i32, i32, i32, i32
  }
}

</mosaic_0001>

<llo_original>
// kernel: tpu_custom_call.1
$region0: #{tpu_custom_call.1}
  #allocation0 [shape = 'u32[]', space=smem, size = 0x4, offset = 0x4, fixed_abs, tag = 'smem constant byte address 0x4 - core index']
  #allocation1 [shape = 'u32[144,128]{1,0:T(1,128)}', space=vmem, size = 0x12000, scoped, tag = 'internal scratch']
  #allocation2 [shape = 'f32[2,2,22,22]{3,2,1,0:T(8,128)}', space=vmem, size = 0xc000, scoped, tag = 'scratch operand']
  %s0 = inlined_call_operand.hbm [shape: f32[100], index: 0, kind: input, shape index: {}]
  %s1 = inlined_call_operand.hbm [shape: f32[2,2,16,16], index: 1, kind: input, shape index: {}]
  %s2 = inlined_call_operand.hbm [shape: f32[2,1,16,16], index: 2, kind: output, shape index: {}]
  %s3 = sld [smem:[#allocation0]]
  $region30: #{tpu_custom_call.1} parent=0
    _
  %s5 = ssub.s32 1, %s3
  %s6 = scalar_select 0, %s5, %s3
  $region1: #{tpu_custom_call.1} parent=0
    #allocation3 [shape = 'u8[512]{0}', space=smem, size = 0x200, scoped, tag = 'input window, operand 0, single buffered']
    #allocation4 [shape = 's32[1]{0}', space=sflag, size = 0x4, scoped, tag = 'scoped memory for tpu_custom_call.1']
    #allocation5 [shape = 's32[1]{0}', space=sflag, size = 0x4, scoped, tag = 'scoped memory for tpu_custom_call.1']
    #allocation6 [shape = 's32[1]{0}', space=sflag, size = 0x4, scoped, tag = 'scoped memory for tpu_custom_call.1']
    #allocation7 [shape = 'u8[32768]{0}', space=vmem, size = 0x8000, scoped, tag = 'input window, operand 1, single buffered']
    #allocation8 [shape = 'u8[16384]{0}', space=vmem, size = 0x4000, scoped, tag = 'output window, operand 0, single buffered']
    %7 = vsyncpa [#allocation6], 0
    %8 = vsyncpa [#allocation4], 0
    %9 = vsyncpa [#allocation5], 0
    // Predicated region
    $region2: #{tpu_custom_call.1} parent=1 // pred_check
      _
    $region3: #{tpu_custom_call.1} parent=1 // pred_check_branch
      %11 = sbr.rel (0) target = $region5
    $region4: #{tpu_custom_call.1} parent=1 // pred_region
      %s13 = ssub.s32 16, 16
      %14 = vsyncadd [#allocation6], %s13
      %17 = dma.hbm_to_smem %s0, 16, [#allocation3], [#allocation6]
    $region5: #{tpu_custom_call.1} parent=1 // pred_fallthru
      _
    // Predicated region
    $region6: #{tpu_custom_call.1} parent=1 // pred_check
      _
    $region7: #{tpu_custom_call.1} parent=1 // pred_check_branch
      %19 = sbr.rel (0) target = $region9
    $region8: #{tpu_custom_call.1} parent=1 // pred_region
      %s21 = ssub.s32 1024, 1024
      %22 = vsyncadd [#allocation4], %s21
      %s23 = sshll.u32 [#allocation7], 4
      %s24 = int_to_ptr.vmem [resolvable:$true] %s23
      %29 = dma.hbm_to_vmem [thread:$0]  %s1, 1024, %s24, [#allocation4], 128, 128, 8
    $region9: #{tpu_custom_call.1} parent=1 // pred_fallthru
      _
    // Predicated region
    $region10: #{tpu_custom_call.1} parent=1 // pred_check
      _
    $region11: #{tpu_custom_call.1} parent=1 // pred_check_branch
      %31 = sbr.rel (0) target = $region13
    $region12: #{tpu_custom_call.1} parent=1 // pred_region
      %32 = dma.done [#allocation6], 16
    $region13: #{tpu_custom_call.1} parent=1 // pred_fallthru
      _
    // Predicated region
    $region14: #{tpu_custom_call.1} parent=1 // pred_check
      _
    $region15: #{tpu_custom_call.1} parent=1 // pred_check_branch
      %34 = sbr.rel (0) target = $region17
    $region16: #{tpu_custom_call.1} parent=1 // pred_region
      %35 = dma.done [#allocation4], 1024
    $region17: #{tpu_custom_call.1} parent=1 // pred_fallthru
      _
    %36 = sfence
    %p37 = scmp.eq.s32.totalorder 0, 0
    // Predicated region
    $region18: #{tpu_custom_call.1} parent=1 // pred_check
      %p38 = pneg %p37
    $region19: #{tpu_custom_call.1} parent=1 // pred_check_branch
      %40 = sbr.rel (%p38) target = $region21
    $region20: #{tpu_custom_call.1} parent=1 // pred_region
      %vm41 = vcmask 179200
      %42 = vst.msk [vmem:[#allocation2] sm:$0xff] %vm41, 0.0
      %43 = vst.msk [vmem:[#allocation2 + $0x8] sm:$0xff] %vm41, 0.0
      %vm44 = vcmask 177152
      %45 = vst.msk [vmem:[#allocation2 + $0x10] sm:$0x3f] %vm44, 0.0
      %46 = vst.msk [vmem:[#allocation2 + $0x18] sm:$0xff] %vm41, 0.0
      %47 = vst.msk [vmem:[#allocation2 + $0x20] sm:$0xff] %vm41, 0.0
      %48 = vst.msk [vmem:[#allocation2 + $0x28] sm:$0x3f] %vm44, 0.0
      %49 = vst.msk [vmem:[#allocation2 + $0x30] sm:$0xff] %vm41, 0.0
      %50 = vst.msk [vmem:[#allocation2 + $0x38] sm:$0xff] %vm41, 0.0
      %51 = vst.msk [vmem:[#allocation2 + $0x40] sm:$0x3f] %vm44, 0.0
      %52 = vst.msk [vmem:[#allocation2 + $0x48] sm:$0xff] %vm41, 0.0
      %53 = vst.msk [vmem:[#allocation2 + $0x50] sm:$0xff] %vm41, 0.0
      %54 = vst.msk [vmem:[#allocation2 + $0x58] sm:$0x3f] %vm44, 0.0
    $region21: #{tpu_custom_call.1} parent=1 // pred_fallthru
      _
    %v55 = vld [vmem:[#allocation7] sm:$0xff]
    %v56 = vld [vmem:[#allocation7 + $0x8] sm:$0xff]
    %v57 = vld [vmem:[#allocation7 + $0x10] sm:$0xff]
    %v58 = vld [vmem:[#allocation7 + $0x18] sm:$0xff]
    %v59 = vld [vmem:[#allocation7 + $0x20] sm:$0xff]
    %v60 = vld [vmem:[#allocation7 + $0x28] sm:$0xff]
    %v61 = vld [vmem:[#allocation7 + $0x30] sm:$0xff]
    %v62 = vld [vmem:[#allocation7 + $0x38] sm:$0xff]
    %71 = vrot.lane.b32.xlu0 %v55, 3
    %v72 = vpop.permute.xlu0 %71
    %73 = vrot.lane.b32.xlu0 %v56, 3
    %v74 = vpop.permute.xlu0 %73
    %75 = vrot.lane.b32.xlu0 %v57, 3
    %v76 = vpop.permute.xlu0 %75
    %77 = vrot.lane.b32.xlu0 %v58, 3
    %v78 = vpop.permute.xlu0 %77
    %79 = vrot.lane.b32.xlu0 %v59, 3
    %v80 = vpop.permute.xlu0 %79
    %81 = vrot.lane.b32.xlu0 %v60, 3
    %v82 = vpop.permute.xlu0 %81
    %83 = vrot.lane.b32.xlu0 %v61, 3
    %v84 = vpop.permute.xlu0 %83
    %85 = vrot.lane.b32.xlu0 %v62, 3
    %v86 = vpop.permute.xlu0 %85
    %vm95 = vcmask 154648
    %96 = vst.msk [vmem:[#allocation2 + $0x3] sm:$0xff] %vm95, %v72
    %97 = vst.msk [vmem:[#allocation2 + $0xb] sm:$0xff] %vm95, %v74
    %98 = vst.msk [vmem:[#allocation2 + $0x1b] sm:$0xff] %vm95, %v76
    %99 = vst.msk [vmem:[#allocation2 + $0x23] sm:$0xff] %vm95, %v78
    %100 = vst.msk [vmem:[#allocation2 + $0x33] sm:$0xff] %vm95, %v80
    %101 = vst.msk [vmem:[#allocation2 + $0x3b] sm:$0xff] %vm95, %v82
    %102 = vst.msk [vmem:[#allocation2 + $0x4b] sm:$0xff] %vm95, %v84
    %103 = vst.msk [vmem:[#allocation2 + $0x53] sm:$0xff] %vm95, %v86
    %v104 = vld [vmem:[#allocation2] sm:$0xff]
    %v105 = vld [vmem:[#allocation2 + $0x8] sm:$0xff]
    %v106 = vld [vmem:[#allocation2 + $0x10] sm:$0x3f]
    %v107 = vld [vmem:[#allocation2 + $0x18] sm:$0xff]
    %v108 = vld [vmem:[#allocation2 + $0x20] sm:$0xff]
    %v109 = vld [vmem:[#allocation2 + $0x28] sm:$0x3f]
    %v110 = vld [vmem:[#allocation2 + $0x30] sm:$0xff]
    %v111 = vld [vmem:[#allocation2 + $0x38] sm:$0xff]
    %v112 = vld [vmem:[#allocation2 + $0x40] sm:$0x3f]
    %v113 = vld [vmem:[#allocation2 + $0x48] sm:$0xff]
    %v114 = vld [vmem:[#allocation2 + $0x50] sm:$0xff]
    %v115 = vld [vmem:[#allocation2 + $0x58] sm:$0x3f]
    %s116 = sld [smem:[#allocation3]]
    %v117 = vstv %s116
    %v118 = vmul.f32 %v117, %v104
    %v119 = vmul.f32 %v117, %v105
    %v120 = vmul.f32 %v117, %v110
    %v121 = vmul.f32 %v117, %v111
    %v122 = vadd.f32 %v118, 0.0
    %v123 = vadd.f32 %v119, 0.0
    %v124 = vadd.f32 %v120, 0.0
    %v125 = vadd.f32 %v121, 0.0
    %s126 = sld [smem:[#allocation3 + $0x31]]
    %v127 = vstv %s126
    %v128 = vmul.f32 %v127, %v107
    %v129 = vmul.f32 %v127, %v108
    %v130 = vmul.f32 %v127, %v113
    %v131 = vmul.f32 %v127, %v114
    %v132 = vadd.f32 %v122, %v128
    %v133 = vadd.f32 %v123, %v129
    %v134 = vadd.f32 %v124, %v130
    %v135 = vadd.f32 %v125, %v131
    %s136 = sld [smem:[#allocation3 + $0x7]]
    %v137 = vstv %s136
    %v138 = vmul.f32 %v137, %v104
    %v139 = vmul.f32 %v137, %v105
    %v140 = vmul.f32 %v137, %v106
    %v141 = vmul.f32 %v137, %v110
    %v142 = vmul.f32 %v137, %v111
    %v143 = vmul.f32 %v137, %v112
    %vm150 = vcmask 1046528
    %v151 = vrot.slane %v138, 1
    %v152 = vrot.slane %v139, 1
    %v153 = vsel %vm150, %v151, %v152
    %v154 = vrot.slane %v140, 1
    %v155 = vsel %vm150, %v152, %v154
    %v156 = vrot.slane %v141, 1
    %v157 = vrot.slane %v142, 1
    %v158 = vsel %vm150, %v156, %v157
    %v159 = vrot.slane %v143, 1
    %v160 = vsel %vm150, %v157, %v159
    %v165 = vadd.f32 %v132, %v153
    %v166 = vadd.f32 %v133, %v155
    %v167 = vadd.f32 %v134, %v158
    %v168 = vadd.f32 %v135, %v160
    %s169 = sld [smem:[#allocation3 + $0x38]]
    %v170 = vstv %s169
    %v171 = vmul.f32 %v170, %v107
    %v172 = vmul.f32 %v170, %v108
    %v173 = vmul.f32 %v170, %v109
    %v174 = vmul.f32 %v170, %v113
    %v175 = vmul.f32 %v170, %v114
    %v176 = vmul.f32 %v170, %v115
    %v183 = vrot.slane %v171, 1
    %v184 = vrot.slane %v172, 1
    %v185 = vsel %vm150, %v183, %v184
    %v186 = vrot.slane %v173, 1
    %v187 = vsel %vm150, %v184, %v186
    %v188 = vrot.slane %v174, 1
    %v189 = vrot.slane %v175, 1
    %v190 = vsel %vm150, %v188, %v189
    %v191 = vrot.slane %v176, 1
    %v192 = vsel %vm150, %v189, %v191
    %v197 = vadd.f32 %v165, %v185
    %v198 = vadd.f32 %v166, %v187
    %v199 = vadd.f32 %v167, %v190
    %v200 = vadd.f32 %v168, %v192
    %s201 = sld [smem:[#allocation3 + $0xe]]
    %v202 = vstv %s201
    %v203 = vmul.f32 %v202, %v104
    %v204 = vmul.f32 %v202, %v105
    %v205 = vmul.f32 %v202, %v106
    %v206 = vmul.f32 %v202, %v110
    %v207 = vmul.f32 %v202, %v111
    %v208 = vmul.f32 %v202, %v112
    %vm215 = vcmask 1045504
    %v216 = vrot.slane %v203, 2
    %v217 = vrot.slane %v204, 2
    %v218 = vsel %vm215, %v216, %v217
    %v219 = vrot.slane %v205, 2
    %v220 = vsel %vm215, %v217, %v219
    %v221 = vrot.slane %v206, 2
    %v222 = vrot.slane %v207, 2
    %v223 = vsel %vm215, %v221, %v222
    %v224 = vrot.slane %v208, 2
    %v225 = vsel %vm215, %v222, %v224
    %v230 = vadd.f32 %v197, %v218
    %v231 = vadd.f32 %v198, %v220
    %v232 = vadd.f32 %v199, %v223
    %v233 = vadd.f32 %v200, %v225
    %s234 = sld [smem:[#allocation3 + $0x3f]]
    %v235 = vstv %s234
    %v236 = vmul.f32 %v235, %v107
    %v237 = vmul.f32 %v235, %v108
    %v238 = vmul.f32 %v235, %v109
    %v239 = vmul.f32 %v235, %v113
    %v240 = vmul.f32 %v235, %v114
    %v241 = vmul.f32 %v235, %v115
    %v248 = vrot.slane %v236, 2
    %v249 = vrot.slane %v237, 2
    %v250 = vsel %vm215, %v248, %v249
    %v251 = vrot.slane %v238, 2
    %v252 = vsel %vm215, %v249, %v251
    %v253 = vrot.slane %v239, 2
    %v254 = vrot.slane %v240, 2
    %v255 = vsel %vm215, %v253, %v254
    %v256 = vrot.slane %v241, 2
    %v257 = vsel %vm215, %v254, %v256
    %v262 = vadd.f32 %v230, %v250
    %v263 = vadd.f32 %v231, %v252
    %v264 = vadd.f32 %v232, %v255
    %v265 = vadd.f32 %v233, %v257
    %s266 = sld [smem:[#allocation3 + $0x15]]
    %v267 = vstv %s266
    %v268 = vmul.f32 %v267, %v104
    %v269 = vmul.f32 %v267, %v105
    %v270 = vmul.f32 %v267, %v106
    %v271 = vmul.f32 %v267, %v110
    %v272 = vmul.f32 %v267, %v111
    %v273 = vmul.f32 %v267, %v112
    %vm280 = vcmask 1044480
    %v281 = vrot.slane %v268, 3
    %v282 = vrot.slane %v269, 3
    %v283 = vsel %vm280, %v281, %v282
    %v284 = vrot.slane %v270, 3
    %v285 = vsel %vm280, %v282, %v284
    %v286 = vrot.slane %v271, 3
    %v287 = vrot.slane %v272, 3
    %v288 = vsel %vm280, %v286, %v287
    %v289 = vrot.slane %v273, 3
    %v290 = vsel %vm280, %v287, %v289
    %v295 = vadd.f32 %v262, %v283
    %v296 = vadd.f32 %v263, %v285
    %v297 = vadd.f32 %v264, %v288
    %v298 = vadd.f32 %v265, %v290
    %s299 = sld [smem:[#allocation3 + $0x46]]
    %v300 = vstv %s299
    %v301 = vmul.f32 %v300, %v107
    %v302 = vmul.f32 %v300, %v108
    %v303 = vmul.f32 %v300, %v109
    %v304 = vmul.f32 %v300, %v113
    %v305 = vmul.f32 %v300, %v114
    %v306 = vmul.f32 %v300, %v115
    %v313 = vrot.slane %v301, 3
    %v314 = vrot.slane %v302, 3
    %v315 = vsel %vm280, %v313, %v314
    %v316 = vrot.slane %v303, 3
    %v317 = vsel %vm280, %v314, %v316
    %v318 = vrot.slane %v304, 3
    %v319 = vrot.slane %v305, 3
    %v320 = vsel %vm280, %v318, %v319
    %v321 = vrot.slane %v306, 3
    %v322 = vsel %vm280, %v319, %v321
    %v327 = vadd.f32 %v295, %v315
    %v328 = vadd.f32 %v296, %v317
    %v329 = vadd.f32 %v297, %v320
    %v330 = vadd.f32 %v298, %v322
    %s331 = sld [smem:[#allocation3 + $0x1c]]
    %v332 = vstv %s331
    %v333 = vmul.f32 %v332, %v104
    %v334 = vmul.f32 %v332, %v105
    %v335 = vmul.f32 %v332, %v106
    %v336 = vmul.f32 %v332, %v110
    %v337 = vmul.f32 %v332, %v111
    %v338 = vmul.f32 %v332, %v112
    %vm345 = vcmask 1043456
    %v346 = vrot.slane %v333, 4
    %v347 = vrot.slane %v334, 4
    %v348 = vsel %vm345, %v346, %v347
    %v349 = vrot.slane %v335, 4
    %v350 = vsel %vm345, %v347, %v349
    %v351 = vrot.slane %v336, 4
    %v352 = vrot.slane %v337, 4
    %v353 = vsel %vm345, %v351, %v352
    %v354 = vrot.slane %v338, 4
    %v355 = vsel %vm345, %v352, %v354
    %v360 = vadd.f32 %v327, %v348
    %v361 = vadd.f32 %v328, %v350
    %v362 = vadd.f32 %v329, %v353
    %v363 = vadd.f32 %v330, %v355
    %s364 = sld [smem:[#allocation3 + $0x4d]]
    %v365 = vstv %s364
    %v366 = vmul.f32 %v365, %v107
    %v367 = vmul.f32 %v365, %v108
    %v368 = vmul.f32 %v365, %v109
    %v369 = vmul.f32 %v365, %v113
    %v370 = vmul.f32 %v365, %v114
    %v371 = vmul.f32 %v365, %v115
    %v378 = vrot.slane %v366, 4
    %v379 = vrot.slane %v367, 4
    %v380 = vsel %vm345, %v378, %v379
    %v381 = vrot.slane %v368, 4
    %v382 = vsel %vm345, %v379, %v381
    %v383 = vrot.slane %v369, 4
    %v384 = vrot.slane %v370, 4
    %v385 = vsel %vm345, %v383, %v384
    %v386 = vrot.slane %v371, 4
    %v387 = vsel %vm345, %v384, %v386
    %v392 = vadd.f32 %v360, %v380
    %v393 = vadd.f32 %v361, %v382
    %v394 = vadd.f32 %v362, %v385
    %v395 = vadd.f32 %v363, %v387
    %s396 = sld [smem:[#allocation3 + $0x23]]
    %v397 = vstv %s396
    %v398 = vmul.f32 %v397, %v104
    %v399 = vmul.f32 %v397, %v105
    %v400 = vmul.f32 %v397, %v106
    %v401 = vmul.f32 %v397, %v110
    %v402 = vmul.f32 %v397, %v111
    %v403 = vmul.f32 %v397, %v112
    %vm410 = vcmask 1042432
    %v411 = vrot.slane %v398, 5
    %v412 = vrot.slane %v399, 5
    %v413 = vsel %vm410, %v411, %v412
    %v414 = vrot.slane %v400, 5
    %v415 = vsel %vm410, %v412, %v414
    %v416 = vrot.slane %v401, 5
    %v417 = vrot.slane %v402, 5
    %v418 = vsel %vm410, %v416, %v417
    %v419 = vrot.slane %v403, 5
    %v420 = vsel %vm410, %v417, %v419
    %v425 = vadd.f32 %v392, %v413
    %v426 = vadd.f32 %v393, %v415
    %v427 = vadd.f32 %v394, %v418
    %v428 = vadd.f32 %v395, %v420
    %s429 = sld [smem:[#allocation3 + $0x54]]
    %v430 = vstv %s429
    %v431 = vmul.f32 %v430, %v107
    %v432 = vmul.f32 %v430, %v108
    %v433 = vmul.f32 %v430, %v109
    %v434 = vmul.f32 %v430, %v113
    %v435 = vmul.f32 %v430, %v114
    %v436 = vmul.f32 %v430, %v115
    %v443 = vrot.slane %v431, 5
    %v444 = vrot.slane %v432, 5
    %v445 = vsel %vm410, %v443, %v444
    %v446 = vrot.slane %v433, 5
    %v447 = vsel %vm410, %v444, %v446
    %v448 = vrot.slane %v434, 5
    %v449 = vrot.slane %v435, 5
    %v450 = vsel %vm410, %v448, %v449
    %v451 = vrot.slane %v436, 5
    %v452 = vsel %vm410, %v449, %v451
    %v457 = vadd.f32 %v425, %v445
    %v458 = vadd.f32 %v426, %v447
    %v459 = vadd.f32 %v427, %v450
    %v460 = vadd.f32 %v428, %v452
    %s461 = sld [smem:[#allocation3 + $0x2a]]
    %v462 = vstv %s461
    %v463 = vmul.f32 %v462, %v104
    %v464 = vmul.f32 %v462, %v105
    %v465 = vmul.f32 %v462, %v106
    %v466 = vmul.f32 %v462, %v110
    %v467 = vmul.f32 %v462, %v111
    %v468 = vmul.f32 %v462, %v112
    %vm475 = vcmask 1041408
    %v476 = vrot.slane %v463, 6
    %v477 = vrot.slane %v464, 6
    %v478 = vsel %vm475, %v476, %v477
    %v479 = vrot.slane %v465, 6
    %v480 = vsel %vm475, %v477, %v479
    %v481 = vrot.slane %v466, 6
    %v482 = vrot.slane %v467, 6
    %v483 = vsel %vm475, %v481, %v482
    %v484 = vrot.slane %v468, 6
    %v485 = vsel %vm475, %v482, %v484
    %v490 = vadd.f32 %v457, %v478
    %v491 = vadd.f32 %v458, %v480
    %v492 = vadd.f32 %v459, %v483
    %v493 = vadd.f32 %v460, %v485
    %s494 = sld [smem:[#allocation3 + $0x5b]]
    %v495 = vstv %s494
    %v496 = vmul.f32 %v495, %v107
    %v497 = vmul.f32 %v495, %v108
    %v498 = vmul.f32 %v495, %v109
    %v499 = vmul.f32 %v495, %v113
    %v500 = vmul.f32 %v495, %v114
    %v501 = vmul.f32 %v495, %v115
    %v508 = vrot.slane %v496, 6
    %v509 = vrot.slane %v497, 6
    %v510 = vsel %vm475, %v508, %v509
    %v511 = vrot.slane %v498, 6
    %v512 = vsel %vm475, %v509, %v511
    %v513 = vrot.slane %v499, 6
    %v514 = vrot.slane %v500, 6
    %v515 = vsel %vm475, %v513, %v514
    %v516 = vrot.slane %v501, 6
    %v517 = vsel %vm475, %v514, %v516
    %v522 = vadd.f32 %v490, %v510
    %v523 = vadd.f32 %v491, %v512
    %v524 = vadd.f32 %v492, %v515
    %v525 = vadd.f32 %v493, %v517
    %s526 = sld [smem:[#allocation3 + $0x1]]
    %v527 = vstv %s526
    %v528 = vmul.f32 %v527, %v104
    %v529 = vmul.f32 %v527, %v105
    %v530 = vmul.f32 %v527, %v110
    %v531 = vmul.f32 %v527, %v111
    %536 = vrot.lane.b32.xlu0 %v528, 127
    %v537 = vpop.permute.xlu0 %536
    %538 = vrot.lane.b32.xlu0 %v529, 127
    %v539 = vpop.permute.xlu0 %538
    %540 = vrot.lane.b32.xlu0 %v530, 127
    %v541 = vpop.permute.xlu0 %540
    %542 = vrot.lane.b32.xlu0 %v531, 127
    %v543 = vpop.permute.xlu0 %542
    %v548 = vadd.f32 %v522, %v537
    %v549 = vadd.f32 %v523, %v539
    %v550 = vadd.f32 %v524, %v541
    %v551 = vadd.f32 %v525, %v543
    %s552 = sld [smem:[#allocation3 + $0x32]]
    %v553 = vstv %s552
    %v554 = vmul.f32 %v553, %v107
    %v555 = vmul.f32 %v553, %v108
    %v556 = vmul.f32 %v553, %v113
    %v557 = vmul.f32 %v553, %v114
    %562 = vrot.lane.b32.xlu0 %v554, 127
    %v563 = vpop.permute.xlu0 %562
    %564 = vrot.lane.b32.xlu0 %v555, 127
    %v565 = vpop.permute.xlu0 %564
    %566 = vrot.lane.b32.xlu0 %v556, 127
    %v567 = vpop.permute.xlu0 %566
    %568 = vrot.lane.b32.xlu0 %v557, 127
    %v569 = vpop.permute.xlu0 %568
    %v574 = vadd.f32 %v548, %v563
    %v575 = vadd.f32 %v549, %v565
    %v576 = vadd.f32 %v550, %v567
    %v577 = vadd.f32 %v551, %v569
    %s578 = sld [smem:[#allocation3 + $0x8]]
    %v579 = vstv %s578
    %v580 = vmul.f32 %v579, %v104
    %v581 = vmul.f32 %v579, %v105
    %v582 = vmul.f32 %v579, %v106
    %v583 = vmul.f32 %v579, %v110
    %v584 = vmul.f32 %v579, %v111
    %v585 = vmul.f32 %v579, %v112
    %v592 = vrot.slane %v580, 1
    %v593 = vrot.slane %v581, 1
    %v594 = vsel %vm150, %v592, %v593
    %v595 = vrot.slane %v582, 1
    %v596 = vsel %vm150, %v593, %v595
    %v597 = vrot.slane %v583, 1
    %v598 = vrot.slane %v584, 1
    %v599 = vsel %vm150, %v597, %v598
    %v600 = vrot.slane %v585, 1
    %v601 = vsel %vm150, %v598, %v600
    %602 = vrot.lane.b32.xlu0 %v594, 127
    %v603 = vpop.permute.xlu0 %602
    %604 = vrot.lane.b32.xlu0 %v596, 127
    %v605 = vpop.permute.xlu0 %604
    %606 = vrot.lane.b32.xlu0 %v599, 127
    %v607 = vpop.permute.xlu0 %606
    %608 = vrot.lane.b32.xlu0 %v601, 127
    %v609 = vpop.permute.xlu0 %608
    %v614 = vadd.f32 %v574, %v603
    %v615 = vadd.f32 %v575, %v605
    %v616 = vadd.f32 %v576, %v607
    %v617 = vadd.f32 %v577, %v609
    %s618 = sld [smem:[#allocation3 + $0x39]]
    %v619 = vstv %s618
    %v620 = vmul.f32 %v619, %v107
    %v621 = vmul.f32 %v619, %v108
    %v622 = vmul.f32 %v619, %v109
    %v623 = vmul.f32 %v619, %v113
    %v624 = vmul.f32 %v619, %v114
    %v625 = vmul.f32 %v619, %v115
    %v632 = vrot.slane %v620, 1
    %v633 = vrot.slane %v621, 1
    %v634 = vsel %vm150, %v632, %v633
    %v635 = vrot.slane %v622, 1
    %v636 = vsel %vm150, %v633, %v635
    %v637 = vrot.slane %v623, 1
    %v638 = vrot.slane %v624, 1
    %v639 = vsel %vm150, %v637, %v638
    %v640 = vrot.slane %v625, 1
    %v641 = vsel %vm150, %v638, %v640
    %642 = vrot.lane.b32.xlu0 %v634, 127
    %v643 = vpop.permute.xlu0 %642
    %644 = vrot.lane.b32.xlu0 %v636, 127
    %v645 = vpop.permute.xlu0 %644
    %646 = vrot.lane.b32.xlu0 %v639, 127
    %v647 = vpop.permute.xlu0 %646
    %648 = vrot.lane.b32.xlu0 %v641, 127
    %v649 = vpop.permute.xlu0 %648
    %v654 = vadd.f32 %v614, %v643
    %v655 = vadd.f32 %v615, %v645
    %v656 = vadd.f32 %v616, %v647
    %v657 = vadd.f32 %v617, %v649
    %s658 = sld [smem:[#allocation3 + $0xf]]
    %v659 = vstv %s658
    %v660 = vmul.f32 %v659, %v104
    %v661 = vmul.f32 %v659, %v105
    %v662 = vmul.f32 %v659, %v106
    %v663 = vmul.f32 %v659, %v110
    %v664 = vmul.f32 %v659, %v111
    %v665 = vmul.f32 %v659, %v112
    %v672 = vrot.slane %v660, 2
    %v673 = vrot.slane %v661, 2
    %v674 = vsel %vm215, %v672, %v673
    %v675 = vrot.slane %v662, 2
    %v676 = vsel %vm215, %v673, %v675
    %v677 = vrot.slane %v663, 2
    %v678 = vrot.slane %v664, 2
    %v679 = vsel %vm215, %v677, %v678
    %v680 = vrot.slane %v665, 2
    %v681 = vsel %vm215, %v678, %v680
    %682 = vrot.lane.b32.xlu0 %v674, 127
    %v683 = vpop.permute.xlu0 %682
    %684 = vrot.lane.b32.xlu0 %v676, 127
    %v685 = vpop.permute.xlu0 %684
    %686 = vrot.lane.b32.xlu0 %v679, 127
    %v687 = vpop.permute.xlu0 %686
    %688 = vrot.lane.b32.xlu0 %v681, 127
    %v689 = vpop.permute.xlu0 %688
    %v694 = vadd.f32 %v654, %v683
    %v695 = vadd.f32 %v655, %v685
    %v696 = vadd.f32 %v656, %v687
    %v697 = vadd.f32 %v657, %v689
    %s698 = sld [smem:[#allocation3 + $0x40]]
    %v699 = vstv %s698
    %v700 = vmul.f32 %v699, %v107
    %v701 = vmul.f32 %v699, %v108
    %v702 = vmul.f32 %v699, %v109
    %v703 = vmul.f32 %v699, %v113
    %v704 = vmul.f32 %v699, %v114
    %v705 = vmul.f32 %v699, %v115
    %v712 = vrot.slane %v700, 2
    %v713 = vrot.slane %v701, 2
    %v714 = vsel %vm215, %v712, %v713
    %v715 = vrot.slane %v702, 2
    %v716 = vsel %vm215, %v713, %v715
    %v717 = vrot.slane %v703, 2
    %v718 = vrot.slane %v704, 2
    %v719 = vsel %vm215, %v717, %v718
    %v720 = vrot.slane %v705, 2
    %v721 = vsel %vm215, %v718, %v720
    %722 = vrot.lane.b32.xlu0 %v714, 127
    %v723 = vpop.permute.xlu0 %722
    %724 = vrot.lane.b32.xlu0 %v716, 127
    %v725 = vpop.permute.xlu0 %724
    %726 = vrot.lane.b32.xlu0 %v719, 127
    %v727 = vpop.permute.xlu0 %726
    %728 = vrot.lane.b32.xlu0 %v721, 127
    %v729 = vpop.permute.xlu0 %728
    %v734 = vadd.f32 %v694, %v723
    %v735 = vadd.f32 %v695, %v725
    %v736 = vadd.f32 %v696, %v727
    %v737 = vadd.f32 %v697, %v729
    %s738 = sld [smem:[#allocation3 + $0x16]]
    %v739 = vstv %s738
    %v740 = vmul.f32 %v739, %v104
    %v741 = vmul.f32 %v739, %v105
    %v742 = vmul.f32 %v739, %v106
    %v743 = vmul.f32 %v739, %v110
    %v744 = vmul.f32 %v739, %v111
    %v745 = vmul.f32 %v739, %v112
    %v752 = vrot.slane %v740, 3
    %v753 = vrot.slane %v741, 3
    %v754 = vsel %vm280, %v752, %v753
    %v755 = vrot.slane %v742, 3
    %v756 = vsel %vm280, %v753, %v755
    %v757 = vrot.slane %v743, 3
    %v758 = vrot.slane %v744, 3
    %v759 = vsel %vm280, %v757, %v758
    %v760 = vrot.slane %v745, 3
    %v761 = vsel %vm280, %v758, %v760
    %762 = vrot.lane.b32.xlu0 %v754, 127
    %v763 = vpop.permute.xlu0 %762
    %764 = vrot.lane.b32.xlu0 %v756, 127
    %v765 = vpop.permute.xlu0 %764
    %766 = vrot.lane.b32.xlu0 %v759, 127
    %v767 = vpop.permute.xlu0 %766
    %768 = vrot.lane.b32.xlu0 %v761, 127
    %v769 = vpop.permute.xlu0 %768
    %v774 = vadd.f32 %v734, %v763
    %v775 = vadd.f32 %v735, %v765
    %v776 = vadd.f32 %v736, %v767
    %v777 = vadd.f32 %v737, %v769
    %s778 = sld [smem:[#allocation3 + $0x47]]
    %v779 = vstv %s778
    %v780 = vmul.f32 %v779, %v107
    %v781 = vmul.f32 %v779, %v108
    %v782 = vmul.f32 %v779, %v109
    %v783 = vmul.f32 %v779, %v113
    %v784 = vmul.f32 %v779, %v114
    %v785 = vmul.f32 %v779, %v115
    %v792 = vrot.slane %v780, 3
    %v793 = vrot.slane %v781, 3
    %v794 = vsel %vm280, %v792, %v793
    %v795 = vrot.slane %v782, 3
    %v796 = vsel %vm280, %v793, %v795
    %v797 = vrot.slane %v783, 3
    %v798 = vrot.slane %v784, 3
    %v799 = vsel %vm280, %v797, %v798
    %v800 = vrot.slane %v785, 3
    %v801 = vsel %vm280, %v798, %v800
    %802 = vrot.lane.b32.xlu0 %v794, 127
    %v803 = vpop.permute.xlu0 %802
    %804 = vrot.lane.b32.xlu0 %v796, 127
    %v805 = vpop.permute.xlu0 %804
    %806 = vrot.lane.b32.xlu0 %v799, 127
    %v807 = vpop.permute.xlu0 %806
    %808 = vrot.lane.b32.xlu0 %v801, 127
    %v809 = vpop.permute.xlu0 %808
    %v814 = vadd.f32 %v774, %v803
    %v815 = vadd.f32 %v775, %v805
    %v816 = vadd.f32 %v776, %v807
    %v817 = vadd.f32 %v777, %v809
    %s818 = sld [smem:[#allocation3 + $0x1d]]
    %v819 = vstv %s818
    %v820 = vmul.f32 %v819, %v104
    %v821 = vmul.f32 %v819, %v105
    %v822 = vmul.f32 %v819, %v106
    %v823 = vmul.f32 %v819, %v110
    %v824 = vmul.f32 %v819, %v111
    %v825 = vmul.f32 %v819, %v112
    %v832 = vrot.slane %v820, 4
    %v833 = vrot.slane %v821, 4
    %v834 = vsel %vm345, %v832, %v833
    %v835 = vrot.slane %v822, 4
    %v836 = vsel %vm345, %v833, %v835
    %v837 = vrot.slane %v823, 4
    %v838 = vrot.slane %v824, 4
    %v839 = vsel %vm345, %v837, %v838
    %v840 = vrot.slane %v825, 4
    %v841 = vsel %vm345, %v838, %v840
    %842 = vrot.lane.b32.xlu0 %v834, 127
    %v843 = vpop.permute.xlu0 %842
    %844 = vrot.lane.b32.xlu0 %v836, 127
    %v845 = vpop.permute.xlu0 %844
    %846 = vrot.lane.b32.xlu0 %v839, 127
    %v847 = vpop.permute.xlu0 %846
    %848 = vrot.lane.b32.xlu0 %v841, 127
    %v849 = vpop.permute.xlu0 %848
    %v854 = vadd.f32 %v814, %v843
    %v855 = vadd.f32 %v815, %v845
    %v856 = vadd.f32 %v816, %v847
    %v857 = vadd.f32 %v817, %v849
    %s858 = sld [smem:[#allocation3 + $0x4e]]
    %v859 = vstv %s858
    %v860 = vmul.f32 %v859, %v107
    %v861 = vmul.f32 %v859, %v108
    %v862 = vmul.f32 %v859, %v109
    %v863 = vmul.f32 %v859, %v113
    %v864 = vmul.f32 %v859, %v114
    %v865 = vmul.f32 %v859, %v115
    %v872 = vrot.slane %v860, 4
    %v873 = vrot.slane %v861, 4
    %v874 = vsel %vm345, %v872, %v873
    %v875 = vrot.slane %v862, 4
    %v876 = vsel %vm345, %v873, %v875
    %v877 = vrot.slane %v863, 4
    %v878 = vrot.slane %v864, 4
    %v879 = vsel %vm345, %v877, %v878
    %v880 = vrot.slane %v865, 4
    %v881 = vsel %vm345, %v878, %v880
    %882 = vrot.lane.b32.xlu0 %v874, 127
    %v883 = vpop.permute.xlu0 %882
    %884 = vrot.lane.b32.xlu0 %v876, 127
    %v885 = vpop.permute.xlu0 %884
    %886 = vrot.lane.b32.xlu0 %v879, 127
    %v887 = vpop.permute.xlu0 %886
    %888 = vrot.lane.b32.xlu0 %v881, 127
    %v889 = vpop.permute.xlu0 %888
    %v894 = vadd.f32 %v854, %v883
    %v895 = vadd.f32 %v855, %v885
    %v896 = vadd.f32 %v856, %v887
    %v897 = vadd.f32 %v857, %v889
    %s898 = sld [smem:[#allocation3 + $0x24]]
    %v899 = vstv %s898
    %v900 = vmul.f32 %v899, %v104
    %v901 = vmul.f32 %v899, %v105
    %v902 = vmul.f32 %v899, %v106
    %v903 = vmul.f32 %v899, %v110
    %v904 = vmul.f32 %v899, %v111
    %v905 = vmul.f32 %v899, %v112
    %v912 = vrot.slane %v900, 5
    %v913 = vrot.slane %v901, 5
    %v914 = vsel %vm410, %v912, %v913
    %v915 = vrot.slane %v902, 5
    %v916 = vsel %vm410, %v913, %v915
    %v917 = vrot.slane %v903, 5
    %v918 = vrot.slane %v904, 5
    %v919 = vsel %vm410, %v917, %v918
    %v920 = vrot.slane %v905, 5
    %v921 = vsel %vm410, %v918, %v920
    %922 = vrot.lane.b32.xlu0 %v914, 127
    %v923 = vpop.permute.xlu0 %922
    %924 = vrot.lane.b32.xlu0 %v916, 127
    %v925 = vpop.permute.xlu0 %924
    %926 = vrot.lane.b32.xlu0 %v919, 127
    %v927 = vpop.permute.xlu0 %926
    %928 = vrot.lane.b32.xlu0 %v921, 127
    %v929 = vpop.permute.xlu0 %928
    %v934 = vadd.f32 %v894, %v923
    %v935 = vadd.f32 %v895, %v925
    %v936 = vadd.f32 %v896, %v927
    %v937 = vadd.f32 %v897, %v929
    %s938 = sld [smem:[#allocation3 + $0x55]]
    %v939 = vstv %s938
    %v940 = vmul.f32 %v939, %v107
    %v941 = vmul.f32 %v939, %v108
    %v942 = vmul.f32 %v939, %v109
    %v943 = vmul.f32 %v939, %v113
    %v944 = vmul.f32 %v939, %v114
    %v945 = vmul.f32 %v939, %v115
    %v952 = vrot.slane %v940, 5
    %v953 = vrot.slane %v941, 5
    %v954 = vsel %vm410, %v952, %v953
    %v955 = vrot.slane %v942, 5
    %v956 = vsel %vm410, %v953, %v955
    %v957 = vrot.slane %v943, 5
    %v958 = vrot.slane %v944, 5
    %v959 = vsel %vm410, %v957, %v958
    %v960 = vrot.slane %v945, 5
    %v961 = vsel %vm410, %v958, %v960
    %962 = vrot.lane.b32.xlu0 %v954, 127
    %v963 = vpop.permute.xlu0 %962
    %964 = vrot.lane.b32.xlu0 %v956, 127
    %v965 = vpop.permute.xlu0 %964
    %966 = vrot.lane.b32.xlu0 %v959, 127
    %v967 = vpop.permute.xlu0 %966
    %968 = vrot.lane.b32.xlu0 %v961, 127
    %v969 = vpop.permute.xlu0 %968
    %v974 = vadd.f32 %v934, %v963
    %v975 = vadd.f32 %v935, %v965
    %v976 = vadd.f32 %v936, %v967
    %v977 = vadd.f32 %v937, %v969
    %s978 = sld [smem:[#allocation3 + $0x2b]]
    %v979 = vstv %s978
    %v980 = vmul.f32 %v979, %v104
    %v981 = vmul.f32 %v979, %v105
    %v982 = vmul.f32 %v979, %v106
    %v983 = vmul.f32 %v979, %v110
    %v984 = vmul.f32 %v979, %v111
    %v985 = vmul.f32 %v979, %v112
    %v992 = vrot.slane %v980, 6
    %v993 = vrot.slane %v981, 6
    %v994 = vsel %vm475, %v992, %v993
    %v995 = vrot.slane %v982, 6
    %v996 = vsel %vm475, %v993, %v995
    %v997 = vrot.slane %v983, 6
    %v998 = vrot.slane %v984, 6
    %v999 = vsel %vm475, %v997, %v998
    %v1000 = vrot.slane %v985, 6
    %v1001 = vsel %vm475, %v998, %v1000
    %1002 = vrot.lane.b32.xlu0 %v994, 127
    %v1003 = vpop.permute.xlu0 %1002
    %1004 = vrot.lane.b32.xlu0 %v996, 127
    %v1005 = vpop.permute.xlu0 %1004
    %1006 = vrot.lane.b32.xlu0 %v999, 127
    %v1007 = vpop.permute.xlu0 %1006
    %1008 = vrot.lane.b32.xlu0 %v1001, 127
    %v1009 = vpop.permute.xlu0 %1008
    %v1014 = vadd.f32 %v974, %v1003
    %v1015 = vadd.f32 %v975, %v1005
    %v1016 = vadd.f32 %v976, %v1007
    %v1017 = vadd.f32 %v977, %v1009
    %s1018 = sld [smem:[#allocation3 + $0x5c]]
    %v1019 = vstv %s1018
    %v1020 = vmul.f32 %v1019, %v107
    %v1021 = vmul.f32 %v1019, %v108
    %v1022 = vmul.f32 %v1019, %v109
    %v1023 = vmul.f32 %v1019, %v113
    %v1024 = vmul.f32 %v1019, %v114
    %v1025 = vmul.f32 %v1019, %v115
    %v1032 = vrot.slane %v1020, 6
    %v1033 = vrot.slane %v1021, 6
    %v1034 = vsel %vm475, %v1032, %v1033
    %v1035 = vrot.slane %v1022, 6
    %v1036 = vsel %vm475, %v1033, %v1035
    %v1037 = vrot.slane %v1023, 6
    %v1038 = vrot.slane %v1024, 6
    %v1039 = vsel %vm475, %v1037, %v1038
    %v1040 = vrot.slane %v1025, 6
    %v1041 = vsel %vm475, %v1038, %v1040
    %1042 = vrot.lane.b32.xlu0 %v1034, 127
    %v1043 = vpop.permute.xlu0 %1042
    %1044 = vrot.lane.b32.xlu0 %v1036, 127
    %v1045 = vpop.permute.xlu0 %1044
    %1046 = vrot.lane.b32.xlu0 %v1039, 127
    %v1047 = vpop.permute.xlu0 %1046
    %1048 = vrot.lane.b32.xlu0 %v1041, 127
    %v1049 = vpop.permute.xlu0 %1048
    %v1054 = vadd.f32 %v1014, %v1043
    %v1055 = vadd.f32 %v1015, %v1045
    %v1056 = vadd.f32 %v1016, %v1047
    %v1057 = vadd.f32 %v1017, %v1049
    %s1058 = sld [smem:[#allocation3 + $0x2]]
    %v1059 = vstv %s1058
    %v1060 = vmul.f32 %v1059, %v104
    %v1061 = vmul.f32 %v1059, %v105
    %v1062 = vmul.f32 %v1059, %v110
    %v1063 = vmul.f32 %v1059, %v111
    %1068 = vrot.lane.b32.xlu0 %v1060, 126
    %v1069 = vpop.permute.xlu0 %1068
    %1070 = vrot.lane.b32.xlu0 %v1061, 126
    %v1071 = vpop.permute.xlu0 %1070
    %1072 = vrot.lane.b32.xlu0 %v1062, 126
    %v1073 = vpop.permute.xlu0 %1072
    %1074 = vrot.lane.b32.xlu0 %v1063, 126
    %v1075 = vpop.permute.xlu0 %1074
    %v1080 = vadd.f32 %v1054, %v1069
    %v1081 = vadd.f32 %v1055, %v1071
    %v1082 = vadd.f32 %v1056, %v1073
    %v1083 = vadd.f32 %v1057, %v1075
    %s1084 = sld [smem:[#allocation3 + $0x33]]
    %v1085 = vstv %s1084
    %v1086 = vmul.f32 %v1085, %v107
    %v1087 = vmul.f32 %v1085, %v108
    %v1088 = vmul.f32 %v1085, %v113
    %v1089 = vmul.f32 %v1085, %v114
    %1094 = vrot.lane.b32.xlu0 %v1086, 126
    %v1095 = vpop.permute.xlu0 %1094
    %1096 = vrot.lane.b32.xlu0 %v1087, 126
    %v1097 = vpop.permute.xlu0 %1096
    %1098 = vrot.lane.b32.xlu0 %v1088, 126
    %v1099 = vpop.permute.xlu0 %1098
    %1100 = vrot.lane.b32.xlu0 %v1089, 126
    %v1101 = vpop.permute.xlu0 %1100
    %v1106 = vadd.f32 %v1080, %v1095
    %v1107 = vadd.f32 %v1081, %v1097
    %v1108 = vadd.f32 %v1082, %v1099
    %v1109 = vadd.f32 %v1083, %v1101
    %s1110 = sld [smem:[#allocation3 + $0x9]]
    %v1111 = vstv %s1110
    %v1112 = vmul.f32 %v1111, %v104
    %v1113 = vmul.f32 %v1111, %v105
    %v1114 = vmul.f32 %v1111, %v106
    %v1115 = vmul.f32 %v1111, %v110
    %v1116 = vmul.f32 %v1111, %v111
    %v1117 = vmul.f32 %v1111, %v112
    %v1124 = vrot.slane %v1112, 1
    %v1125 = vrot.slane %v1113, 1
    %v1126 = vsel %vm150, %v1124, %v1125
    %v1127 = vrot.slane %v1114, 1
    %v1128 = vsel %vm150, %v1125, %v1127
    %v1129 = vrot.slane %v1115, 1
    %v1130 = vrot.slane %v1116, 1
    %v1131 = vsel %vm150, %v1129, %v1130
    %v1132 = vrot.slane %v1117, 1
    %v1133 = vsel %vm150, %v1130, %v1132
    %1134 = vrot.lane.b32.xlu0 %v1126, 126
    %v1135 = vpop.permute.xlu0 %1134
    %1136 = vrot.lane.b32.xlu0 %v1128, 126
    %v1137 = vpop.permute.xlu0 %1136
    %1138 = vrot.lane.b32.xlu0 %v1131, 126
    %v1139 = vpop.permute.xlu0 %1138
    %1140 = vrot.lane.b32.xlu0 %v1133, 126
    %v1141 = vpop.permute.xlu0 %1140
    %v1146 = vadd.f32 %v1106, %v1135
    %v1147 = vadd.f32 %v1107, %v1137
    %v1148 = vadd.f32 %v1108, %v1139
    %v1149 = vadd.f32 %v1109, %v1141
    %s1150 = sld [smem:[#allocation3 + $0x3a]]
    %v1151 = vstv %s1150
    %v1152 = vmul.f32 %v1151, %v107
    %v1153 = vmul.f32 %v1151, %v108
    %v1154 = vmul.f32 %v1151, %v109
    %v1155 = vmul.f32 %v1151, %v113
    %v1156 = vmul.f32 %v1151, %v114
    %v1157 = vmul.f32 %v1151, %v115
    %v1164 = vrot.slane %v1152, 1
    %v1165 = vrot.slane %v1153, 1
    %v1166 = vsel %vm150, %v1164, %v1165
    %v1167 = vrot.slane %v1154, 1
    %v1168 = vsel %vm150, %v1165, %v1167
    %v1169 = vrot.slane %v1155, 1
    %v1170 = vrot.slane %v1156, 1
    %v1171 = vsel %vm150, %v1169, %v1170
    %v1172 = vrot.slane %v1157, 1
    %v1173 = vsel %vm150, %v1170, %v1172
    %1174 = vrot.lane.b32.xlu0 %v1166, 126
    %v1175 = vpop.permute.xlu0 %1174
    %1176 = vrot.lane.b32.xlu0 %v1168, 126
    %v1177 = vpop.permute.xlu0 %1176
    %1178 = vrot.lane.b32.xlu0 %v1171, 126
    %v1179 = vpop.permute.xlu0 %1178
    %1180 = vrot.lane.b32.xlu0 %v1173, 126
    %v1181 = vpop.permute.xlu0 %1180
    %v1186 = vadd.f32 %v1146, %v1175
    %v1187 = vadd.f32 %v1147, %v1177
    %v1188 = vadd.f32 %v1148, %v1179
    %v1189 = vadd.f32 %v1149, %v1181
    %s1190 = sld [smem:[#allocation3 + $0x10]]
    %v1191 = vstv %s1190
    %v1192 = vmul.f32 %v1191, %v104
    %v1193 = vmul.f32 %v1191, %v105
    %v1194 = vmul.f32 %v1191, %v106
    %v1195 = vmul.f32 %v1191, %v110
    %v1196 = vmul.f32 %v1191, %v111
    %v1197 = vmul.f32 %v1191, %v112
    %v1204 = vrot.slane %v1192, 2
    %v1205 = vrot.slane %v1193, 2
    %v1206 = vsel %vm215, %v1204, %v1205
    %v1207 = vrot.slane %v1194, 2
    %v1208 = vsel %vm215, %v1205, %v1207
    %v1209 = vrot.slane %v1195, 2
    %v1210 = vrot.slane %v1196, 2
    %v1211 = vsel %vm215, %v1209, %v1210
    %v1212 = vrot.slane %v1197, 2
    %v1213 = vsel %vm215, %v1210, %v1212
    %1214 = vrot.lane.b32.xlu0 %v1206, 126
    %v1215 = vpop.permute.xlu0 %1214
    %1216 = vrot.lane.b32.xlu0 %v1208, 126
    %v1217 = vpop.permute.xlu0 %1216
    %1218 = vrot.lane.b32.xlu0 %v1211, 126
    %v1219 = vpop.permute.xlu0 %1218
    %1220 = vrot.lane.b32.xlu0 %v1213, 126
    %v1221 = vpop.permute.xlu0 %1220
    %v1226 = vadd.f32 %v1186, %v1215
    %v1227 = vadd.f32 %v1187, %v1217
    %v1228 = vadd.f32 %v1188, %v1219
    %v1229 = vadd.f32 %v1189, %v1221
    %s1230 = sld [smem:[#allocation3 + $0x41]]
    %v1231 = vstv %s1230
    %v1232 = vmul.f32 %v1231, %v107
    %v1233 = vmul.f32 %v1231, %v108
    %v1234 = vmul.f32 %v1231, %v109
    %v1235 = vmul.f32 %v1231, %v113
    %v1236 = vmul.f32 %v1231, %v114
    %v1237 = vmul.f32 %v1231, %v115
    %v1244 = vrot.slane %v1232, 2
    %v1245 = vrot.slane %v1233, 2
    %v1246 = vsel %vm215, %v1244, %v1245
    %v1247 = vrot.slane %v1234, 2
    %v1248 = vsel %vm215, %v1245, %v1247
    %v1249 = vrot.slane %v1235, 2
    %v1250 = vrot.slane %v1236, 2
    %v1251 = vsel %vm215, %v1249, %v1250
    %v1252 = vrot.slane %v1237, 2
    %v1253 = vsel %vm215, %v1250, %v1252
    %1254 = vrot.lane.b32.xlu0 %v1246, 126
    %v1255 = vpop.permute.xlu0 %1254
    %1256 = vrot.lane.b32.xlu0 %v1248, 126
    %v1257 = vpop.permute.xlu0 %1256
    %1258 = vrot.lane.b32.xlu0 %v1251, 126
    %v1259 = vpop.permute.xlu0 %1258
    %1260 = vrot.lane.b32.xlu0 %v1253, 126
    %v1261 = vpop.permute.xlu0 %1260
    %v1266 = vadd.f32 %v1226, %v1255
    %v1267 = vadd.f32 %v1227, %v1257
    %v1268 = vadd.f32 %v1228, %v1259
    %v1269 = vadd.f32 %v1229, %v1261
    %s1270 = sld [smem:[#allocation3 + $0x17]]
    %v1271 = vstv %s1270
    %v1272 = vmul.f32 %v1271, %v104
    %v1273 = vmul.f32 %v1271, %v105
    %v1274 = vmul.f32 %v1271, %v106
    %v1275 = vmul.f32 %v1271, %v110
    %v1276 = vmul.f32 %v1271, %v111
    %v1277 = vmul.f32 %v1271, %v112
    %v1284 = vrot.slane %v1272, 3
    %v1285 = vrot.slane %v1273, 3
    %v1286 = vsel %vm280, %v1284, %v1285
    %v1287 = vrot.slane %v1274, 3
    %v1288 = vsel %vm280, %v1285, %v1287
    %v1289 = vrot.slane %v1275, 3
    %v1290 = vrot.slane %v1276, 3
    %v1291 = vsel %vm280, %v1289, %v1290
    %v1292 = vrot.slane %v1277, 3
    %v1293 = vsel %vm280, %v1290, %v1292
    %1294 = vrot.lane.b32.xlu0 %v1286, 126
    %v1295 = vpop.permute.xlu0 %1294
    %1296 = vrot.lane.b32.xlu0 %v1288, 126
    %v1297 = vpop.permute.xlu0 %1296
    %1298 = vrot.lane.b32.xlu0 %v1291, 126
    %v1299 = vpop.permute.xlu0 %1298
    %1300 = vrot.lane.b32.xlu0 %v1293, 126
    %v1301 = vpop.permute.xlu0 %1300
    %v1306 = vadd.f32 %v1266, %v1295
    %v1307 = vadd.f32 %v1267, %v1297
    %v1308 = vadd.f32 %v1268, %v1299
    %v1309 = vadd.f32 %v1269, %v1301
    %s1310 = sld [smem:[#allocation3 + $0x48]]
    %v1311 = vstv %s1310
    %v1312 = vmul.f32 %v1311, %v107
    %v1313 = vmul.f32 %v1311, %v108
    %v1314 = vmul.f32 %v1311, %v109
    %v1315 = vmul.f32 %v1311, %v113
    %v1316 = vmul.f32 %v1311, %v114
    %v1317 = vmul.f32 %v1311, %v115
    %v1324 = vrot.slane %v1312, 3
    %v1325 = vrot.slane %v1313, 3
    %v1326 = vsel %vm280, %v1324, %v1325
    %v1327 = vrot.slane %v1314, 3
    %v1328 = vsel %vm280, %v1325, %v1327
    %v1329 = vrot.slane %v1315, 3
    %v1330 = vrot.slane %v1316, 3
    %v1331 = vsel %vm280, %v1329, %v1330
    %v1332 = vrot.slane %v1317, 3
    %v1333 = vsel %vm280, %v1330, %v1332
    %1334 = vrot.lane.b32.xlu0 %v1326, 126
    %v1335 = vpop.permute.xlu0 %1334
    %1336 = vrot.lane.b32.xlu0 %v1328, 126
    %v1337 = vpop.permute.xlu0 %1336
    %1338 = vrot.lane.b32.xlu0 %v1331, 126
    %v1339 = vpop.permute.xlu0 %1338
    %1340 = vrot.lane.b32.xlu0 %v1333, 126
    %v1341 = vpop.permute.xlu0 %1340
    %v1346 = vadd.f32 %v1306, %v1335
    %v1347 = vadd.f32 %v1307, %v1337
    %v1348 = vadd.f32 %v1308, %v1339
    %v1349 = vadd.f32 %v1309, %v1341
    %s1350 = sld [smem:[#allocation3 + $0x1e]]
    %v1351 = vstv %s1350
    %v1352 = vmul.f32 %v1351, %v104
    %v1353 = vmul.f32 %v1351, %v105
    %v1354 = vmul.f32 %v1351, %v106
    %v1355 = vmul.f32 %v1351, %v110
    %v1356 = vmul.f32 %v1351, %v111
    %v1357 = vmul.f32 %v1351, %v112
    %v1364 = vrot.slane %v1352, 4
    %v1365 = vrot.slane %v1353, 4
    %v1366 = vsel %vm345, %v1364, %v1365
    %v1367 = vrot.slane %v1354, 4
    %v1368 = vsel %vm345, %v1365, %v1367
    %v1369 = vrot.slane %v1355, 4
    %v1370 = vrot.slane %v1356, 4
    %v1371 = vsel %vm345, %v1369, %v1370
    %v1372 = vrot.slane %v1357, 4
    %v1373 = vsel %vm345, %v1370, %v1372
    %1374 = vrot.lane.b32.xlu0 %v1366, 126
    %v1375 = vpop.permute.xlu0 %1374
    %1376 = vrot.lane.b32.xlu0 %v1368, 126
    %v1377 = vpop.permute.xlu0 %1376
    %1378 = vrot.lane.b32.xlu0 %v1371, 126
    %v1379 = vpop.permute.xlu0 %1378
    %1380 = vrot.lane.b32.xlu0 %v1373, 126
    %v1381 = vpop.permute.xlu0 %1380
    %v1386 = vadd.f32 %v1346, %v1375
    %v1387 = vadd.f32 %v1347, %v1377
    %v1388 = vadd.f32 %v1348, %v1379
    %v1389 = vadd.f32 %v1349, %v1381
    %s1390 = sld [smem:[#allocation3 + $0x4f]]
    %v1391 = vstv %s1390
    %v1392 = vmul.f32 %v1391, %v107
    %v1393 = vmul.f32 %v1391, %v108
    %v1394 = vmul.f32 %v1391, %v109
    %v1395 = vmul.f32 %v1391, %v113
    %v1396 = vmul.f32 %v1391, %v114
    %v1397 = vmul.f32 %v1391, %v115
    %v1404 = vrot.slane %v1392, 4
    %v1405 = vrot.slane %v1393, 4
    %v1406 = vsel %vm345, %v1404, %v1405
    %v1407 = vrot.slane %v1394, 4
    %v1408 = vsel %vm345, %v1405, %v1407
    %v1409 = vrot.slane %v1395, 4
    %v1410 = vrot.slane %v1396, 4
    %v1411 = vsel %vm345, %v1409, %v1410
    %v1412 = vrot.slane %v1397, 4
    %v1413 = vsel %vm345, %v1410, %v1412
    %1414 = vrot.lane.b32.xlu0 %v1406, 126
    %v1415 = vpop.permute.xlu0 %1414
    %1416 = vrot.lane.b32.xlu0 %v1408, 126
    %v1417 = vpop.permute.xlu0 %1416
    %1418 = vrot.lane.b32.xlu0 %v1411, 126
    %v1419 = vpop.permute.xlu0 %1418
    %1420 = vrot.lane.b32.xlu0 %v1413, 126
    %v1421 = vpop.permute.xlu0 %1420
    %v1426 = vadd.f32 %v1386, %v1415
    %v1427 = vadd.f32 %v1387, %v1417
    %v1428 = vadd.f32 %v1388, %v1419
    %v1429 = vadd.f32 %v1389, %v1421
    %s1430 = sld [smem:[#allocation3 + $0x25]]
    %v1431 = vstv %s1430
    %v1432 = vmul.f32 %v1431, %v104
    %v1433 = vmul.f32 %v1431, %v105
    %v1434 = vmul.f32 %v1431, %v106
    %v1435 = vmul.f32 %v1431, %v110
    %v1436 = vmul.f32 %v1431, %v111
    %v1437 = vmul.f32 %v1431, %v112
    %v1444 = vrot.slane %v1432, 5
    %v1445 = vrot.slane %v1433, 5
    %v1446 = vsel %vm410, %v1444, %v1445
    %v1447 = vrot.slane %v1434, 5
    %v1448 = vsel %vm410, %v1445, %v1447
    %v1449 = vrot.slane %v1435, 5
    %v1450 = vrot.slane %v1436, 5
    %v1451 = vsel %vm410, %v1449, %v1450
    %v1452 = vrot.slane %v1437, 5
    %v1453 = vsel %vm410, %v1450, %v1452
    %1454 = vrot.lane.b32.xlu0 %v1446, 126
    %v1455 = vpop.permute.xlu0 %1454
    %1456 = vrot.lane.b32.xlu0 %v1448, 126
    %v1457 = vpop.permute.xlu0 %1456
    %1458 = vrot.lane.b32.xlu0 %v1451, 126
    %v1459 = vpop.permute.xlu0 %1458
    %1460 = vrot.lane.b32.xlu0 %v1453, 126
    %v1461 = vpop.permute.xlu0 %1460
    %v1466 = vadd.f32 %v1426, %v1455
    %v1467 = vadd.f32 %v1427, %v1457
    %v1468 = vadd.f32 %v1428, %v1459
    %v1469 = vadd.f32 %v1429, %v1461
    %s1470 = sld [smem:[#allocation3 + $0x56]]
    %v1471 = vstv %s1470
    %v1472 = vmul.f32 %v1471, %v107
    %v1473 = vmul.f32 %v1471, %v108
    %v1474 = vmul.f32 %v1471, %v109
    %v1475 = vmul.f32 %v1471, %v113
    %v1476 = vmul.f32 %v1471, %v114
    %v1477 = vmul.f32 %v1471, %v115
    %v1484 = vrot.slane %v1472, 5
    %v1485 = vrot.slane %v1473, 5
    %v1486 = vsel %vm410, %v1484, %v1485
    %v1487 = vrot.slane %v1474, 5
    %v1488 = vsel %vm410, %v1485, %v1487
    %v1489 = vrot.slane %v1475, 5
    %v1490 = vrot.slane %v1476, 5
    %v1491 = vsel %vm410, %v1489, %v1490
    %v1492 = vrot.slane %v1477, 5
    %v1493 = vsel %vm410, %v1490, %v1492
    %1494 = vrot.lane.b32.xlu0 %v1486, 126
    %v1495 = vpop.permute.xlu0 %1494
    %1496 = vrot.lane.b32.xlu0 %v1488, 126
    %v1497 = vpop.permute.xlu0 %1496
    %1498 = vrot.lane.b32.xlu0 %v1491, 126
    %v1499 = vpop.permute.xlu0 %1498
    %1500 = vrot.lane.b32.xlu0 %v1493, 126
    %v1501 = vpop.permute.xlu0 %1500
    %v1506 = vadd.f32 %v1466, %v1495
    %v1507 = vadd.f32 %v1467, %v1497
    %v1508 = vadd.f32 %v1468, %v1499
    %v1509 = vadd.f32 %v1469, %v1501
    %s1510 = sld [smem:[#allocation3 + $0x2c]]
    %v1511 = vstv %s1510
    %v1512 = vmul.f32 %v1511, %v104
    %v1513 = vmul.f32 %v1511, %v105
    %v1514 = vmul.f32 %v1511, %v106
    %v1515 = vmul.f32 %v1511, %v110
    %v1516 = vmul.f32 %v1511, %v111
    %v1517 = vmul.f32 %v1511, %v112
    %v1524 = vrot.slane %v1512, 6
    %v1525 = vrot.slane %v1513, 6
    %v1526 = vsel %vm475, %v1524, %v1525
    %v1527 = vrot.slane %v1514, 6
    %v1528 = vsel %vm475, %v1525, %v1527
    %v1529 = vrot.slane %v1515, 6
    %v1530 = vrot.slane %v1516, 6
    %v1531 = vsel %vm475, %v1529, %v1530
    %v1532 = vrot.slane %v1517, 6
    %v1533 = vsel %vm475, %v1530, %v1532
    %1534 = vrot.lane.b32.xlu0 %v1526, 126
    %v1535 = vpop.permute.xlu0 %1534
    %1536 = vrot.lane.b32.xlu0 %v1528, 126
    %v1537 = vpop.permute.xlu0 %1536
    %1538 = vrot.lane.b32.xlu0 %v1531, 126
    %v1539 = vpop.permute.xlu0 %1538
    %1540 = vrot.lane.b32.xlu0 %v1533, 126
    %v1541 = vpop.permute.xlu0 %1540
    %v1546 = vadd.f32 %v1506, %v1535
    %v1547 = vadd.f32 %v1507, %v1537
    %v1548 = vadd.f32 %v1508, %v1539
    %v1549 = vadd.f32 %v1509, %v1541
    %s1550 = sld [smem:[#allocation3 + $0x5d]]
    %v1551 = vstv %s1550
    %v1552 = vmul.f32 %v1551, %v107
    %v1553 = vmul.f32 %v1551, %v108
    %v1554 = vmul.f32 %v1551, %v109
    %v1555 = vmul.f32 %v1551, %v113
    %v1556 = vmul.f32 %v1551, %v114
    %v1557 = vmul.f32 %v1551, %v115
    %v1564 = vrot.slane %v1552, 6
    %v1565 = vrot.slane %v1553, 6
    %v1566 = vsel %vm475, %v1564, %v1565
    %v1567 = vrot.slane %v1554, 6
    %v1568 = vsel %vm475, %v1565, %v1567
    %v1569 = vrot.slane %v1555, 6
    %v1570 = vrot.slane %v1556, 6
    %v1571 = vsel %vm475, %v1569, %v1570
    %v1572 = vrot.slane %v1557, 6
    %v1573 = vsel %vm475, %v1570, %v1572
    %1574 = vrot.lane.b32.xlu0 %v1566, 126
    %v1575 = vpop.permute.xlu0 %1574
    %1576 = vrot.lane.b32.xlu0 %v1568, 126
    %v1577 = vpop.permute.xlu0 %1576
    %1578 = vrot.lane.b32.xlu0 %v1571, 126
    %v1579 = vpop.permute.xlu0 %1578
    %1580 = vrot.lane.b32.xlu0 %v1573, 126
    %v1581 = vpop.permute.xlu0 %1580
    %v1586 = vadd.f32 %v1546, %v1575
    %v1587 = vadd.f32 %v1547, %v1577
    %v1588 = vadd.f32 %v1548, %v1579
    %v1589 = vadd.f32 %v1549, %v1581
    %s1590 = sld [smem:[#allocation3 + $0x3]]
    %v1591 = vstv %s1590
    %v1592 = vmul.f32 %v1591, %v104
    %v1593 = vmul.f32 %v1591, %v105
    %v1594 = vmul.f32 %v1591, %v110
    %v1595 = vmul.f32 %v1591, %v111
    %1600 = vrot.lane.b32.xlu0 %v1592, 125
    %v1601 = vpop.permute.xlu0 %1600
    %1602 = vrot.lane.b32.xlu0 %v1593, 125
    %v1603 = vpop.permute.xlu0 %1602
    %1604 = vrot.lane.b32.xlu0 %v1594, 125
    %v1605 = vpop.permute.xlu0 %1604
    %1606 = vrot.lane.b32.xlu0 %v1595, 125
    %v1607 = vpop.permute.xlu0 %1606
    %v1612 = vadd.f32 %v1586, %v1601
    %v1613 = vadd.f32 %v1587, %v1603
    %v1614 = vadd.f32 %v1588, %v1605
    %v1615 = vadd.f32 %v1589, %v1607
    %s1616 = sld [smem:[#allocation3 + $0x34]]
    %v1617 = vstv %s1616
    %v1618 = vmul.f32 %v1617, %v107
    %v1619 = vmul.f32 %v1617, %v108
    %v1620 = vmul.f32 %v1617, %v113
    %v1621 = vmul.f32 %v1617, %v114
    %1626 = vrot.lane.b32.xlu0 %v1618, 125
    %v1627 = vpop.permute.xlu0 %1626
    %1628 = vrot.lane.b32.xlu0 %v1619, 125
    %v1629 = vpop.permute.xlu0 %1628
    %1630 = vrot.lane.b32.xlu0 %v1620, 125
    %v1631 = vpop.permute.xlu0 %1630
    %1632 = vrot.lane.b32.xlu0 %v1621, 125
    %v1633 = vpop.permute.xlu0 %1632
    %v1638 = vadd.f32 %v1612, %v1627
    %v1639 = vadd.f32 %v1613, %v1629
    %v1640 = vadd.f32 %v1614, %v1631
    %v1641 = vadd.f32 %v1615, %v1633
    %s1642 = sld [smem:[#allocation3 + $0xa]]
    %v1643 = vstv %s1642
    %v1644 = vmul.f32 %v1643, %v104
    %v1645 = vmul.f32 %v1643, %v105
    %v1646 = vmul.f32 %v1643, %v106
    %v1647 = vmul.f32 %v1643, %v110
    %v1648 = vmul.f32 %v1643, %v111
    %v1649 = vmul.f32 %v1643, %v112
    %v1656 = vrot.slane %v1644, 1
    %v1657 = vrot.slane %v1645, 1
    %v1658 = vsel %vm150, %v1656, %v1657
    %v1659 = vrot.slane %v1646, 1
    %v1660 = vsel %vm150, %v1657, %v1659
    %v1661 = vrot.slane %v1647, 1
    %v1662 = vrot.slane %v1648, 1
    %v1663 = vsel %vm150, %v1661, %v1662
    %v1664 = vrot.slane %v1649, 1
    %v1665 = vsel %vm150, %v1662, %v1664
    %1666 = vrot.lane.b32.xlu0 %v1658, 125
    %v1667 = vpop.permute.xlu0 %1666
    %1668 = vrot.lane.b32.xlu0 %v1660, 125
    %v1669 = vpop.permute.xlu0 %1668
    %1670 = vrot.lane.b32.xlu0 %v1663, 125
    %v1671 = vpop.permute.xlu0 %1670
    %1672 = vrot.lane.b32.xlu0 %v1665, 125
    %v1673 = vpop.permute.xlu0 %1672
    %v1678 = vadd.f32 %v1638, %v1667
    %v1679 = vadd.f32 %v1639, %v1669
    %v1680 = vadd.f32 %v1640, %v1671
    %v1681 = vadd.f32 %v1641, %v1673
    %s1682 = sld [smem:[#allocation3 + $0x3b]]
    %v1683 = vstv %s1682
    %v1684 = vmul.f32 %v1683, %v107
    %v1685 = vmul.f32 %v1683, %v108
    %v1686 = vmul.f32 %v1683, %v109
    %v1687 = vmul.f32 %v1683, %v113
    %v1688 = vmul.f32 %v1683, %v114
    %v1689 = vmul.f32 %v1683, %v115
    %v1696 = vrot.slane %v1684, 1
    %v1697 = vrot.slane %v1685, 1
    %v1698 = vsel %vm150, %v1696, %v1697
    %v1699 = vrot.slane %v1686, 1
    %v1700 = vsel %vm150, %v1697, %v1699
    %v1701 = vrot.slane %v1687, 1
    %v1702 = vrot.slane %v1688, 1
    %v1703 = vsel %vm150, %v1701, %v1702
    %v1704 = vrot.slane %v1689, 1
    %v1705 = vsel %vm150, %v1702, %v1704
    %1706 = vrot.lane.b32.xlu0 %v1698, 125
    %v1707 = vpop.permute.xlu0 %1706
    %1708 = vrot.lane.b32.xlu0 %v1700, 125
    %v1709 = vpop.permute.xlu0 %1708
    %1710 = vrot.lane.b32.xlu0 %v1703, 125
    %v1711 = vpop.permute.xlu0 %1710
    %1712 = vrot.lane.b32.xlu0 %v1705, 125
    %v1713 = vpop.permute.xlu0 %1712
    %v1718 = vadd.f32 %v1678, %v1707
    %v1719 = vadd.f32 %v1679, %v1709
    %v1720 = vadd.f32 %v1680, %v1711
    %v1721 = vadd.f32 %v1681, %v1713
    %s1722 = sld [smem:[#allocation3 + $0x11]]
    %v1723 = vstv %s1722
    %v1724 = vmul.f32 %v1723, %v104
    %v1725 = vmul.f32 %v1723, %v105
    %v1726 = vmul.f32 %v1723, %v106
    %v1727 = vmul.f32 %v1723, %v110
    %v1728 = vmul.f32 %v1723, %v111
    %v1729 = vmul.f32 %v1723, %v112
    %v1736 = vrot.slane %v1724, 2
    %v1737 = vrot.slane %v1725, 2
    %v1738 = vsel %vm215, %v1736, %v1737
    %v1739 = vrot.slane %v1726, 2
    %v1740 = vsel %vm215, %v1737, %v1739
    %v1741 = vrot.slane %v1727, 2
    %v1742 = vrot.slane %v1728, 2
    %v1743 = vsel %vm215, %v1741, %v1742
    %v1744 = vrot.slane %v1729, 2
    %v1745 = vsel %vm215, %v1742, %v1744
    %1746 = vrot.lane.b32.xlu0 %v1738, 125
    %v1747 = vpop.permute.xlu0 %1746
    %1748 = vrot.lane.b32.xlu0 %v1740, 125
    %v1749 = vpop.permute.xlu0 %1748
    %1750 = vrot.lane.b32.xlu0 %v1743, 125
    %v1751 = vpop.permute.xlu0 %1750
    %1752 = vrot.lane.b32.xlu0 %v1745, 125
    %v1753 = vpop.permute.xlu0 %1752
    %v1758 = vadd.f32 %v1718, %v1747
    %v1759 = vadd.f32 %v1719, %v1749
    %v1760 = vadd.f32 %v1720, %v1751
    %v1761 = vadd.f32 %v1721, %v1753
    %s1762 = sld [smem:[#allocation3 + $0x42]]
    %v1763 = vstv %s1762
    %v1764 = vmul.f32 %v1763, %v107
    %v1765 = vmul.f32 %v1763, %v108
    %v1766 = vmul.f32 %v1763, %v109
    %v1767 = vmul.f32 %v1763, %v113
    %v1768 = vmul.f32 %v1763, %v114
    %v1769 = vmul.f32 %v1763, %v115
    %v1776 = vrot.slane %v1764, 2
    %v1777 = vrot.slane %v1765, 2
    %v1778 = vsel %vm215, %v1776, %v1777
    %v1779 = vrot.slane %v1766, 2
    %v1780 = vsel %vm215, %v1777, %v1779
    %v1781 = vrot.slane %v1767, 2
    %v1782 = vrot.slane %v1768, 2
    %v1783 = vsel %vm215, %v1781, %v1782
    %v1784 = vrot.slane %v1769, 2
    %v1785 = vsel %vm215, %v1782, %v1784
    %1786 = vrot.lane.b32.xlu0 %v1778, 125
    %v1787 = vpop.permute.xlu0 %1786
    %1788 = vrot.lane.b32.xlu0 %v1780, 125
    %v1789 = vpop.permute.xlu0 %1788
    %1790 = vrot.lane.b32.xlu0 %v1783, 125
    %v1791 = vpop.permute.xlu0 %1790
    %1792 = vrot.lane.b32.xlu0 %v1785, 125
    %v1793 = vpop.permute.xlu0 %1792
    %v1798 = vadd.f32 %v1758, %v1787
    %v1799 = vadd.f32 %v1759, %v1789
    %v1800 = vadd.f32 %v1760, %v1791
    %v1801 = vadd.f32 %v1761, %v1793
    %s1802 = sld [smem:[#allocation3 + $0x18]]
    %v1803 = vstv %s1802
    %v1804 = vmul.f32 %v1803, %v104
    %v1805 = vmul.f32 %v1803, %v105
    %v1806 = vmul.f32 %v1803, %v106
    %v1807 = vmul.f32 %v1803, %v110
    %v1808 = vmul.f32 %v1803, %v111
    %v1809 = vmul.f32 %v1803, %v112
    %v1816 = vrot.slane %v1804, 3
    %v1817 = vrot.slane %v1805, 3
    %v1818 = vsel %vm280, %v1816, %v1817
    %v1819 = vrot.slane %v1806, 3
    %v1820 = vsel %vm280, %v1817, %v1819
    %v1821 = vrot.slane %v1807, 3
    %v1822 = vrot.slane %v1808, 3
    %v1823 = vsel %vm280, %v1821, %v1822
    %v1824 = vrot.slane %v1809, 3
    %v1825 = vsel %vm280, %v1822, %v1824
    %1826 = vrot.lane.b32.xlu0 %v1818, 125
    %v1827 = vpop.permute.xlu0 %1826
    %1828 = vrot.lane.b32.xlu0 %v1820, 125
    %v1829 = vpop.permute.xlu0 %1828
    %1830 = vrot.lane.b32.xlu0 %v1823, 125
    %v1831 = vpop.permute.xlu0 %1830
    %1832 = vrot.lane.b32.xlu0 %v1825, 125
    %v1833 = vpop.permute.xlu0 %1832
    %v1838 = vadd.f32 %v1798, %v1827
    %v1839 = vadd.f32 %v1799, %v1829
    %v1840 = vadd.f32 %v1800, %v1831
    %v1841 = vadd.f32 %v1801, %v1833
    %s1842 = sld [smem:[#allocation3 + $0x49]]
    %v1843 = vstv %s1842
    %v1844 = vmul.f32 %v1843, %v107
    %v1845 = vmul.f32 %v1843, %v108
    %v1846 = vmul.f32 %v1843, %v109
    %v1847 = vmul.f32 %v1843, %v113
    %v1848 = vmul.f32 %v1843, %v114
    %v1849 = vmul.f32 %v1843, %v115
    %v1856 = vrot.slane %v1844, 3
    %v1857 = vrot.slane %v1845, 3
    %v1858 = vsel %vm280, %v1856, %v1857
    %v1859 = vrot.slane %v1846, 3
    %v1860 = vsel %vm280, %v1857, %v1859
    %v1861 = vrot.slane %v1847, 3
    %v1862 = vrot.slane %v1848, 3
    %v1863 = vsel %vm280, %v1861, %v1862
    %v1864 = vrot.slane %v1849, 3
    %v1865 = vsel %vm280, %v1862, %v1864
    %1866 = vrot.lane.b32.xlu0 %v1858, 125
    %v1867 = vpop.permute.xlu0 %1866
    %1868 = vrot.lane.b32.xlu0 %v1860, 125
    %v1869 = vpop.permute.xlu0 %1868
    %1870 = vrot.lane.b32.xlu0 %v1863, 125
    %v1871 = vpop.permute.xlu0 %1870
    %1872 = vrot.lane.b32.xlu0 %v1865, 125
    %v1873 = vpop.permute.xlu0 %1872
    %v1878 = vadd.f32 %v1838, %v1867
    %v1879 = vadd.f32 %v1839, %v1869
    %v1880 = vadd.f32 %v1840, %v1871
    %v1881 = vadd.f32 %v1841, %v1873
    %s1882 = sld [smem:[#allocation3 + $0x1f]]
    %v1883 = vstv %s1882
    %v1884 = vmul.f32 %v1883, %v104
    %v1885 = vmul.f32 %v1883, %v105
    %v1886 = vmul.f32 %v1883, %v106
    %v1887 = vmul.f32 %v1883, %v110
    %v1888 = vmul.f32 %v1883, %v111
    %v1889 = vmul.f32 %v1883, %v112
    %v1896 = vrot.slane %v1884, 4
    %v1897 = vrot.slane %v1885, 4
    %v1898 = vsel %vm345, %v1896, %v1897
    %v1899 = vrot.slane %v1886, 4
    %v1900 = vsel %vm345, %v1897, %v1899
    %v1901 = vrot.slane %v1887, 4
    %v1902 = vrot.slane %v1888, 4
    %v1903 = vsel %vm345, %v1901, %v1902
    %v1904 = vrot.slane %v1889, 4
    %v1905 = vsel %vm345, %v1902, %v1904
    %1906 = vrot.lane.b32.xlu0 %v1898, 125
    %v1907 = vpop.permute.xlu0 %1906
    %1908 = vrot.lane.b32.xlu0 %v1900, 125
    %v1909 = vpop.permute.xlu0 %1908
    %1910 = vrot.lane.b32.xlu0 %v1903, 125
    %v1911 = vpop.permute.xlu0 %1910
    %1912 = vrot.lane.b32.xlu0 %v1905, 125
    %v1913 = vpop.permute.xlu0 %1912
    %v1918 = vadd.f32 %v1878, %v1907
    %v1919 = vadd.f32 %v1879, %v1909
    %v1920 = vadd.f32 %v1880, %v1911
    %v1921 = vadd.f32 %v1881, %v1913
    %s1922 = sld [smem:[#allocation3 + $0x50]]
    %v1923 = vstv %s1922
    %v1924 = vmul.f32 %v1923, %v107
    %v1925 = vmul.f32 %v1923, %v108
    %v1926 = vmul.f32 %v1923, %v109
    %v1927 = vmul.f32 %v1923, %v113
    %v1928 = vmul.f32 %v1923, %v114
    %v1929 = vmul.f32 %v1923, %v115
    %v1936 = vrot.slane %v1924, 4
    %v1937 = vrot.slane %v1925, 4
    %v1938 = vsel %vm345, %v1936, %v1937
    %v1939 = vrot.slane %v1926, 4
    %v1940 = vsel %vm345, %v1937, %v1939
    %v1941 = vrot.slane %v1927, 4
    %v1942 = vrot.slane %v1928, 4
    %v1943 = vsel %vm345, %v1941, %v1942
    %v1944 = vrot.slane %v1929, 4
    %v1945 = vsel %vm345, %v1942, %v1944
    %1946 = vrot.lane.b32.xlu0 %v1938, 125
    %v1947 = vpop.permute.xlu0 %1946
    %1948 = vrot.lane.b32.xlu0 %v1940, 125
    %v1949 = vpop.permute.xlu0 %1948
    %1950 = vrot.lane.b32.xlu0 %v1943, 125
    %v1951 = vpop.permute.xlu0 %1950
    %1952 = vrot.lane.b32.xlu0 %v1945, 125
    %v1953 = vpop.permute.xlu0 %1952
    %v1958 = vadd.f32 %v1918, %v1947
    %v1959 = vadd.f32 %v1919, %v1949
    %v1960 = vadd.f32 %v1920, %v1951
    %v1961 = vadd.f32 %v1921, %v1953
    %s1962 = sld [smem:[#allocation3 + $0x26]]
    %v1963 = vstv %s1962
    %v1964 = vmul.f32 %v1963, %v104
    %v1965 = vmul.f32 %v1963, %v105
    %v1966 = vmul.f32 %v1963, %v106
    %v1967 = vmul.f32 %v1963, %v110
    %v1968 = vmul.f32 %v1963, %v111
    %v1969 = vmul.f32 %v1963, %v112
    %v1976 = vrot.slane %v1964, 5
    %v1977 = vrot.slane %v1965, 5
    %v1978 = vsel %vm410, %v1976, %v1977
    %v1979 = vrot.slane %v1966, 5
    %v1980 = vsel %vm410, %v1977, %v1979
    %v1981 = vrot.slane %v1967, 5
    %v1982 = vrot.slane %v1968, 5
    %v1983 = vsel %vm410, %v1981, %v1982
    %v1984 = vrot.slane %v1969, 5
    %v1985 = vsel %vm410, %v1982, %v1984
    %1986 = vrot.lane.b32.xlu0 %v1978, 125
    %v1987 = vpop.permute.xlu0 %1986
    %1988 = vrot.lane.b32.xlu0 %v1980, 125
    %v1989 = vpop.permute.xlu0 %1988
    %1990 = vrot.lane.b32.xlu0 %v1983, 125
    %v1991 = vpop.permute.xlu0 %1990
    %1992 = vrot.lane.b32.xlu0 %v1985, 125
    %v1993 = vpop.permute.xlu0 %1992
    %v1998 = vadd.f32 %v1958, %v1987
    %v1999 = vadd.f32 %v1959, %v1989
    %v2000 = vadd.f32 %v1960, %v1991
    %v2001 = vadd.f32 %v1961, %v1993
    %s2002 = sld [smem:[#allocation3 + $0x57]]
    %v2003 = vstv %s2002
    %v2004 = vmul.f32 %v2003, %v107
    %v2005 = vmul.f32 %v2003, %v108
    %v2006 = vmul.f32 %v2003, %v109
    %v2007 = vmul.f32 %v2003, %v113
    %v2008 = vmul.f32 %v2003, %v114
    %v2009 = vmul.f32 %v2003, %v115
    %v2016 = vrot.slane %v2004, 5
    %v2017 = vrot.slane %v2005, 5
    %v2018 = vsel %vm410, %v2016, %v2017
    %v2019 = vrot.slane %v2006, 5
    %v2020 = vsel %vm410, %v2017, %v2019
    %v2021 = vrot.slane %v2007, 5
    %v2022 = vrot.slane %v2008, 5
    %v2023 = vsel %vm410, %v2021, %v2022
    %v2024 = vrot.slane %v2009, 5
    %v2025 = vsel %vm410, %v2022, %v2024
    %2026 = vrot.lane.b32.xlu0 %v2018, 125
    %v2027 = vpop.permute.xlu0 %2026
    %2028 = vrot.lane.b32.xlu0 %v2020, 125
    %v2029 = vpop.permute.xlu0 %2028
    %2030 = vrot.lane.b32.xlu0 %v2023, 125
    %v2031 = vpop.permute.xlu0 %2030
    %2032 = vrot.lane.b32.xlu0 %v2025, 125
    %v2033 = vpop.permute.xlu0 %2032
    %v2038 = vadd.f32 %v1998, %v2027
    %v2039 = vadd.f32 %v1999, %v2029
    %v2040 = vadd.f32 %v2000, %v2031
    %v2041 = vadd.f32 %v2001, %v2033
    %s2042 = sld [smem:[#allocation3 + $0x2d]]
    %v2043 = vstv %s2042
    %v2044 = vmul.f32 %v2043, %v104
    %v2045 = vmul.f32 %v2043, %v105
    %v2046 = vmul.f32 %v2043, %v106
    %v2047 = vmul.f32 %v2043, %v110
    %v2048 = vmul.f32 %v2043, %v111
    %v2049 = vmul.f32 %v2043, %v112
    %v2056 = vrot.slane %v2044, 6
    %v2057 = vrot.slane %v2045, 6
    %v2058 = vsel %vm475, %v2056, %v2057
    %v2059 = vrot.slane %v2046, 6
    %v2060 = vsel %vm475, %v2057, %v2059
    %v2061 = vrot.slane %v2047, 6
    %v2062 = vrot.slane %v2048, 6
    %v2063 = vsel %vm475, %v2061, %v2062
    %v2064 = vrot.slane %v2049, 6
    %v2065 = vsel %vm475, %v2062, %v2064
    %2066 = vrot.lane.b32.xlu0 %v2058, 125
    %v2067 = vpop.permute.xlu0 %2066
    %2068 = vrot.lane.b32.xlu0 %v2060, 125
    %v2069 = vpop.permute.xlu0 %2068
    %2070 = vrot.lane.b32.xlu0 %v2063, 125
    %v2071 = vpop.permute.xlu0 %2070
    %2072 = vrot.lane.b32.xlu0 %v2065, 125
    %v2073 = vpop.permute.xlu0 %2072
    %v2078 = vadd.f32 %v2038, %v2067
    %v2079 = vadd.f32 %v2039, %v2069
    %v2080 = vadd.f32 %v2040, %v2071
    %v2081 = vadd.f32 %v2041, %v2073
    %s2082 = sld [smem:[#allocation3 + $0x5e]]
    %v2083 = vstv %s2082
    %v2084 = vmul.f32 %v2083, %v107
    %v2085 = vmul.f32 %v2083, %v108
    %v2086 = vmul.f32 %v2083, %v109
    %v2087 = vmul.f32 %v2083, %v113
    %v2088 = vmul.f32 %v2083, %v114
    %v2089 = vmul.f32 %v2083, %v115
    %v2096 = vrot.slane %v2084, 6
    %v2097 = vrot.slane %v2085, 6
    %v2098 = vsel %vm475, %v2096, %v2097
    %v2099 = vrot.slane %v2086, 6
    %v2100 = vsel %vm475, %v2097, %v2099
    %v2101 = vrot.slane %v2087, 6
    %v2102 = vrot.slane %v2088, 6
    %v2103 = vsel %vm475, %v2101, %v2102
    %v2104 = vrot.slane %v2089, 6
    %v2105 = vsel %vm475, %v2102, %v2104
    %2106 = vrot.lane.b32.xlu0 %v2098, 125
    %v2107 = vpop.permute.xlu0 %2106
    %2108 = vrot.lane.b32.xlu0 %v2100, 125
    %v2109 = vpop.permute.xlu0 %2108
    %2110 = vrot.lane.b32.xlu0 %v2103, 125
    %v2111 = vpop.permute.xlu0 %2110
    %2112 = vrot.lane.b32.xlu0 %v2105, 125
    %v2113 = vpop.permute.xlu0 %2112
    %v2118 = vadd.f32 %v2078, %v2107
    %v2119 = vadd.f32 %v2079, %v2109
    %v2120 = vadd.f32 %v2080, %v2111
    %v2121 = vadd.f32 %v2081, %v2113
    %s2122 = sld [smem:[#allocation3 + $0x4]]
    %v2123 = vstv %s2122
    %v2124 = vmul.f32 %v2123, %v104
    %v2125 = vmul.f32 %v2123, %v105
    %v2126 = vmul.f32 %v2123, %v110
    %v2127 = vmul.f32 %v2123, %v111
    %2132 = vrot.lane.b32.xlu0 %v2124, 124
    %v2133 = vpop.permute.xlu0 %2132
    %2134 = vrot.lane.b32.xlu0 %v2125, 124
    %v2135 = vpop.permute.xlu0 %2134
    %2136 = vrot.lane.b32.xlu0 %v2126, 124
    %v2137 = vpop.permute.xlu0 %2136
    %2138 = vrot.lane.b32.xlu0 %v2127, 124
    %v2139 = vpop.permute.xlu0 %2138
    %v2144 = vadd.f32 %v2118, %v2133
    %v2145 = vadd.f32 %v2119, %v2135
    %v2146 = vadd.f32 %v2120, %v2137
    %v2147 = vadd.f32 %v2121, %v2139
    %s2148 = sld [smem:[#allocation3 + $0x35]]
    %v2149 = vstv %s2148
    %v2150 = vmul.f32 %v2149, %v107
    %v2151 = vmul.f32 %v2149, %v108
    %v2152 = vmul.f32 %v2149, %v113
    %v2153 = vmul.f32 %v2149, %v114
    %2158 = vrot.lane.b32.xlu0 %v2150, 124
    %v2159 = vpop.permute.xlu0 %2158
    %2160 = vrot.lane.b32.xlu0 %v2151, 124
    %v2161 = vpop.permute.xlu0 %2160
    %2162 = vrot.lane.b32.xlu0 %v2152, 124
    %v2163 = vpop.permute.xlu0 %2162
    %2164 = vrot.lane.b32.xlu0 %v2153, 124
    %v2165 = vpop.permute.xlu0 %2164
    %v2170 = vadd.f32 %v2144, %v2159
    %v2171 = vadd.f32 %v2145, %v2161
    %v2172 = vadd.f32 %v2146, %v2163
    %v2173 = vadd.f32 %v2147, %v2165
    %s2174 = sld [smem:[#allocation3 + $0xb]]
    %v2175 = vstv %s2174
    %v2176 = vmul.f32 %v2175, %v104
    %v2177 = vmul.f32 %v2175, %v105
    %v2178 = vmul.f32 %v2175, %v106
    %v2179 = vmul.f32 %v2175, %v110
    %v2180 = vmul.f32 %v2175, %v111
    %v2181 = vmul.f32 %v2175, %v112
    %v2188 = vrot.slane %v2176, 1
    %v2189 = vrot.slane %v2177, 1
    %v2190 = vsel %vm150, %v2188, %v2189
    %v2191 = vrot.slane %v2178, 1
    %v2192 = vsel %vm150, %v2189, %v2191
    %v2193 = vrot.slane %v2179, 1
    %v2194 = vrot.slane %v2180, 1
    %v2195 = vsel %vm150, %v2193, %v2194
    %v2196 = vrot.slane %v2181, 1
    %v2197 = vsel %vm150, %v2194, %v2196
    %2198 = vrot.lane.b32.xlu0 %v2190, 124
    %v2199 = vpop.permute.xlu0 %2198
    %2200 = vrot.lane.b32.xlu0 %v2192, 124
    %v2201 = vpop.permute.xlu0 %2200
    %2202 = vrot.lane.b32.xlu0 %v2195, 124
    %v2203 = vpop.permute.xlu0 %2202
    %2204 = vrot.lane.b32.xlu0 %v2197, 124
    %v2205 = vpop.permute.xlu0 %2204
    %v2210 = vadd.f32 %v2170, %v2199
    %v2211 = vadd.f32 %v2171, %v2201
    %v2212 = vadd.f32 %v2172, %v2203
    %v2213 = vadd.f32 %v2173, %v2205
    %s2214 = sld [smem:[#allocation3 + $0x3c]]
    %v2215 = vstv %s2214
    %v2216 = vmul.f32 %v2215, %v107
    %v2217 = vmul.f32 %v2215, %v108
    %v2218 = vmul.f32 %v2215, %v109
    %v2219 = vmul.f32 %v2215, %v113
    %v2220 = vmul.f32 %v2215, %v114
    %v2221 = vmul.f32 %v2215, %v115
    %v2228 = vrot.slane %v2216, 1
    %v2229 = vrot.slane %v2217, 1
    %v2230 = vsel %vm150, %v2228, %v2229
    %v2231 = vrot.slane %v2218, 1
    %v2232 = vsel %vm150, %v2229, %v2231
    %v2233 = vrot.slane %v2219, 1
    %v2234 = vrot.slane %v2220, 1
    %v2235 = vsel %vm150, %v2233, %v2234
    %v2236 = vrot.slane %v2221, 1
    %v2237 = vsel %vm150, %v2234, %v2236
    %2238 = vrot.lane.b32.xlu0 %v2230, 124
    %v2239 = vpop.permute.xlu0 %2238
    %2240 = vrot.lane.b32.xlu0 %v2232, 124
    %v2241 = vpop.permute.xlu0 %2240
    %2242 = vrot.lane.b32.xlu0 %v2235, 124
    %v2243 = vpop.permute.xlu0 %2242
    %2244 = vrot.lane.b32.xlu0 %v2237, 124
    %v2245 = vpop.permute.xlu0 %2244
    %v2250 = vadd.f32 %v2210, %v2239
    %v2251 = vadd.f32 %v2211, %v2241
    %v2252 = vadd.f32 %v2212, %v2243
    %v2253 = vadd.f32 %v2213, %v2245
    %s2254 = sld [smem:[#allocation3 + $0x12]]
    %v2255 = vstv %s2254
    %v2256 = vmul.f32 %v2255, %v104
    %v2257 = vmul.f32 %v2255, %v105
    %v2258 = vmul.f32 %v2255, %v106
    %v2259 = vmul.f32 %v2255, %v110
    %v2260 = vmul.f32 %v2255, %v111
    %v2261 = vmul.f32 %v2255, %v112
    %v2268 = vrot.slane %v2256, 2
    %v2269 = vrot.slane %v2257, 2
    %v2270 = vsel %vm215, %v2268, %v2269
    %v2271 = vrot.slane %v2258, 2
    %v2272 = vsel %vm215, %v2269, %v2271
    %v2273 = vrot.slane %v2259, 2
    %v2274 = vrot.slane %v2260, 2
    %v2275 = vsel %vm215, %v2273, %v2274
    %v2276 = vrot.slane %v2261, 2
    %v2277 = vsel %vm215, %v2274, %v2276
    %2278 = vrot.lane.b32.xlu0 %v2270, 124
    %v2279 = vpop.permute.xlu0 %2278
    %2280 = vrot.lane.b32.xlu0 %v2272, 124
    %v2281 = vpop.permute.xlu0 %2280
    %2282 = vrot.lane.b32.xlu0 %v2275, 124
    %v2283 = vpop.permute.xlu0 %2282
    %2284 = vrot.lane.b32.xlu0 %v2277, 124
    %v2285 = vpop.permute.xlu0 %2284
    %v2290 = vadd.f32 %v2250, %v2279
    %v2291 = vadd.f32 %v2251, %v2281
    %v2292 = vadd.f32 %v2252, %v2283
    %v2293 = vadd.f32 %v2253, %v2285
    %s2294 = sld [smem:[#allocation3 + $0x43]]
    %v2295 = vstv %s2294
    %v2296 = vmul.f32 %v2295, %v107
    %v2297 = vmul.f32 %v2295, %v108
    %v2298 = vmul.f32 %v2295, %v109
    %v2299 = vmul.f32 %v2295, %v113
    %v2300 = vmul.f32 %v2295, %v114
    %v2301 = vmul.f32 %v2295, %v115
    %v2308 = vrot.slane %v2296, 2
    %v2309 = vrot.slane %v2297, 2
    %v2310 = vsel %vm215, %v2308, %v2309
    %v2311 = vrot.slane %v2298, 2
    %v2312 = vsel %vm215, %v2309, %v2311
    %v2313 = vrot.slane %v2299, 2
    %v2314 = vrot.slane %v2300, 2
    %v2315 = vsel %vm215, %v2313, %v2314
    %v2316 = vrot.slane %v2301, 2
    %v2317 = vsel %vm215, %v2314, %v2316
    %2318 = vrot.lane.b32.xlu0 %v2310, 124
    %v2319 = vpop.permute.xlu0 %2318
    %2320 = vrot.lane.b32.xlu0 %v2312, 124
    %v2321 = vpop.permute.xlu0 %2320
    %2322 = vrot.lane.b32.xlu0 %v2315, 124
    %v2323 = vpop.permute.xlu0 %2322
    %2324 = vrot.lane.b32.xlu0 %v2317, 124
    %v2325 = vpop.permute.xlu0 %2324
    %v2330 = vadd.f32 %v2290, %v2319
    %v2331 = vadd.f32 %v2291, %v2321
    %v2332 = vadd.f32 %v2292, %v2323
    %v2333 = vadd.f32 %v2293, %v2325
    %s2334 = sld [smem:[#allocation3 + $0x19]]
    %v2335 = vstv %s2334
    %v2336 = vmul.f32 %v2335, %v104
    %v2337 = vmul.f32 %v2335, %v105
    %v2338 = vmul.f32 %v2335, %v106
    %v2339 = vmul.f32 %v2335, %v110
    %v2340 = vmul.f32 %v2335, %v111
    %v2341 = vmul.f32 %v2335, %v112
    %v2348 = vrot.slane %v2336, 3
    %v2349 = vrot.slane %v2337, 3
    %v2350 = vsel %vm280, %v2348, %v2349
    %v2351 = vrot.slane %v2338, 3
    %v2352 = vsel %vm280, %v2349, %v2351
    %v2353 = vrot.slane %v2339, 3
    %v2354 = vrot.slane %v2340, 3
    %v2355 = vsel %vm280, %v2353, %v2354
    %v2356 = vrot.slane %v2341, 3
    %v2357 = vsel %vm280, %v2354, %v2356
    %2358 = vrot.lane.b32.xlu0 %v2350, 124
    %v2359 = vpop.permute.xlu0 %2358
    %2360 = vrot.lane.b32.xlu0 %v2352, 124
    %v2361 = vpop.permute.xlu0 %2360
    %2362 = vrot.lane.b32.xlu0 %v2355, 124
    %v2363 = vpop.permute.xlu0 %2362
    %2364 = vrot.lane.b32.xlu0 %v2357, 124
    %v2365 = vpop.permute.xlu0 %2364
    %v2370 = vadd.f32 %v2330, %v2359
    %v2371 = vadd.f32 %v2331, %v2361
    %v2372 = vadd.f32 %v2332, %v2363
    %v2373 = vadd.f32 %v2333, %v2365
    %s2374 = sld [smem:[#allocation3 + $0x4a]]
    %v2375 = vstv %s2374
    %v2376 = vmul.f32 %v2375, %v107
    %v2377 = vmul.f32 %v2375, %v108
    %v2378 = vmul.f32 %v2375, %v109
    %v2379 = vmul.f32 %v2375, %v113
    %v2380 = vmul.f32 %v2375, %v114
    %v2381 = vmul.f32 %v2375, %v115
    %v2388 = vrot.slane %v2376, 3
    %v2389 = vrot.slane %v2377, 3
    %v2390 = vsel %vm280, %v2388, %v2389
    %v2391 = vrot.slane %v2378, 3
    %v2392 = vsel %vm280, %v2389, %v2391
    %v2393 = vrot.slane %v2379, 3
    %v2394 = vrot.slane %v2380, 3
    %v2395 = vsel %vm280, %v2393, %v2394
    %v2396 = vrot.slane %v2381, 3
    %v2397 = vsel %vm280, %v2394, %v2396
    %2398 = vrot.lane.b32.xlu0 %v2390, 124
    %v2399 = vpop.permute.xlu0 %2398
    %2400 = vrot.lane.b32.xlu0 %v2392, 124
    %v2401 = vpop.permute.xlu0 %2400
    %2402 = vrot.lane.b32.xlu0 %v2395, 124
    %v2403 = vpop.permute.xlu0 %2402
    %2404 = vrot.lane.b32.xlu0 %v2397, 124
    %v2405 = vpop.permute.xlu0 %2404
    %v2410 = vadd.f32 %v2370, %v2399
    %v2411 = vadd.f32 %v2371, %v2401
    %v2412 = vadd.f32 %v2372, %v2403
    %v2413 = vadd.f32 %v2373, %v2405
    %s2414 = sld [smem:[#allocation3 + $0x20]]
    %v2415 = vstv %s2414
    %v2416 = vmul.f32 %v2415, %v104
    %v2417 = vmul.f32 %v2415, %v105
    %v2418 = vmul.f32 %v2415, %v106
    %v2419 = vmul.f32 %v2415, %v110
    %v2420 = vmul.f32 %v2415, %v111
    %v2421 = vmul.f32 %v2415, %v112
    %v2428 = vrot.slane %v2416, 4
    %v2429 = vrot.slane %v2417, 4
    %v2430 = vsel %vm345, %v2428, %v2429
    %v2431 = vrot.slane %v2418, 4
    %v2432 = vsel %vm345, %v2429, %v2431
    %v2433 = vrot.slane %v2419, 4
    %v2434 = vrot.slane %v2420, 4
    %v2435 = vsel %vm345, %v2433, %v2434
    %v2436 = vrot.slane %v2421, 4
    %v2437 = vsel %vm345, %v2434, %v2436
    %2438 = vrot.lane.b32.xlu0 %v2430, 124
    %v2439 = vpop.permute.xlu0 %2438
    %2440 = vrot.lane.b32.xlu0 %v2432, 124
    %v2441 = vpop.permute.xlu0 %2440
    %2442 = vrot.lane.b32.xlu0 %v2435, 124
    %v2443 = vpop.permute.xlu0 %2442
    %2444 = vrot.lane.b32.xlu0 %v2437, 124
    %v2445 = vpop.permute.xlu0 %2444
    %v2450 = vadd.f32 %v2410, %v2439
    %v2451 = vadd.f32 %v2411, %v2441
    %v2452 = vadd.f32 %v2412, %v2443
    %v2453 = vadd.f32 %v2413, %v2445
    %s2454 = sld [smem:[#allocation3 + $0x51]]
    %v2455 = vstv %s2454
    %v2456 = vmul.f32 %v2455, %v107
    %v2457 = vmul.f32 %v2455, %v108
    %v2458 = vmul.f32 %v2455, %v109
    %v2459 = vmul.f32 %v2455, %v113
    %v2460 = vmul.f32 %v2455, %v114
    %v2461 = vmul.f32 %v2455, %v115
    %v2468 = vrot.slane %v2456, 4
    %v2469 = vrot.slane %v2457, 4
    %v2470 = vsel %vm345, %v2468, %v2469
    %v2471 = vrot.slane %v2458, 4
    %v2472 = vsel %vm345, %v2469, %v2471
    %v2473 = vrot.slane %v2459, 4
    %v2474 = vrot.slane %v2460, 4
    %v2475 = vsel %vm345, %v2473, %v2474
    %v2476 = vrot.slane %v2461, 4
    %v2477 = vsel %vm345, %v2474, %v2476
    %2478 = vrot.lane.b32.xlu0 %v2470, 124
    %v2479 = vpop.permute.xlu0 %2478
    %2480 = vrot.lane.b32.xlu0 %v2472, 124
    %v2481 = vpop.permute.xlu0 %2480
    %2482 = vrot.lane.b32.xlu0 %v2475, 124
    %v2483 = vpop.permute.xlu0 %2482
    %2484 = vrot.lane.b32.xlu0 %v2477, 124
    %v2485 = vpop.permute.xlu0 %2484
    %v2490 = vadd.f32 %v2450, %v2479
    %v2491 = vadd.f32 %v2451, %v2481
    %v2492 = vadd.f32 %v2452, %v2483
    %v2493 = vadd.f32 %v2453, %v2485
    %s2494 = sld [smem:[#allocation3 + $0x27]]
    %v2495 = vstv %s2494
    %v2496 = vmul.f32 %v2495, %v104
    %v2497 = vmul.f32 %v2495, %v105
    %v2498 = vmul.f32 %v2495, %v106
    %v2499 = vmul.f32 %v2495, %v110
    %v2500 = vmul.f32 %v2495, %v111
    %v2501 = vmul.f32 %v2495, %v112
    %v2508 = vrot.slane %v2496, 5
    %v2509 = vrot.slane %v2497, 5
    %v2510 = vsel %vm410, %v2508, %v2509
    %v2511 = vrot.slane %v2498, 5
    %v2512 = vsel %vm410, %v2509, %v2511
    %v2513 = vrot.slane %v2499, 5
    %v2514 = vrot.slane %v2500, 5
    %v2515 = vsel %vm410, %v2513, %v2514
    %v2516 = vrot.slane %v2501, 5
    %v2517 = vsel %vm410, %v2514, %v2516
    %2518 = vrot.lane.b32.xlu0 %v2510, 124
    %v2519 = vpop.permute.xlu0 %2518
    %2520 = vrot.lane.b32.xlu0 %v2512, 124
    %v2521 = vpop.permute.xlu0 %2520
    %2522 = vrot.lane.b32.xlu0 %v2515, 124
    %v2523 = vpop.permute.xlu0 %2522
    %2524 = vrot.lane.b32.xlu0 %v2517, 124
    %v2525 = vpop.permute.xlu0 %2524
    %v2530 = vadd.f32 %v2490, %v2519
    %v2531 = vadd.f32 %v2491, %v2521
    %v2532 = vadd.f32 %v2492, %v2523
    %v2533 = vadd.f32 %v2493, %v2525
    %s2534 = sld [smem:[#allocation3 + $0x58]]
    %v2535 = vstv %s2534
    %v2536 = vmul.f32 %v2535, %v107
    %v2537 = vmul.f32 %v2535, %v108
    %v2538 = vmul.f32 %v2535, %v109
    %v2539 = vmul.f32 %v2535, %v113
    %v2540 = vmul.f32 %v2535, %v114
    %v2541 = vmul.f32 %v2535, %v115
    %v2548 = vrot.slane %v2536, 5
    %v2549 = vrot.slane %v2537, 5
    %v2550 = vsel %vm410, %v2548, %v2549
    %v2551 = vrot.slane %v2538, 5
    %v2552 = vsel %vm410, %v2549, %v2551
    %v2553 = vrot.slane %v2539, 5
    %v2554 = vrot.slane %v2540, 5
    %v2555 = vsel %vm410, %v2553, %v2554
    %v2556 = vrot.slane %v2541, 5
    %v2557 = vsel %vm410, %v2554, %v2556
    %2558 = vrot.lane.b32.xlu0 %v2550, 124
    %v2559 = vpop.permute.xlu0 %2558
    %2560 = vrot.lane.b32.xlu0 %v2552, 124
    %v2561 = vpop.permute.xlu0 %2560
    %2562 = vrot.lane.b32.xlu0 %v2555, 124
    %v2563 = vpop.permute.xlu0 %2562
    %2564 = vrot.lane.b32.xlu0 %v2557, 124
    %v2565 = vpop.permute.xlu0 %2564
    %v2570 = vadd.f32 %v2530, %v2559
    %v2571 = vadd.f32 %v2531, %v2561
    %v2572 = vadd.f32 %v2532, %v2563
    %v2573 = vadd.f32 %v2533, %v2565
    %s2574 = sld [smem:[#allocation3 + $0x2e]]
    %v2575 = vstv %s2574
    %v2576 = vmul.f32 %v2575, %v104
    %v2577 = vmul.f32 %v2575, %v105
    %v2578 = vmul.f32 %v2575, %v106
    %v2579 = vmul.f32 %v2575, %v110
    %v2580 = vmul.f32 %v2575, %v111
    %v2581 = vmul.f32 %v2575, %v112
    %v2588 = vrot.slane %v2576, 6
    %v2589 = vrot.slane %v2577, 6
    %v2590 = vsel %vm475, %v2588, %v2589
    %v2591 = vrot.slane %v2578, 6
    %v2592 = vsel %vm475, %v2589, %v2591
    %v2593 = vrot.slane %v2579, 6
    %v2594 = vrot.slane %v2580, 6
    %v2595 = vsel %vm475, %v2593, %v2594
    %v2596 = vrot.slane %v2581, 6
    %v2597 = vsel %vm475, %v2594, %v2596
    %2598 = vrot.lane.b32.xlu0 %v2590, 124
    %v2599 = vpop.permute.xlu0 %2598
    %2600 = vrot.lane.b32.xlu0 %v2592, 124
    %v2601 = vpop.permute.xlu0 %2600
    %2602 = vrot.lane.b32.xlu0 %v2595, 124
    %v2603 = vpop.permute.xlu0 %2602
    %2604 = vrot.lane.b32.xlu0 %v2597, 124
    %v2605 = vpop.permute.xlu0 %2604
    %v2610 = vadd.f32 %v2570, %v2599
    %v2611 = vadd.f32 %v2571, %v2601
    %v2612 = vadd.f32 %v2572, %v2603
    %v2613 = vadd.f32 %v2573, %v2605
    %s2614 = sld [smem:[#allocation3 + $0x5f]]
    %v2615 = vstv %s2614
    %v2616 = vmul.f32 %v2615, %v107
    %v2617 = vmul.f32 %v2615, %v108
    %v2618 = vmul.f32 %v2615, %v109
    %v2619 = vmul.f32 %v2615, %v113
    %v2620 = vmul.f32 %v2615, %v114
    %v2621 = vmul.f32 %v2615, %v115
    %v2628 = vrot.slane %v2616, 6
    %v2629 = vrot.slane %v2617, 6
    %v2630 = vsel %vm475, %v2628, %v2629
    %v2631 = vrot.slane %v2618, 6
    %v2632 = vsel %vm475, %v2629, %v2631
    %v2633 = vrot.slane %v2619, 6
    %v2634 = vrot.slane %v2620, 6
    %v2635 = vsel %vm475, %v2633, %v2634
    %v2636 = vrot.slane %v2621, 6
    %v2637 = vsel %vm475, %v2634, %v2636
    %2638 = vrot.lane.b32.xlu0 %v2630, 124
    %v2639 = vpop.permute.xlu0 %2638
    %2640 = vrot.lane.b32.xlu0 %v2632, 124
    %v2641 = vpop.permute.xlu0 %2640
    %2642 = vrot.lane.b32.xlu0 %v2635, 124
    %v2643 = vpop.permute.xlu0 %2642
    %2644 = vrot.lane.b32.xlu0 %v2637, 124
    %v2645 = vpop.permute.xlu0 %2644
    %v2650 = vadd.f32 %v2610, %v2639
    %v2651 = vadd.f32 %v2611, %v2641
    %v2652 = vadd.f32 %v2612, %v2643
    %v2653 = vadd.f32 %v2613, %v2645
    %s2654 = sld [smem:[#allocation3 + $0x5]]
    %v2655 = vstv %s2654
    %v2656 = vmul.f32 %v2655, %v104
    %v2657 = vmul.f32 %v2655, %v105
    %v2658 = vmul.f32 %v2655, %v110
    %v2659 = vmul.f32 %v2655, %v111
    %2664 = vrot.lane.b32.xlu0 %v2656, 123
    %v2665 = vpop.permute.xlu0 %2664
    %2666 = vrot.lane.b32.xlu0 %v2657, 123
    %v2667 = vpop.permute.xlu0 %2666
    %2668 = vrot.lane.b32.xlu0 %v2658, 123
    %v2669 = vpop.permute.xlu0 %2668
    %2670 = vrot.lane.b32.xlu0 %v2659, 123
    %v2671 = vpop.permute.xlu0 %2670
    %v2676 = vadd.f32 %v2650, %v2665
    %v2677 = vadd.f32 %v2651, %v2667
    %v2678 = vadd.f32 %v2652, %v2669
    %v2679 = vadd.f32 %v2653, %v2671
    %s2680 = sld [smem:[#allocation3 + $0x36]]
    %v2681 = vstv %s2680
    %v2682 = vmul.f32 %v2681, %v107
    %v2683 = vmul.f32 %v2681, %v108
    %v2684 = vmul.f32 %v2681, %v113
    %v2685 = vmul.f32 %v2681, %v114
    %2690 = vrot.lane.b32.xlu0 %v2682, 123
    %v2691 = vpop.permute.xlu0 %2690
    %2692 = vrot.lane.b32.xlu0 %v2683, 123
    %v2693 = vpop.permute.xlu0 %2692
    %2694 = vrot.lane.b32.xlu0 %v2684, 123
    %v2695 = vpop.permute.xlu0 %2694
    %2696 = vrot.lane.b32.xlu0 %v2685, 123
    %v2697 = vpop.permute.xlu0 %2696
    %v2702 = vadd.f32 %v2676, %v2691
    %v2703 = vadd.f32 %v2677, %v2693
    %v2704 = vadd.f32 %v2678, %v2695
    %v2705 = vadd.f32 %v2679, %v2697
    %s2706 = sld [smem:[#allocation3 + $0xc]]
    %v2707 = vstv %s2706
    %v2708 = vmul.f32 %v2707, %v104
    %v2709 = vmul.f32 %v2707, %v105
    %v2710 = vmul.f32 %v2707, %v106
    %v2711 = vmul.f32 %v2707, %v110
    %v2712 = vmul.f32 %v2707, %v111
    %v2713 = vmul.f32 %v2707, %v112
    %v2720 = vrot.slane %v2708, 1
    %v2721 = vrot.slane %v2709, 1
    %v2722 = vsel %vm150, %v2720, %v2721
    %v2723 = vrot.slane %v2710, 1
    %v2724 = vsel %vm150, %v2721, %v2723
    %v2725 = vrot.slane %v2711, 1
    %v2726 = vrot.slane %v2712, 1
    %v2727 = vsel %vm150, %v2725, %v2726
    %v2728 = vrot.slane %v2713, 1
    %v2729 = vsel %vm150, %v2726, %v2728
    %2730 = vrot.lane.b32.xlu0 %v2722, 123
    %v2731 = vpop.permute.xlu0 %2730
    %2732 = vrot.lane.b32.xlu0 %v2724, 123
    %v2733 = vpop.permute.xlu0 %2732
    %2734 = vrot.lane.b32.xlu0 %v2727, 123
    %v2735 = vpop.permute.xlu0 %2734
    %2736 = vrot.lane.b32.xlu0 %v2729, 123
    %v2737 = vpop.permute.xlu0 %2736
    %v2742 = vadd.f32 %v2702, %v2731
    %v2743 = vadd.f32 %v2703, %v2733
    %v2744 = vadd.f32 %v2704, %v2735
    %v2745 = vadd.f32 %v2705, %v2737
    %s2746 = sld [smem:[#allocation3 + $0x3d]]
    %v2747 = vstv %s2746
    %v2748 = vmul.f32 %v2747, %v107
    %v2749 = vmul.f32 %v2747, %v108
    %v2750 = vmul.f32 %v2747, %v109
    %v2751 = vmul.f32 %v2747, %v113
    %v2752 = vmul.f32 %v2747, %v114
    %v2753 = vmul.f32 %v2747, %v115
    %v2760 = vrot.slane %v2748, 1
    %v2761 = vrot.slane %v2749, 1
    %v2762 = vsel %vm150, %v2760, %v2761
    %v2763 = vrot.slane %v2750, 1
    %v2764 = vsel %vm150, %v2761, %v2763
    %v2765 = vrot.slane %v2751, 1
    %v2766 = vrot.slane %v2752, 1
    %v2767 = vsel %vm150, %v2765, %v2766
    %v2768 = vrot.slane %v2753, 1
    %v2769 = vsel %vm150, %v2766, %v2768
    %2770 = vrot.lane.b32.xlu0 %v2762, 123
    %v2771 = vpop.permute.xlu0 %2770
    %2772 = vrot.lane.b32.xlu0 %v2764, 123
    %v2773 = vpop.permute.xlu0 %2772
    %2774 = vrot.lane.b32.xlu0 %v2767, 123
    %v2775 = vpop.permute.xlu0 %2774
    %2776 = vrot.lane.b32.xlu0 %v2769, 123
    %v2777 = vpop.permute.xlu0 %2776
    %v2782 = vadd.f32 %v2742, %v2771
    %v2783 = vadd.f32 %v2743, %v2773
    %v2784 = vadd.f32 %v2744, %v2775
    %v2785 = vadd.f32 %v2745, %v2777
    %s2786 = sld [smem:[#allocation3 + $0x13]]
    %v2787 = vstv %s2786
    %v2788 = vmul.f32 %v2787, %v104
    %v2789 = vmul.f32 %v2787, %v105
    %v2790 = vmul.f32 %v2787, %v106
    %v2791 = vmul.f32 %v2787, %v110
    %v2792 = vmul.f32 %v2787, %v111
    %v2793 = vmul.f32 %v2787, %v112
    %v2800 = vrot.slane %v2788, 2
    %v2801 = vrot.slane %v2789, 2
    %v2802 = vsel %vm215, %v2800, %v2801
    %v2803 = vrot.slane %v2790, 2
    %v2804 = vsel %vm215, %v2801, %v2803
    %v2805 = vrot.slane %v2791, 2
    %v2806 = vrot.slane %v2792, 2
    %v2807 = vsel %vm215, %v2805, %v2806
    %v2808 = vrot.slane %v2793, 2
    %v2809 = vsel %vm215, %v2806, %v2808
    %2810 = vrot.lane.b32.xlu0 %v2802, 123
    %v2811 = vpop.permute.xlu0 %2810
    %2812 = vrot.lane.b32.xlu0 %v2804, 123
    %v2813 = vpop.permute.xlu0 %2812
    %2814 = vrot.lane.b32.xlu0 %v2807, 123
    %v2815 = vpop.permute.xlu0 %2814
    %2816 = vrot.lane.b32.xlu0 %v2809, 123
    %v2817 = vpop.permute.xlu0 %2816
    %v2822 = vadd.f32 %v2782, %v2811
    %v2823 = vadd.f32 %v2783, %v2813
    %v2824 = vadd.f32 %v2784, %v2815
    %v2825 = vadd.f32 %v2785, %v2817
    %s2826 = sld [smem:[#allocation3 + $0x44]]
    %v2827 = vstv %s2826
    %v2828 = vmul.f32 %v2827, %v107
    %v2829 = vmul.f32 %v2827, %v108
    %v2830 = vmul.f32 %v2827, %v109
    %v2831 = vmul.f32 %v2827, %v113
    %v2832 = vmul.f32 %v2827, %v114
    %v2833 = vmul.f32 %v2827, %v115
    %v2840 = vrot.slane %v2828, 2
    %v2841 = vrot.slane %v2829, 2
    %v2842 = vsel %vm215, %v2840, %v2841
    %v2843 = vrot.slane %v2830, 2
    %v2844 = vsel %vm215, %v2841, %v2843
    %v2845 = vrot.slane %v2831, 2
    %v2846 = vrot.slane %v2832, 2
    %v2847 = vsel %vm215, %v2845, %v2846
    %v2848 = vrot.slane %v2833, 2
    %v2849 = vsel %vm215, %v2846, %v2848
    %2850 = vrot.lane.b32.xlu0 %v2842, 123
    %v2851 = vpop.permute.xlu0 %2850
    %2852 = vrot.lane.b32.xlu0 %v2844, 123
    %v2853 = vpop.permute.xlu0 %2852
    %2854 = vrot.lane.b32.xlu0 %v2847, 123
    %v2855 = vpop.permute.xlu0 %2854
    %2856 = vrot.lane.b32.xlu0 %v2849, 123
    %v2857 = vpop.permute.xlu0 %2856
    %v2862 = vadd.f32 %v2822, %v2851
    %v2863 = vadd.f32 %v2823, %v2853
    %v2864 = vadd.f32 %v2824, %v2855
    %v2865 = vadd.f32 %v2825, %v2857
    %s2866 = sld [smem:[#allocation3 + $0x1a]]
    %v2867 = vstv %s2866
    %v2868 = vmul.f32 %v2867, %v104
    %v2869 = vmul.f32 %v2867, %v105
    %v2870 = vmul.f32 %v2867, %v106
    %v2871 = vmul.f32 %v2867, %v110
    %v2872 = vmul.f32 %v2867, %v111
    %v2873 = vmul.f32 %v2867, %v112
    %v2880 = vrot.slane %v2868, 3
    %v2881 = vrot.slane %v2869, 3
    %v2882 = vsel %vm280, %v2880, %v2881
    %v2883 = vrot.slane %v2870, 3
    %v2884 = vsel %vm280, %v2881, %v2883
    %v2885 = vrot.slane %v2871, 3
    %v2886 = vrot.slane %v2872, 3
    %v2887 = vsel %vm280, %v2885, %v2886
    %v2888 = vrot.slane %v2873, 3
    %v2889 = vsel %vm280, %v2886, %v2888
    %2890 = vrot.lane.b32.xlu0 %v2882, 123
    %v2891 = vpop.permute.xlu0 %2890
    %2892 = vrot.lane.b32.xlu0 %v2884, 123
    %v2893 = vpop.permute.xlu0 %2892
    %2894 = vrot.lane.b32.xlu0 %v2887, 123
    %v2895 = vpop.permute.xlu0 %2894
    %2896 = vrot.lane.b32.xlu0 %v2889, 123
    %v2897 = vpop.permute.xlu0 %2896
    %v2902 = vadd.f32 %v2862, %v2891
    %v2903 = vadd.f32 %v2863, %v2893
    %v2904 = vadd.f32 %v2864, %v2895
    %v2905 = vadd.f32 %v2865, %v2897
    %s2906 = sld [smem:[#allocation3 + $0x4b]]
    %v2907 = vstv %s2906
    %v2908 = vmul.f32 %v2907, %v107
    %v2909 = vmul.f32 %v2907, %v108
    %v2910 = vmul.f32 %v2907, %v109
    %v2911 = vmul.f32 %v2907, %v113
    %v2912 = vmul.f32 %v2907, %v114
    %v2913 = vmul.f32 %v2907, %v115
    %v2920 = vrot.slane %v2908, 3
    %v2921 = vrot.slane %v2909, 3
    %v2922 = vsel %vm280, %v2920, %v2921
    %v2923 = vrot.slane %v2910, 3
    %v2924 = vsel %vm280, %v2921, %v2923
    %v2925 = vrot.slane %v2911, 3
    %v2926 = vrot.slane %v2912, 3
    %v2927 = vsel %vm280, %v2925, %v2926
    %v2928 = vrot.slane %v2913, 3
    %v2929 = vsel %vm280, %v2926, %v2928
    %2930 = vrot.lane.b32.xlu0 %v2922, 123
    %v2931 = vpop.permute.xlu0 %2930
    %2932 = vrot.lane.b32.xlu0 %v2924, 123
    %v2933 = vpop.permute.xlu0 %2932
    %2934 = vrot.lane.b32.xlu0 %v2927, 123
    %v2935 = vpop.permute.xlu0 %2934
    %2936 = vrot.lane.b32.xlu0 %v2929, 123
    %v2937 = vpop.permute.xlu0 %2936
    %v2942 = vadd.f32 %v2902, %v2931
    %v2943 = vadd.f32 %v2903, %v2933
    %v2944 = vadd.f32 %v2904, %v2935
    %v2945 = vadd.f32 %v2905, %v2937
    %s2946 = sld [smem:[#allocation3 + $0x21]]
    %v2947 = vstv %s2946
    %v2948 = vmul.f32 %v2947, %v104
    %v2949 = vmul.f32 %v2947, %v105
    %v2950 = vmul.f32 %v2947, %v106
    %v2951 = vmul.f32 %v2947, %v110
    %v2952 = vmul.f32 %v2947, %v111
    %v2953 = vmul.f32 %v2947, %v112
    %v2960 = vrot.slane %v2948, 4
    %v2961 = vrot.slane %v2949, 4
    %v2962 = vsel %vm345, %v2960, %v2961
    %v2963 = vrot.slane %v2950, 4
    %v2964 = vsel %vm345, %v2961, %v2963
    %v2965 = vrot.slane %v2951, 4
    %v2966 = vrot.slane %v2952, 4
    %v2967 = vsel %vm345, %v2965, %v2966
    %v2968 = vrot.slane %v2953, 4
    %v2969 = vsel %vm345, %v2966, %v2968
    %2970 = vrot.lane.b32.xlu0 %v2962, 123
    %v2971 = vpop.permute.xlu0 %2970
    %2972 = vrot.lane.b32.xlu0 %v2964, 123
    %v2973 = vpop.permute.xlu0 %2972
    %2974 = vrot.lane.b32.xlu0 %v2967, 123
    %v2975 = vpop.permute.xlu0 %2974
    %2976 = vrot.lane.b32.xlu0 %v2969, 123
    %v2977 = vpop.permute.xlu0 %2976
    %v2982 = vadd.f32 %v2942, %v2971
    %v2983 = vadd.f32 %v2943, %v2973
    %v2984 = vadd.f32 %v2944, %v2975
    %v2985 = vadd.f32 %v2945, %v2977
    %s2986 = sld [smem:[#allocation3 + $0x52]]
    %v2987 = vstv %s2986
    %v2988 = vmul.f32 %v2987, %v107
    %v2989 = vmul.f32 %v2987, %v108
    %v2990 = vmul.f32 %v2987, %v109
    %v2991 = vmul.f32 %v2987, %v113
    %v2992 = vmul.f32 %v2987, %v114
    %v2993 = vmul.f32 %v2987, %v115
    %v3000 = vrot.slane %v2988, 4
    %v3001 = vrot.slane %v2989, 4
    %v3002 = vsel %vm345, %v3000, %v3001
    %v3003 = vrot.slane %v2990, 4
    %v3004 = vsel %vm345, %v3001, %v3003
    %v3005 = vrot.slane %v2991, 4
    %v3006 = vrot.slane %v2992, 4
    %v3007 = vsel %vm345, %v3005, %v3006
    %v3008 = vrot.slane %v2993, 4
    %v3009 = vsel %vm345, %v3006, %v3008
    %3010 = vrot.lane.b32.xlu0 %v3002, 123
    %v3011 = vpop.permute.xlu0 %3010
    %3012 = vrot.lane.b32.xlu0 %v3004, 123
    %v3013 = vpop.permute.xlu0 %3012
    %3014 = vrot.lane.b32.xlu0 %v3007, 123
    %v3015 = vpop.permute.xlu0 %3014
    %3016 = vrot.lane.b32.xlu0 %v3009, 123
    %v3017 = vpop.permute.xlu0 %3016
    %v3022 = vadd.f32 %v2982, %v3011
    %v3023 = vadd.f32 %v2983, %v3013
    %v3024 = vadd.f32 %v2984, %v3015
    %v3025 = vadd.f32 %v2985, %v3017
    %s3026 = sld [smem:[#allocation3 + $0x28]]
    %v3027 = vstv %s3026
    %v3028 = vmul.f32 %v3027, %v104
    %v3029 = vmul.f32 %v3027, %v105
    %v3030 = vmul.f32 %v3027, %v106
    %v3031 = vmul.f32 %v3027, %v110
    %v3032 = vmul.f32 %v3027, %v111
    %v3033 = vmul.f32 %v3027, %v112
    %v3040 = vrot.slane %v3028, 5
    %v3041 = vrot.slane %v3029, 5
    %v3042 = vsel %vm410, %v3040, %v3041
    %v3043 = vrot.slane %v3030, 5
    %v3044 = vsel %vm410, %v3041, %v3043
    %v3045 = vrot.slane %v3031, 5
    %v3046 = vrot.slane %v3032, 5
    %v3047 = vsel %vm410, %v3045, %v3046
    %v3048 = vrot.slane %v3033, 5
    %v3049 = vsel %vm410, %v3046, %v3048
    %3050 = vrot.lane.b32.xlu0 %v3042, 123
    %v3051 = vpop.permute.xlu0 %3050
    %3052 = vrot.lane.b32.xlu0 %v3044, 123
    %v3053 = vpop.permute.xlu0 %3052
    %3054 = vrot.lane.b32.xlu0 %v3047, 123
    %v3055 = vpop.permute.xlu0 %3054
    %3056 = vrot.lane.b32.xlu0 %v3049, 123
    %v3057 = vpop.permute.xlu0 %3056
    %v3062 = vadd.f32 %v3022, %v3051
    %v3063 = vadd.f32 %v3023, %v3053
    %v3064 = vadd.f32 %v3024, %v3055
    %v3065 = vadd.f32 %v3025, %v3057
    %s3066 = sld [smem:[#allocation3 + $0x59]]
    %v3067 = vstv %s3066
    %v3068 = vmul.f32 %v3067, %v107
    %v3069 = vmul.f32 %v3067, %v108
    %v3070 = vmul.f32 %v3067, %v109
    %v3071 = vmul.f32 %v3067, %v113
    %v3072 = vmul.f32 %v3067, %v114
    %v3073 = vmul.f32 %v3067, %v115
    %v3080 = vrot.slane %v3068, 5
    %v3081 = vrot.slane %v3069, 5
    %v3082 = vsel %vm410, %v3080, %v3081
    %v3083 = vrot.slane %v3070, 5
    %v3084 = vsel %vm410, %v3081, %v3083
    %v3085 = vrot.slane %v3071, 5
    %v3086 = vrot.slane %v3072, 5
    %v3087 = vsel %vm410, %v3085, %v3086
    %v3088 = vrot.slane %v3073, 5
    %v3089 = vsel %vm410, %v3086, %v3088
    %3090 = vrot.lane.b32.xlu0 %v3082, 123
    %v3091 = vpop.permute.xlu0 %3090
    %3092 = vrot.lane.b32.xlu0 %v3084, 123
    %v3093 = vpop.permute.xlu0 %3092
    %3094 = vrot.lane.b32.xlu0 %v3087, 123
    %v3095 = vpop.permute.xlu0 %3094
    %3096 = vrot.lane.b32.xlu0 %v3089, 123
    %v3097 = vpop.permute.xlu0 %3096
    %v3102 = vadd.f32 %v3062, %v3091
    %v3103 = vadd.f32 %v3063, %v3093
    %v3104 = vadd.f32 %v3064, %v3095
    %v3105 = vadd.f32 %v3065, %v3097
    %s3106 = sld [smem:[#allocation3 + $0x2f]]
    %v3107 = vstv %s3106
    %v3108 = vmul.f32 %v3107, %v104
    %v3109 = vmul.f32 %v3107, %v105
    %v3110 = vmul.f32 %v3107, %v106
    %v3111 = vmul.f32 %v3107, %v110
    %v3112 = vmul.f32 %v3107, %v111
    %v3113 = vmul.f32 %v3107, %v112
    %v3120 = vrot.slane %v3108, 6
    %v3121 = vrot.slane %v3109, 6
    %v3122 = vsel %vm475, %v3120, %v3121
    %v3123 = vrot.slane %v3110, 6
    %v3124 = vsel %vm475, %v3121, %v3123
    %v3125 = vrot.slane %v3111, 6
    %v3126 = vrot.slane %v3112, 6
    %v3127 = vsel %vm475, %v3125, %v3126
    %v3128 = vrot.slane %v3113, 6
    %v3129 = vsel %vm475, %v3126, %v3128
    %3130 = vrot.lane.b32.xlu0 %v3122, 123
    %v3131 = vpop.permute.xlu0 %3130
    %3132 = vrot.lane.b32.xlu0 %v3124, 123
    %v3133 = vpop.permute.xlu0 %3132
    %3134 = vrot.lane.b32.xlu0 %v3127, 123
    %v3135 = vpop.permute.xlu0 %3134
    %3136 = vrot.lane.b32.xlu0 %v3129, 123
    %v3137 = vpop.permute.xlu0 %3136
    %v3142 = vadd.f32 %v3102, %v3131
    %v3143 = vadd.f32 %v3103, %v3133
    %v3144 = vadd.f32 %v3104, %v3135
    %v3145 = vadd.f32 %v3105, %v3137
    %s3146 = sld [smem:[#allocation3 + $0x60]]
    %v3147 = vstv %s3146
    %v3148 = vmul.f32 %v3147, %v107
    %v3149 = vmul.f32 %v3147, %v108
    %v3150 = vmul.f32 %v3147, %v109
    %v3151 = vmul.f32 %v3147, %v113
    %v3152 = vmul.f32 %v3147, %v114
    %v3153 = vmul.f32 %v3147, %v115
    %v3160 = vrot.slane %v3148, 6
    %v3161 = vrot.slane %v3149, 6
    %v3162 = vsel %vm475, %v3160, %v3161
    %v3163 = vrot.slane %v3150, 6
    %v3164 = vsel %vm475, %v3161, %v3163
    %v3165 = vrot.slane %v3151, 6
    %v3166 = vrot.slane %v3152, 6
    %v3167 = vsel %vm475, %v3165, %v3166
    %v3168 = vrot.slane %v3153, 6
    %v3169 = vsel %vm475, %v3166, %v3168
    %3170 = vrot.lane.b32.xlu0 %v3162, 123
    %v3171 = vpop.permute.xlu0 %3170
    %3172 = vrot.lane.b32.xlu0 %v3164, 123
    %v3173 = vpop.permute.xlu0 %3172
    %3174 = vrot.lane.b32.xlu0 %v3167, 123
    %v3175 = vpop.permute.xlu0 %3174
    %3176 = vrot.lane.b32.xlu0 %v3169, 123
    %v3177 = vpop.permute.xlu0 %3176
    %v3182 = vadd.f32 %v3142, %v3171
    %v3183 = vadd.f32 %v3143, %v3173
    %v3184 = vadd.f32 %v3144, %v3175
    %v3185 = vadd.f32 %v3145, %v3177
    %s3186 = sld [smem:[#allocation3 + $0x6]]
    %v3187 = vstv %s3186
    %v3188 = vmul.f32 %v3187, %v104
    %v3189 = vmul.f32 %v3187, %v105
    %v3190 = vmul.f32 %v3187, %v110
    %v3191 = vmul.f32 %v3187, %v111
    %3196 = vrot.lane.b32.xlu0 %v3188, 122
    %v3197 = vpop.permute.xlu0 %3196
    %3198 = vrot.lane.b32.xlu0 %v3189, 122
    %v3199 = vpop.permute.xlu0 %3198
    %3200 = vrot.lane.b32.xlu0 %v3190, 122
    %v3201 = vpop.permute.xlu0 %3200
    %3202 = vrot.lane.b32.xlu0 %v3191, 122
    %v3203 = vpop.permute.xlu0 %3202
    %v3208 = vadd.f32 %v3182, %v3197
    %v3209 = vadd.f32 %v3183, %v3199
    %v3210 = vadd.f32 %v3184, %v3201
    %v3211 = vadd.f32 %v3185, %v3203
    %s3212 = sld [smem:[#allocation3 + $0x37]]
    %v3213 = vstv %s3212
    %v3214 = vmul.f32 %v3213, %v107
    %v3215 = vmul.f32 %v3213, %v108
    %v3216 = vmul.f32 %v3213, %v113
    %v3217 = vmul.f32 %v3213, %v114
    %3222 = vrot.lane.b32.xlu0 %v3214, 122
    %v3223 = vpop.permute.xlu0 %3222
    %3224 = vrot.lane.b32.xlu0 %v3215, 122
    %v3225 = vpop.permute.xlu0 %3224
    %3226 = vrot.lane.b32.xlu0 %v3216, 122
    %v3227 = vpop.permute.xlu0 %3226
    %3228 = vrot.lane.b32.xlu0 %v3217, 122
    %v3229 = vpop.permute.xlu0 %3228
    %v3234 = vadd.f32 %v3208, %v3223
    %v3235 = vadd.f32 %v3209, %v3225
    %v3236 = vadd.f32 %v3210, %v3227
    %v3237 = vadd.f32 %v3211, %v3229
    %s3238 = sld [smem:[#allocation3 + $0xd]]
    %v3239 = vstv %s3238
    %v3240 = vmul.f32 %v3239, %v104
    %v3241 = vmul.f32 %v3239, %v105
    %v3242 = vmul.f32 %v3239, %v106
    %v3243 = vmul.f32 %v3239, %v110
    %v3244 = vmul.f32 %v3239, %v111
    %v3245 = vmul.f32 %v3239, %v112
    %v3252 = vrot.slane %v3240, 1
    %v3253 = vrot.slane %v3241, 1
    %v3254 = vsel %vm150, %v3252, %v3253
    %v3255 = vrot.slane %v3242, 1
    %v3256 = vsel %vm150, %v3253, %v3255
    %v3257 = vrot.slane %v3243, 1
    %v3258 = vrot.slane %v3244, 1
    %v3259 = vsel %vm150, %v3257, %v3258
    %v3260 = vrot.slane %v3245, 1
    %v3261 = vsel %vm150, %v3258, %v3260
    %3262 = vrot.lane.b32.xlu0 %v3254, 122
    %v3263 = vpop.permute.xlu0 %3262
    %3264 = vrot.lane.b32.xlu0 %v3256, 122
    %v3265 = vpop.permute.xlu0 %3264
    %3266 = vrot.lane.b32.xlu0 %v3259, 122
    %v3267 = vpop.permute.xlu0 %3266
    %3268 = vrot.lane.b32.xlu0 %v3261, 122
    %v3269 = vpop.permute.xlu0 %3268
    %v3274 = vadd.f32 %v3234, %v3263
    %v3275 = vadd.f32 %v3235, %v3265
    %v3276 = vadd.f32 %v3236, %v3267
    %v3277 = vadd.f32 %v3237, %v3269
    %s3278 = sld [smem:[#allocation3 + $0x3e]]
    %v3279 = vstv %s3278
    %v3280 = vmul.f32 %v3279, %v107
    %v3281 = vmul.f32 %v3279, %v108
    %v3282 = vmul.f32 %v3279, %v109
    %v3283 = vmul.f32 %v3279, %v113
    %v3284 = vmul.f32 %v3279, %v114
    %v3285 = vmul.f32 %v3279, %v115
    %v3292 = vrot.slane %v3280, 1
    %v3293 = vrot.slane %v3281, 1
    %v3294 = vsel %vm150, %v3292, %v3293
    %v3295 = vrot.slane %v3282, 1
    %v3296 = vsel %vm150, %v3293, %v3295
    %v3297 = vrot.slane %v3283, 1
    %v3298 = vrot.slane %v3284, 1
    %v3299 = vsel %vm150, %v3297, %v3298
    %v3300 = vrot.slane %v3285, 1
    %v3301 = vsel %vm150, %v3298, %v3300
    %3302 = vrot.lane.b32.xlu0 %v3294, 122
    %v3303 = vpop.permute.xlu0 %3302
    %3304 = vrot.lane.b32.xlu0 %v3296, 122
    %v3305 = vpop.permute.xlu0 %3304
    %3306 = vrot.lane.b32.xlu0 %v3299, 122
    %v3307 = vpop.permute.xlu0 %3306
    %3308 = vrot.lane.b32.xlu0 %v3301, 122
    %v3309 = vpop.permute.xlu0 %3308
    %v3314 = vadd.f32 %v3274, %v3303
    %v3315 = vadd.f32 %v3275, %v3305
    %v3316 = vadd.f32 %v3276, %v3307
    %v3317 = vadd.f32 %v3277, %v3309
    %s3318 = sld [smem:[#allocation3 + $0x14]]
    %v3319 = vstv %s3318
    %v3320 = vmul.f32 %v3319, %v104
    %v3321 = vmul.f32 %v3319, %v105
    %v3322 = vmul.f32 %v3319, %v106
    %v3323 = vmul.f32 %v3319, %v110
    %v3324 = vmul.f32 %v3319, %v111
    %v3325 = vmul.f32 %v3319, %v112
    %v3332 = vrot.slane %v3320, 2
    %v3333 = vrot.slane %v3321, 2
    %v3334 = vsel %vm215, %v3332, %v3333
    %v3335 = vrot.slane %v3322, 2
    %v3336 = vsel %vm215, %v3333, %v3335
    %v3337 = vrot.slane %v3323, 2
    %v3338 = vrot.slane %v3324, 2
    %v3339 = vsel %vm215, %v3337, %v3338
    %v3340 = vrot.slane %v3325, 2
    %v3341 = vsel %vm215, %v3338, %v3340
    %3342 = vrot.lane.b32.xlu0 %v3334, 122
    %v3343 = vpop.permute.xlu0 %3342
    %3344 = vrot.lane.b32.xlu0 %v3336, 122
    %v3345 = vpop.permute.xlu0 %3344
    %3346 = vrot.lane.b32.xlu0 %v3339, 122
    %v3347 = vpop.permute.xlu0 %3346
    %3348 = vrot.lane.b32.xlu0 %v3341, 122
    %v3349 = vpop.permute.xlu0 %3348
    %v3354 = vadd.f32 %v3314, %v3343
    %v3355 = vadd.f32 %v3315, %v3345
    %v3356 = vadd.f32 %v3316, %v3347
    %v3357 = vadd.f32 %v3317, %v3349
    %s3358 = sld [smem:[#allocation3 + $0x45]]
    %v3359 = vstv %s3358
    %v3360 = vmul.f32 %v3359, %v107
    %v3361 = vmul.f32 %v3359, %v108
    %v3362 = vmul.f32 %v3359, %v109
    %v3363 = vmul.f32 %v3359, %v113
    %v3364 = vmul.f32 %v3359, %v114
    %v3365 = vmul.f32 %v3359, %v115
    %v3372 = vrot.slane %v3360, 2
    %v3373 = vrot.slane %v3361, 2
    %v3374 = vsel %vm215, %v3372, %v3373
    %v3375 = vrot.slane %v3362, 2
    %v3376 = vsel %vm215, %v3373, %v3375
    %v3377 = vrot.slane %v3363, 2
    %v3378 = vrot.slane %v3364, 2
    %v3379 = vsel %vm215, %v3377, %v3378
    %v3380 = vrot.slane %v3365, 2
    %v3381 = vsel %vm215, %v3378, %v3380
    %3382 = vrot.lane.b32.xlu0 %v3374, 122
    %v3383 = vpop.permute.xlu0 %3382
    %3384 = vrot.lane.b32.xlu0 %v3376, 122
    %v3385 = vpop.permute.xlu0 %3384
    %3386 = vrot.lane.b32.xlu0 %v3379, 122
    %v3387 = vpop.permute.xlu0 %3386
    %3388 = vrot.lane.b32.xlu0 %v3381, 122
    %v3389 = vpop.permute.xlu0 %3388
    %v3394 = vadd.f32 %v3354, %v3383
    %v3395 = vadd.f32 %v3355, %v3385
    %v3396 = vadd.f32 %v3356, %v3387
    %v3397 = vadd.f32 %v3357, %v3389
    %s3398 = sld [smem:[#allocation3 + $0x1b]]
    %v3399 = vstv %s3398
    %v3400 = vmul.f32 %v3399, %v104
    %v3401 = vmul.f32 %v3399, %v105
    %v3402 = vmul.f32 %v3399, %v106
    %v3403 = vmul.f32 %v3399, %v110
    %v3404 = vmul.f32 %v3399, %v111
    %v3405 = vmul.f32 %v3399, %v112
    %v3412 = vrot.slane %v3400, 3
    %v3413 = vrot.slane %v3401, 3
    %v3414 = vsel %vm280, %v3412, %v3413
    %v3415 = vrot.slane %v3402, 3
    %v3416 = vsel %vm280, %v3413, %v3415
    %v3417 = vrot.slane %v3403, 3
    %v3418 = vrot.slane %v3404, 3
    %v3419 = vsel %vm280, %v3417, %v3418
    %v3420 = vrot.slane %v3405, 3
    %v3421 = vsel %vm280, %v3418, %v3420
    %3422 = vrot.lane.b32.xlu0 %v3414, 122
    %v3423 = vpop.permute.xlu0 %3422
    %3424 = vrot.lane.b32.xlu0 %v3416, 122
    %v3425 = vpop.permute.xlu0 %3424
    %3426 = vrot.lane.b32.xlu0 %v3419, 122
    %v3427 = vpop.permute.xlu0 %3426
    %3428 = vrot.lane.b32.xlu0 %v3421, 122
    %v3429 = vpop.permute.xlu0 %3428
    %v3434 = vadd.f32 %v3394, %v3423
    %v3435 = vadd.f32 %v3395, %v3425
    %v3436 = vadd.f32 %v3396, %v3427
    %v3437 = vadd.f32 %v3397, %v3429
    %s3438 = sld [smem:[#allocation3 + $0x4c]]
    %v3439 = vstv %s3438
    %v3440 = vmul.f32 %v3439, %v107
    %v3441 = vmul.f32 %v3439, %v108
    %v3442 = vmul.f32 %v3439, %v109
    %v3443 = vmul.f32 %v3439, %v113
    %v3444 = vmul.f32 %v3439, %v114
    %v3445 = vmul.f32 %v3439, %v115
    %v3452 = vrot.slane %v3440, 3
    %v3453 = vrot.slane %v3441, 3
    %v3454 = vsel %vm280, %v3452, %v3453
    %v3455 = vrot.slane %v3442, 3
    %v3456 = vsel %vm280, %v3453, %v3455
    %v3457 = vrot.slane %v3443, 3
    %v3458 = vrot.slane %v3444, 3
    %v3459 = vsel %vm280, %v3457, %v3458
    %v3460 = vrot.slane %v3445, 3
    %v3461 = vsel %vm280, %v3458, %v3460
    %3462 = vrot.lane.b32.xlu0 %v3454, 122
    %v3463 = vpop.permute.xlu0 %3462
    %3464 = vrot.lane.b32.xlu0 %v3456, 122
    %v3465 = vpop.permute.xlu0 %3464
    %3466 = vrot.lane.b32.xlu0 %v3459, 122
    %v3467 = vpop.permute.xlu0 %3466
    %3468 = vrot.lane.b32.xlu0 %v3461, 122
    %v3469 = vpop.permute.xlu0 %3468
    %v3474 = vadd.f32 %v3434, %v3463
    %v3475 = vadd.f32 %v3435, %v3465
    %v3476 = vadd.f32 %v3436, %v3467
    %v3477 = vadd.f32 %v3437, %v3469
    %s3478 = sld [smem:[#allocation3 + $0x22]]
    %v3479 = vstv %s3478
    %v3480 = vmul.f32 %v3479, %v104
    %v3481 = vmul.f32 %v3479, %v105
    %v3482 = vmul.f32 %v3479, %v106
    %v3483 = vmul.f32 %v3479, %v110
    %v3484 = vmul.f32 %v3479, %v111
    %v3485 = vmul.f32 %v3479, %v112
    %v3492 = vrot.slane %v3480, 4
    %v3493 = vrot.slane %v3481, 4
    %v3494 = vsel %vm345, %v3492, %v3493
    %v3495 = vrot.slane %v3482, 4
    %v3496 = vsel %vm345, %v3493, %v3495
    %v3497 = vrot.slane %v3483, 4
    %v3498 = vrot.slane %v3484, 4
    %v3499 = vsel %vm345, %v3497, %v3498
    %v3500 = vrot.slane %v3485, 4
    %v3501 = vsel %vm345, %v3498, %v3500
    %3502 = vrot.lane.b32.xlu0 %v3494, 122
    %v3503 = vpop.permute.xlu0 %3502
    %3504 = vrot.lane.b32.xlu0 %v3496, 122
    %v3505 = vpop.permute.xlu0 %3504
    %3506 = vrot.lane.b32.xlu0 %v3499, 122
    %v3507 = vpop.permute.xlu0 %3506
    %3508 = vrot.lane.b32.xlu0 %v3501, 122
    %v3509 = vpop.permute.xlu0 %3508
    %v3514 = vadd.f32 %v3474, %v3503
    %v3515 = vadd.f32 %v3475, %v3505
    %v3516 = vadd.f32 %v3476, %v3507
    %v3517 = vadd.f32 %v3477, %v3509
    %s3518 = sld [smem:[#allocation3 + $0x53]]
    %v3519 = vstv %s3518
    %v3520 = vmul.f32 %v3519, %v107
    %v3521 = vmul.f32 %v3519, %v108
    %v3522 = vmul.f32 %v3519, %v109
    %v3523 = vmul.f32 %v3519, %v113
    %v3524 = vmul.f32 %v3519, %v114
    %v3525 = vmul.f32 %v3519, %v115
    %v3532 = vrot.slane %v3520, 4
    %v3533 = vrot.slane %v3521, 4
    %v3534 = vsel %vm345, %v3532, %v3533
    %v3535 = vrot.slane %v3522, 4
    %v3536 = vsel %vm345, %v3533, %v3535
    %v3537 = vrot.slane %v3523, 4
    %v3538 = vrot.slane %v3524, 4
    %v3539 = vsel %vm345, %v3537, %v3538
    %v3540 = vrot.slane %v3525, 4
    %v3541 = vsel %vm345, %v3538, %v3540
    %3542 = vrot.lane.b32.xlu0 %v3534, 122
    %v3543 = vpop.permute.xlu0 %3542
    %3544 = vrot.lane.b32.xlu0 %v3536, 122
    %v3545 = vpop.permute.xlu0 %3544
    %3546 = vrot.lane.b32.xlu0 %v3539, 122
    %v3547 = vpop.permute.xlu0 %3546
    %3548 = vrot.lane.b32.xlu0 %v3541, 122
    %v3549 = vpop.permute.xlu0 %3548
    %v3554 = vadd.f32 %v3514, %v3543
    %v3555 = vadd.f32 %v3515, %v3545
    %v3556 = vadd.f32 %v3516, %v3547
    %v3557 = vadd.f32 %v3517, %v3549
    %s3558 = sld [smem:[#allocation3 + $0x29]]
    %v3559 = vstv %s3558
    %v3560 = vmul.f32 %v3559, %v104
    %v3561 = vmul.f32 %v3559, %v105
    %v3562 = vmul.f32 %v3559, %v106
    %v3563 = vmul.f32 %v3559, %v110
    %v3564 = vmul.f32 %v3559, %v111
    %v3565 = vmul.f32 %v3559, %v112
    %v3572 = vrot.slane %v3560, 5
    %v3573 = vrot.slane %v3561, 5
    %v3574 = vsel %vm410, %v3572, %v3573
    %v3575 = vrot.slane %v3562, 5
    %v3576 = vsel %vm410, %v3573, %v3575
    %v3577 = vrot.slane %v3563, 5
    %v3578 = vrot.slane %v3564, 5
    %v3579 = vsel %vm410, %v3577, %v3578
    %v3580 = vrot.slane %v3565, 5
    %v3581 = vsel %vm410, %v3578, %v3580
    %3582 = vrot.lane.b32.xlu0 %v3574, 122
    %v3583 = vpop.permute.xlu0 %3582
    %3584 = vrot.lane.b32.xlu0 %v3576, 122
    %v3585 = vpop.permute.xlu0 %3584
    %3586 = vrot.lane.b32.xlu0 %v3579, 122
    %v3587 = vpop.permute.xlu0 %3586
    %3588 = vrot.lane.b32.xlu0 %v3581, 122
    %v3589 = vpop.permute.xlu0 %3588
    %v3594 = vadd.f32 %v3554, %v3583
    %v3595 = vadd.f32 %v3555, %v3585
    %v3596 = vadd.f32 %v3556, %v3587
    %v3597 = vadd.f32 %v3557, %v3589
    %s3598 = sld [smem:[#allocation3 + $0x5a]]
    %v3599 = vstv %s3598
    %v3600 = vmul.f32 %v3599, %v107
    %v3601 = vmul.f32 %v3599, %v108
    %v3602 = vmul.f32 %v3599, %v109
    %v3603 = vmul.f32 %v3599, %v113
    %v3604 = vmul.f32 %v3599, %v114
    %v3605 = vmul.f32 %v3599, %v115
    %v3612 = vrot.slane %v3600, 5
    %v3613 = vrot.slane %v3601, 5
    %v3614 = vsel %vm410, %v3612, %v3613
    %v3615 = vrot.slane %v3602, 5
    %v3616 = vsel %vm410, %v3613, %v3615
    %v3617 = vrot.slane %v3603, 5
    %v3618 = vrot.slane %v3604, 5
    %v3619 = vsel %vm410, %v3617, %v3618
    %v3620 = vrot.slane %v3605, 5
    %v3621 = vsel %vm410, %v3618, %v3620
    %3622 = vrot.lane.b32.xlu0 %v3614, 122
    %v3623 = vpop.permute.xlu0 %3622
    %3624 = vrot.lane.b32.xlu0 %v3616, 122
    %v3625 = vpop.permute.xlu0 %3624
    %3626 = vrot.lane.b32.xlu0 %v3619, 122
    %v3627 = vpop.permute.xlu0 %3626
    %3628 = vrot.lane.b32.xlu0 %v3621, 122
    %v3629 = vpop.permute.xlu0 %3628
    %v3634 = vadd.f32 %v3594, %v3623
    %v3635 = vadd.f32 %v3595, %v3625
    %v3636 = vadd.f32 %v3596, %v3627
    %v3637 = vadd.f32 %v3597, %v3629
    %s3638 = sld [smem:[#allocation3 + $0x30]]
    %v3639 = vstv %s3638
    %v3640 = vmul.f32 %v3639, %v104
    %v3641 = vmul.f32 %v3639, %v105
    %v3642 = vmul.f32 %v3639, %v106
    %v3643 = vmul.f32 %v3639, %v110
    %v3644 = vmul.f32 %v3639, %v111
    %v3645 = vmul.f32 %v3639, %v112
    %v3652 = vrot.slane %v3640, 6
    %v3653 = vrot.slane %v3641, 6
    %v3654 = vsel %vm475, %v3652, %v3653
    %v3655 = vrot.slane %v3642, 6
    %v3656 = vsel %vm475, %v3653, %v3655
    %v3657 = vrot.slane %v3643, 6
    %v3658 = vrot.slane %v3644, 6
    %v3659 = vsel %vm475, %v3657, %v3658
    %v3660 = vrot.slane %v3645, 6
    %v3661 = vsel %vm475, %v3658, %v3660
    %3662 = vrot.lane.b32.xlu0 %v3654, 122
    %v3663 = vpop.permute.xlu0 %3662
    %3664 = vrot.lane.b32.xlu0 %v3656, 122
    %v3665 = vpop.permute.xlu0 %3664
    %3666 = vrot.lane.b32.xlu0 %v3659, 122
    %v3667 = vpop.permute.xlu0 %3666
    %3668 = vrot.lane.b32.xlu0 %v3661, 122
    %v3669 = vpop.permute.xlu0 %3668
    %v3674 = vadd.f32 %v3634, %v3663
    %v3675 = vadd.f32 %v3635, %v3665
    %v3676 = vadd.f32 %v3636, %v3667
    %v3677 = vadd.f32 %v3637, %v3669
    %s3678 = sld [smem:[#allocation3 + $0x61]]
    %v3679 = vstv %s3678
    %v3680 = vmul.f32 %v3679, %v107
    %v3681 = vmul.f32 %v3679, %v108
    %v3682 = vmul.f32 %v3679, %v109
    %v3683 = vmul.f32 %v3679, %v113
    %v3684 = vmul.f32 %v3679, %v114
    %v3685 = vmul.f32 %v3679, %v115
    %v3692 = vrot.slane %v3680, 6
    %v3693 = vrot.slane %v3681, 6
    %v3694 = vsel %vm475, %v3692, %v3693
    %v3695 = vrot.slane %v3682, 6
    %v3696 = vsel %vm475, %v3693, %v3695
    %v3697 = vrot.slane %v3683, 6
    %v3698 = vrot.slane %v3684, 6
    %v3699 = vsel %vm475, %v3697, %v3698
    %v3700 = vrot.slane %v3685, 6
    %v3701 = vsel %vm475, %v3698, %v3700
    %3702 = vrot.lane.b32.xlu0 %v3694, 122
    %v3703 = vpop.permute.xlu0 %3702
    %3704 = vrot.lane.b32.xlu0 %v3696, 122
    %v3705 = vpop.permute.xlu0 %3704
    %3706 = vrot.lane.b32.xlu0 %v3699, 122
    %v3707 = vpop.permute.xlu0 %3706
    %3708 = vrot.lane.b32.xlu0 %v3701, 122
    %v3709 = vpop.permute.xlu0 %3708
    %v3714 = vadd.f32 %v3674, %v3703
    %v3715 = vadd.f32 %v3675, %v3705
    %v3716 = vadd.f32 %v3676, %v3707
    %v3717 = vadd.f32 %v3677, %v3709
    %s3718 = sld [smem:[#allocation3 + $0x62]]
    %v3719 = vstv %s3718
    %v3720 = vmul.f32 %v3714, %v3719
    %v3721 = vmul.f32 %v3715, %v3719
    %v3722 = vmul.f32 %v3716, %v3719
    %v3723 = vmul.f32 %v3717, %v3719
    %s3724 = sld [smem:[#allocation3 + $0x63]]
    %v3725 = vstv %s3724
    %v3726 = vadd.f32 %v3720, %v3725
    %v3727 = vadd.f32 %v3721, %v3725
    %v3728 = vadd.f32 %v3722, %v3725
    %v3729 = vadd.f32 %v3723, %v3725
    %vm3730 = vcmask 130048
    %3731 = vst.msk [vmem:[#allocation8] sm:$0xff] %vm3730, %v3726
    %3732 = vst.msk [vmem:[#allocation8 + $0x8] sm:$0xff] %vm3730, %v3727
    %3733 = vst.msk [vmem:[#allocation8 + $0x10] sm:$0xff] %vm3730, %v3728
    %3734 = vst.msk [vmem:[#allocation8 + $0x18] sm:$0xff] %vm3730, %v3729
    // Predicated region
    $region22: #{tpu_custom_call.1} parent=1 // pred_check
      _
    $region23: #{tpu_custom_call.1} parent=1 // pred_check_branch
      %3736 = sbr.rel (0) target = $region25
    $region24: #{tpu_custom_call.1} parent=1 // pred_region
      %s3738 = ssub.s32 512, 512
      %3739 = vsyncadd [#allocation5], %s3738
      %s3740 = sshll.u32 [#allocation8], 4
      %s3741 = int_to_ptr.vmem [resolvable:$true] %s3740
      %3746 = dma.vmem_to_hbm [thread:$0]  %s3741, 512, %s2, [#allocation5], 128, 128, 8
    $region25: #{tpu_custom_call.1} parent=1 // pred_fallthru
      _
    // Predicated region
    $region26: #{tpu_custom_call.1} parent=1 // pred_check
      _
    $region27: #{tpu_custom_call.1} parent=1 // pred_check_branch
      %3748 = sbr.rel (0) target = $region29
    $region28: #{tpu_custom_call.1} parent=1 // pred_region
      %3749 = dma.done [#allocation5], 512
    $region29: #{tpu_custom_call.1} parent=1 // pred_fallthru
      _
    %3750 = vsyncpa [#allocation4], 1
    %3751 = vsyncpa [#allocation5], 1
    %3752 = vsyncpa [#allocation6], 1

</llo_original>
